<compile_context>
chip_gen: v5e
topology: v5e:2x2
jax: 0.10.0
libtpu: 0.0.40
codegen_flags: <defaults>
</compile_context>

<pallas_src>
import functools

import jax
import jax.numpy as jnp
from jax.experimental import pallas as pl
from jax.experimental.pallas import tpu as pltpu

# --- sizes implied by the module -------------------------------------------
S = 128       # sequence length (fixed by LayerNorm normalized_shape=[128,1024])
H = 1024      # hidden size of bertweet-large
HID = 256     # linear_module hidden_features (picked small, in-script)
C = 8         # linear_module out_features (num classes, picked small)
CP = 128      # classifier dim zero-padded to a full lane register
EPS = 1e-5    # torch.nn.LayerNorm default eps


def _slab_sum(t):
    """Sum over the (seq, hidden) slab: sublanes (axis=1) first, lanes second."""
    return jnp.sum(jnp.sum(t, axis=1, keepdims=True), axis=2, keepdims=True)


def _head_kernel(x_ref, g_ref, w1_ref, gw1_ref, bias1_ref, w2_ref, b2_ref,
                 o_ref, *, bt):
    """(bt, S, H) bf16 hidden states -> (bt, 1, CP) mean log-probs."""
    x_bf = x_ref[...]                                         # (bt, S, H) bf16
    x32 = x_bf.astype(jnp.float32)

    # LayerNorm statistics over the full (S, H) slab, single-pass, f32.
    inv_n = 1.0 / float(S * H)
    mu = _slab_sum(x32) * inv_n                               # (bt, 1, 1)
    ex2 = _slab_sum(x32 * x32) * inv_n
    var = ex2 - mu * mu
    inv_std = jax.lax.rsqrt(var + EPS)                        # (bt, 1, 1)

    # First linear, with the LN normalize hoisted past the matmul:
    #   LN(x) @ W1 = inv_std*((x*gamma)@W1) - (inv_std*mu)*(gamma@W1) + bias1
    xg = (x_bf * g_ref[...]).reshape(bt * S, H)               # bf16, feeds MXU
    p = jnp.dot(xg, w1_ref[...],
                preferred_element_type=jnp.float32).reshape(bt, S, HID)
    h = inv_std * p - (inv_std * mu) * gw1_ref[...] + bias1_ref[...]
    h = jnp.maximum(h, 0.0)                                   # ReLU (dropout = id)

    # Second linear 256 -> CP (zero-padded classes), bf16 MXU, f32 accumulate.
    y = jnp.dot(h.astype(jnp.bfloat16).reshape(bt * S, HID), w2_ref[...],
                preferred_element_type=jnp.float32)
    y = jnp.maximum(y + b2_ref[...], 0.0).reshape(bt, S, CP)  # ReLU (dropout = id)

    # log_softmax over torch dim=1 == sequence axis, then mean over it.
    m = jnp.max(y, axis=1, keepdims=True)                     # (bt, 1, CP)
    z = y - m
    lse = jnp.log(jnp.sum(jnp.exp(z), axis=1, keepdims=True))
    o_ref[...] = jnp.mean(z - lse, axis=1, keepdims=True)     # (bt, 1, CP)


def _pick_block_b(B):
    # Prefer the largest batch block (<= 4) that still leaves a grid of >= 2
    # steps, so v7x's two TensorCores both get work; bigger blocks amortize the
    # ~0.35 us/step overhead on single-TC v5e/v6e and deepen MXU pipelining.
    for d in (4, 2, 1):
        if B % d == 0 and B // d >= 2:
            return d
    return B  # tiny batch: one grid step


def berttweet_head(hidden_states, gamma, beta, w1, b1, w2, b2, *, block_b=None):
    B = hidden_states.shape[0]
    if block_b is None:
        block_b = _pick_block_b(B)
    assert B % block_b == 0

    x_bf16 = hidden_states.astype(jnp.bfloat16)
    gamma_bf16 = gamma.astype(jnp.bfloat16)
    w1_bf16 = w1.astype(jnp.bfloat16)
    # Hoisted LN terms: gamma @ W1 and (beta @ W1 + b1), both (S, HID) f32.
    gw1 = gamma.astype(jnp.float32) @ w1.astype(jnp.float32)
    bias1 = beta.astype(jnp.float32) @ w1.astype(jnp.float32) + b1.astype(jnp.float32)
    # Zero-pad the classifier to 128 lanes (lane-dense epilogue / output store).
    w2p = jnp.zeros((HID, CP), jnp.float32).at[:, :C].set(w2).astype(jnp.bfloat16)
    b2p = jnp.zeros((1, CP), jnp.float32).at[:, :C].set(b2)

    kernel = functools.partial(_head_kernel, bt=block_b)
    out = pl.pallas_call(
        kernel,
        out_shape=jax.ShapeDtypeStruct((B, 1, CP), jnp.float32),
        grid_spec=pltpu.PrefetchScalarGridSpec(
            num_scalar_prefetch=0,
            grid=(B // block_b,),
            in_specs=[
                pl.BlockSpec((block_b, S, H), lambda b: (b, 0, 0)),  # hidden (bf16)
                # Constant index_maps below -> blocks stay resident in VMEM,
                # no per-grid-step re-DMA.
                pl.BlockSpec((S, H), lambda b: (0, 0)),              # gamma (bf16)
                pl.BlockSpec((H, HID), lambda b: (0, 0)),            # W1 (bf16)
                pl.BlockSpec((S, HID), lambda b: (0, 0)),            # gamma @ W1
                pl.BlockSpec((S, HID), lambda b: (0, 0)),            # beta@W1 + b1
                pl.BlockSpec((HID, CP), lambda b: (0, 0)),           # W2 (bf16, padded)
                pl.BlockSpec((1, CP), lambda b: (0, 0)),             # b2 (padded)
            ],
            out_specs=pl.BlockSpec((block_b, 1, CP), lambda b: (b, 0, 0)),
        ),
        compiler_params=pltpu.CompilerParams(
            dimension_semantics=("parallel",),
            vmem_limit_bytes=32 * 1024 * 1024,  # safe on v7x's 64 MiB/TC VMEM
        ),
    )(x_bf16, gamma_bf16, w1_bf16, gw1, bias1, w2p, b2p)
    return out.reshape(B, CP)[:, :C]


# --- references -------------------------------------------------------------
def reference_head_f32(x, gamma, beta, w1, b1, w2, b2):
    """Full-f32 semantics of the torch module's head (eval mode)."""
    mu = jnp.mean(x, axis=(1, 2), keepdims=True)
    var = jnp.mean((x - mu) ** 2, axis=(1, 2), keepdims=True)
    xn = (x - mu) * jax.lax.rsqrt(var + EPS) * gamma + beta
    h = jnp.maximum(xn @ w1 + b1, 0.0)
    y = jnp.maximum(h @ w2 + b2, 0.0)
    lp = jax.nn.log_softmax(y, axis=1)   # torch dim=1 (sequence)
    return jnp.mean(lp, axis=1)


def reference_head_kernel_math(x_bf16, gamma, beta, w1, b1, w2, b2):
    """Mirrors the kernel's hoisted/bf16 algebra for a tight numerical check."""
    x32 = x_bf16.astype(jnp.float32)
    mu = jnp.mean(x32, axis=(1, 2), keepdims=True)
    var = jnp.mean(x32 * x32, axis=(1, 2), keepdims=True) - mu * mu
    inv_std = jax.lax.rsqrt(var + EPS)
    xg = x_bf16 * gamma.astype(jnp.bfloat16)
    p = jnp.einsum("bsh,hk->bsk", xg, w1.astype(jnp.bfloat16),
                   preferred_element_type=jnp.float32)
    gw1 = gamma @ w1
    bias1 = beta @ w1 + b1
    h = jnp.maximum(inv_std * p - (inv_std * mu) * gw1 + bias1, 0.0)
    y = jnp.einsum("bsk,kc->bsc", h.astype(jnp.bfloat16), w2.astype(jnp.bfloat16),
                   preferred_element_type=jnp.float32) + b2
    y = jnp.maximum(y, 0.0)
    lp = jax.nn.log_softmax(y, axis=1)
    return jnp.mean(lp, axis=1)


if __name__ == "__main__":
    key = jax.random.PRNGKey(0)
    k_x, k_w1, k_b1, k_w2, k_b2 = jax.random.split(key, 5)

    B = 4   # block_b = 2 -> M = 256-row matmuls, grid length 2 (even, >= 2)
    # Stand-in for bert_tweet_model(x).last_hidden_state (backbone emits bf16).
    hidden_f32 = jax.random.normal(k_x, (B, S, H), dtype=jnp.float32)
    hidden_bf16 = hidden_f32.astype(jnp.bfloat16)

    # LayerNorm params (default torch init: ones / zeros).
    gamma = jnp.ones((S, H), dtype=jnp.float32)
    beta = jnp.zeros((S, H), dtype=jnp.float32)

    # Linear params, deterministic small init.
    w1 = jax.random.normal(k_w1, (H, HID), dtype=jnp.float32) * 0.02
    b1 = jax.random.normal(k_b1, (1, HID), dtype=jnp.float32) * 0.02
    w2 = jax.random.normal(k_w2, (HID, C), dtype=jnp.float32) * 0.02
    b2 = jax.random.normal(k_b2, (1, C), dtype=jnp.float32) * 0.02

    out = berttweet_head(hidden_bf16, gamma, beta, w1, b1, w2, b2)
    out = jax.block_until_ready(out)
    assert out.shape == (B, C)

    # Tight check against a reference that mirrors the kernel's algebra.
    ref_k = reference_head_kernel_math(hidden_bf16, gamma, beta, w1, b1, w2, b2)
    assert jnp.allclose(out, ref_k, atol=2e-3, rtol=2e-3), \
        float(jnp.max(jnp.abs(out - ref_k)))

    # Looser check against the full-f32 semantics of the original torch module.
    ref_f32 = reference_head_f32(hidden_f32, gamma, beta, w1, b1, w2, b2)
    assert jnp.allclose(out, ref_f32, atol=2.5e-2, rtol=2.5e-2), \
        float(jnp.max(jnp.abs(out - ref_f32)))

    print("KERNEL_OK")
</pallas_src>

<mosaic_0001>
module attributes {stable_mosaic.version = 11 : i64} {
  func.func @_head_kernel(%arg0: i32, %arg1: memref<2x128x1024xbf16, #tpu.memory_space<vmem>>, %arg2: memref<128x1024xbf16, #tpu.memory_space<vmem>>, %arg3: memref<1024x256xbf16, #tpu.memory_space<vmem>>, %arg4: memref<128x256xf32, #tpu.memory_space<vmem>>, %arg5: memref<128x256xf32, #tpu.memory_space<vmem>>, %arg6: memref<256x128xbf16, #tpu.memory_space<vmem>>, %arg7: memref<1x128xf32, #tpu.memory_space<vmem>>, %arg8: memref<2x1x128xf32, #tpu.memory_space<vmem>>) attributes {dimension_semantics = [#tpu.dimension_semantics<parallel>], iteration_bounds = array<i64: 2>, scalar_prefetch = 0 : i64, scratch_operands = 0 : i64, tpu.core_type = #tpu.core_type<tc>, window_params = [{transform_indices = @transform_0, window_bounds = array<i64: 2, 128, 1024>}, {pipeline_mode = #tpu.pipeline_mode<synchronous>, transform_indices = @transform_1, window_bounds = array<i64: 128, 1024>}, {pipeline_mode = #tpu.pipeline_mode<synchronous>, transform_indices = @transform_2, window_bounds = array<i64: 1024, 256>}, {pipeline_mode = #tpu.pipeline_mode<synchronous>, transform_indices = @transform_3, window_bounds = array<i64: 128, 256>}, {pipeline_mode = #tpu.pipeline_mode<synchronous>, transform_indices = @transform_4, window_bounds = array<i64: 128, 256>}, {pipeline_mode = #tpu.pipeline_mode<synchronous>, transform_indices = @transform_5, window_bounds = array<i64: 256, 128>}, {pipeline_mode = #tpu.pipeline_mode<synchronous>, transform_indices = @transform_6, window_bounds = array<i64: 1, 128>}, {transform_indices = @transform_7, window_bounds = array<i64: 2, 1, 128>}]} {
    %c0 = arith.constant 0 : index
    %c0_0 = arith.constant 0 : index
    %c0_1 = arith.constant 0 : index
    %0 = vector.load %arg1[%c0, %c0_0, %c0_1] : memref<2x128x1024xbf16, #tpu.memory_space<vmem>>, vector<2x128x1024xbf16>
    %1 = arith.extf %0 : vector<2x128x1024xbf16> to vector<2x128x1024xf32>
    %cst = arith.constant dense<0.000000e+00> : vector<2x1024xf32>
    %2 = vector.multi_reduction <add>, %1, %cst [1] : vector<2x128x1024xf32> to vector<2x1024xf32>
    %3 = vector.shape_cast %2 : vector<2x1024xf32> to vector<2x1x1024xf32>
    %cst_2 = arith.constant dense<0.000000e+00> : vector<2x1xf32>
    %4 = vector.multi_reduction <add>, %3, %cst_2 [2] : vector<2x1x1024xf32> to vector<2x1xf32>
    %5 = vector.shape_cast %4 : vector<2x1xf32> to vector<2x1x1xf32>
    %cst_3 = arith.constant 7.62939453E-6 : f32
    %6 = vector.broadcast %cst_3 : f32 to vector<2x1x1xf32>
    %7 = arith.mulf %5, %6 : vector<2x1x1xf32>
    %8 = arith.mulf %1, %1 : vector<2x128x1024xf32>
    %cst_4 = arith.constant dense<0.000000e+00> : vector<2x1024xf32>
    %9 = vector.multi_reduction <add>, %8, %cst_4 [1] : vector<2x128x1024xf32> to vector<2x1024xf32>
    %10 = vector.shape_cast %9 : vector<2x1024xf32> to vector<2x1x1024xf32>
    %cst_5 = arith.constant dense<0.000000e+00> : vector<2x1xf32>
    %11 = vector.multi_reduction <add>, %10, %cst_5 [2] : vector<2x1x1024xf32> to vector<2x1xf32>
    %12 = vector.shape_cast %11 : vector<2x1xf32> to vector<2x1x1xf32>
    %cst_6 = arith.constant 7.62939453E-6 : f32
    %13 = vector.broadcast %cst_6 : f32 to vector<2x1x1xf32>
    %14 = arith.mulf %12, %13 : vector<2x1x1xf32>
    %15 = arith.mulf %7, %7 : vector<2x1x1xf32>
    %16 = arith.subf %14, %15 : vector<2x1x1xf32>
    %cst_7 = arith.constant 9.99999974E-6 : f32
    %17 = vector.broadcast %cst_7 : f32 to vector<2x1x1xf32>
    %18 = arith.addf %16, %17 : vector<2x1x1xf32>
    %19 = math.rsqrt %18 : vector<2x1x1xf32>
    %c0_8 = arith.constant 0 : index
    %c0_9 = arith.constant 0 : index
    %20 = vector.load %arg2[%c0_8, %c0_9] : memref<128x1024xbf16, #tpu.memory_space<vmem>>, vector<128x1024xbf16>
    %21 = vector.shape_cast %20 : vector<128x1024xbf16> to vector<1x128x1024xbf16>
    %22 = vector.broadcast %21 : vector<1x128x1024xbf16> to vector<2x128x1024xbf16>
    %23 = arith.mulf %0, %22 : vector<2x128x1024xbf16>
    %24 = vector.shape_cast %23 : vector<2x128x1024xbf16> to vector<256x1024xbf16>
    %c0_10 = arith.constant 0 : index
    %c0_11 = arith.constant 0 : index
    %25 = vector.load %arg3[%c0_10, %c0_11] : memref<1024x256xbf16, #tpu.memory_space<vmem>>, vector<1024x256xbf16>
    %cst_12 = arith.constant dense<0.000000e+00> : vector<256x256xf32>
    %26 = tpu.matmul %24, %25, %cst_12 {dimension_numbers = #tpu.dot_dimension_numbers<[1], [0], [0], [1], [0, 0, 1, 1], [], []>} : vector<256x1024xbf16>, vector<1024x256xbf16>, vector<256x256xf32> -> vector<256x256xf32>
    %27 = vector.shape_cast %26 : vector<256x256xf32> to vector<2x128x256xf32>
    %28 = vector.broadcast %19 : vector<2x1x1xf32> to vector<2x128x256xf32>
    %29 = arith.mulf %28, %27 : vector<2x128x256xf32>
    %30 = arith.mulf %19, %7 : vector<2x1x1xf32>
    %c0_13 = arith.constant 0 : index
    %c0_14 = arith.constant 0 : index
    %31 = vector.load %arg4[%c0_13, %c0_14] : memref<128x256xf32, #tpu.memory_space<vmem>>, vector<128x256xf32>
    %32 = vector.shape_cast %31 : vector<128x256xf32> to vector<1x128x256xf32>
    %33 = vector.broadcast %30 : vector<2x1x1xf32> to vector<2x128x256xf32>
    %34 = vector.broadcast %32 : vector<1x128x256xf32> to vector<2x128x256xf32>
    %35 = arith.mulf %33, %34 : vector<2x128x256xf32>
    %36 = arith.subf %29, %35 : vector<2x128x256xf32>
    %c0_15 = arith.constant 0 : index
    %c0_16 = arith.constant 0 : index
    %37 = vector.load %arg5[%c0_15, %c0_16] : memref<128x256xf32, #tpu.memory_space<vmem>>, vector<128x256xf32>
    %38 = vector.shape_cast %37 : vector<128x256xf32> to vector<1x128x256xf32>
    %39 = vector.broadcast %38 : vector<1x128x256xf32> to vector<2x128x256xf32>
    %40 = arith.addf %36, %39 : vector<2x128x256xf32>
    %cst_17 = arith.constant 0.000000e+00 : f32
    %41 = vector.broadcast %cst_17 : f32 to vector<2x128x256xf32>
    %42 = arith.maximumf %40, %41 : vector<2x128x256xf32>
    %43 = arith.truncf %42 : vector<2x128x256xf32> to vector<2x128x256xbf16>
    %44 = vector.shape_cast %43 : vector<2x128x256xbf16> to vector<256x256xbf16>
    %c0_18 = arith.constant 0 : index
    %c0_19 = arith.constant 0 : index
    %45 = vector.load %arg6[%c0_18, %c0_19] : memref<256x128xbf16, #tpu.memory_space<vmem>>, vector<256x128xbf16>
    %cst_20 = arith.constant dense<0.000000e+00> : vector<256x128xf32>
    %46 = tpu.matmul %44, %45, %cst_20 {dimension_numbers = #tpu.dot_dimension_numbers<[1], [0], [0], [1], [0, 0, 1, 1], [], []>} : vector<256x256xbf16>, vector<256x128xbf16>, vector<256x128xf32> -> vector<256x128xf32>
    %c0_21 = arith.constant 0 : index
    %c0_22 = arith.constant 0 : index
    %47 = vector.load %arg7[%c0_21, %c0_22] : memref<1x128xf32, #tpu.memory_space<vmem>>, vector<1x128xf32>
    %48 = vector.broadcast %47 : vector<1x128xf32> to vector<256x128xf32>
    %49 = arith.addf %46, %48 : vector<256x128xf32>
    %cst_23 = arith.constant 0.000000e+00 : f32
    %50 = vector.broadcast %cst_23 : f32 to vector<256x128xf32>
    %51 = arith.maximumf %49, %50 : vector<256x128xf32>
    %52 = vector.shape_cast %51 : vector<256x128xf32> to vector<2x128x128xf32>
    %cst_24 = arith.constant dense<0xFF800000> : vector<2x128xf32>
    %53 = vector.multi_reduction <maximumf>, %52, %cst_24 [1] : vector<2x128x128xf32> to vector<2x128xf32>
    %54 = vector.shape_cast %53 : vector<2x128xf32> to vector<2x1x128xf32>
    %55 = vector.broadcast %54 : vector<2x1x128xf32> to vector<2x128x128xf32>
    %56 = arith.subf %52, %55 : vector<2x128x128xf32>
    %57 = math.exp %56 : vector<2x128x128xf32>
    %cst_25 = arith.constant dense<0.000000e+00> : vector<2x128xf32>
    %58 = vector.multi_reduction <add>, %57, %cst_25 [1] : vector<2x128x128xf32> to vector<2x128xf32>
    %59 = vector.shape_cast %58 : vector<2x128xf32> to vector<2x1x128xf32>
    %60 = math.log %59 : vector<2x1x128xf32>
    %61 = vector.broadcast %60 : vector<2x1x128xf32> to vector<2x128x128xf32>
    %62 = arith.subf %56, %61 : vector<2x128x128xf32>
    %cst_26 = arith.constant dense<0.000000e+00> : vector<2x128xf32>
    %63 = vector.multi_reduction <add>, %62, %cst_26 [1] : vector<2x128x128xf32> to vector<2x128xf32>
    %64 = vector.shape_cast %63 : vector<2x128xf32> to vector<2x1x128xf32>
    %cst_27 = arith.constant 1.280000e+02 : f32
    %65 = vector.broadcast %cst_27 : f32 to vector<2x1x128xf32>
    %66 = arith.divf %64, %65 : vector<2x1x128xf32>
    %c0_28 = arith.constant 0 : index
    %c0_29 = arith.constant 0 : index
    %c0_30 = arith.constant 0 : index
    %67 = vector.load %arg8[%c0_28, %c0_29, %c0_30] : memref<2x1x128xf32, #tpu.memory_space<vmem>>, vector<2x1x128xf32>
    tpu.vector_store %arg8[%c0_28, %c0_29, %c0_30], %66 {strides = array<i32>} : memref<2x1x128xf32, #tpu.memory_space<vmem>>, vector<2x1x128xf32>,
    return
  }
  func.func @transform_0(%arg0: i32) -> (i32, i32, i32) {
    %c0_i32 = arith.constant 0 : i32
    %c0_i32_0 = arith.constant 0 : i32
    %c0_i32_1 = arith.constant 0 : i32
    return %arg0, %c0_i32, %c0_i32_0 : i32, i32, i32
  }
  func.func @transform_1(%arg0: i32) -> (i32, i32) {
    %c0_i32 = arith.constant 0 : i32
    %c0_i32_0 = arith.constant 0 : i32
    %c0_i32_1 = arith.constant 0 : i32
    return %c0_i32, %c0_i32_0 : i32, i32
  }
  func.func @transform_2(%arg0: i32) -> (i32, i32) {
    %c0_i32 = arith.constant 0 : i32
    %c0_i32_0 = arith.constant 0 : i32
    %c0_i32_1 = arith.constant 0 : i32
    return %c0_i32, %c0_i32_0 : i32, i32
  }
  func.func @transform_3(%arg0: i32) -> (i32, i32) {
    %c0_i32 = arith.constant 0 : i32
    %c0_i32_0 = arith.constant 0 : i32
    %c0_i32_1 = arith.constant 0 : i32
    return %c0_i32, %c0_i32_0 : i32, i32
  }
  func.func @transform_4(%arg0: i32) -> (i32, i32) {
    %c0_i32 = arith.constant 0 : i32
    %c0_i32_0 = arith.constant 0 : i32
    %c0_i32_1 = arith.constant 0 : i32
    return %c0_i32, %c0_i32_0 : i32, i32
  }
  func.func @transform_5(%arg0: i32) -> (i32, i32) {
    %c0_i32 = arith.constant 0 : i32
    %c0_i32_0 = arith.constant 0 : i32
    %c0_i32_1 = arith.constant 0 : i32
    return %c0_i32, %c0_i32_0 : i32, i32
  }
  func.func @transform_6(%arg0: i32) -> (i32, i32) {
    %c0_i32 = arith.constant 0 : i32
    %c0_i32_0 = arith.constant 0 : i32
    %c0_i32_1 = arith.constant 0 : i32
    return %c0_i32, %c0_i32_0 : i32, i32
  }
  func.func @transform_7(%arg0: i32) -> (i32, i32, i32) {
    %c0_i32 = arith.constant 0 : i32
    %c0_i32_0 = arith.constant 0 : i32
    %c0_i32_1 = arith.constant 0 : i32
    return %arg0, %c0_i32, %c0_i32_0 : i32, i32, i32
  }
}

</mosaic_0001>

<llo_original>
// kernel: tpu_custom_call.1
$region0: #{tpu_custom_call.1}
  #allocation0 [shape = 'u32[]', space=smem, size = 0x4, offset = 0x4, fixed_abs, tag = 'smem constant byte address 0x4 - core index']
  #allocation1 [shape = 'u32[72,128]{1,0:T(1,128)}', space=vmem, size = 0x9000, scoped, tag = 'internal scratch']
  %s0 = inlined_call_operand.hbm [shape: bf16[4,128,1024], index: 0, kind: input, shape index: {}]
  %s1 = inlined_call_operand.hbm [shape: bf16[128,1024], index: 1, kind: input, shape index: {}]
  %s2 = inlined_call_operand.hbm [shape: bf16[1024,256], index: 2, kind: input, shape index: {}]
  %s3 = inlined_call_operand.hbm [shape: f32[128,256], index: 3, kind: input, shape index: {}]
  %s4 = inlined_call_operand.hbm [shape: f32[128,256], index: 4, kind: input, shape index: {}]
  %s5 = inlined_call_operand.hbm [shape: bf16[256,128], index: 5, kind: input, shape index: {}]
  %s6 = inlined_call_operand.vmem [shape: f32[1,128], index: 6, kind: input, shape index: {}]
  %s7 = inlined_call_operand.hbm [shape: f32[4,1,128], index: 7, kind: output, shape index: {}]
  %s8 = sld [smem:[#allocation0]]
  $region85: #{tpu_custom_call.1} parent=0
    _
  %s10 = ssub.s32 1, %s8
  %s11 = scalar_select 0, %s10, %s8
  $region1: #{tpu_custom_call.1} parent=0
    #allocation2 [shape = 'u8[1048576]{0}', space=vmem, size = 0x100000, scoped, tag = 'input window, operand 0']
    #allocation3 [shape = 's32[2]{0}', space=sflag, size = 0x8, scoped, tag = 'scoped memory for tpu_custom_call.1']
    #allocation4 [shape = 's32[2]{0}', space=sflag, size = 0x8, scoped, tag = 'scoped memory for tpu_custom_call.1']
    #allocation5 [shape = 'u8[262144]{0}', space=vmem, size = 0x40000, scoped, tag = 'input window, operand 1, single buffered']
    #allocation6 [shape = 's32[1]{0}', space=sflag, size = 0x4, scoped, tag = 'scoped memory for tpu_custom_call.1']
    #allocation7 [shape = 'u8[524288]{0}', space=vmem, size = 0x80000, scoped, tag = 'input window, operand 2, single buffered']
    #allocation8 [shape = 'u8[131072]{0}', space=vmem, size = 0x20000, scoped, tag = 'input window, operand 3, single buffered']
    #allocation9 [shape = 's32[1]{0}', space=sflag, size = 0x4, scoped, tag = 'scoped memory for tpu_custom_call.1']
    #allocation10 [shape = 'u8[131072]{0}', space=vmem, size = 0x20000, scoped, tag = 'input window, operand 4, single buffered']
    #allocation11 [shape = 'u8[65536]{0}', space=vmem, size = 0x10000, scoped, tag = 'input window, operand 5, single buffered']
    #allocation12 [shape = 's32[1]{0}', space=sflag, size = 0x4, scoped, tag = 'scoped memory for tpu_custom_call.1']
    #allocation13 [shape = 'u8[2048]{0}', space=vmem, size = 0x800, scoped, tag = 'output window, operand 0']
    %12 = vsyncpa [#allocation3], 0
    %s13 = scalar_lea.sflag [#allocation3], 1
    %14 = vsyncpa %s13, 0
    %15 = vsyncpa [#allocation6], 0
    %16 = vsyncpa [#allocation9], 0
    %17 = vsyncpa [#allocation12], 0
    %18 = vsyncpa [#allocation4], 0
    %s19 = scalar_lea.sflag [#allocation4], 1
    %20 = vsyncpa %s19, 0
    loop: start=0, step=1, limit=4
    $region2: #{tpu_custom_call.1} parent=1 // loop_pre_header
      _
    $region3: #{tpu_custom_call.1} parent=1 // loop_header
      %s22 = sphi 0, %s26
      %p23 = scmp.ge.s32.totalorder %s22, 4
      %s32 = sphi 0, %s34
      %s35 = sphi 0, %s32
      %s36 = sphi 0, %s35
      %s52 = sphi 0, %s36
      %s56 = sphi 0, %s56
      %s58 = sphi 0, %s56
      %s59 = sphi 0, %s58
      %s73 = sphi 0, %s59
      %s77 = sphi 0, %s77
      %s79 = sphi 0, %s77
      %s80 = sphi 0, %s79
      %s94 = sphi 0, %s80
      %s98 = sphi 0, %s98
      %s100 = sphi 0, %s98
      %s101 = sphi 0, %s100
      %s115 = sphi 0, %s101
      %s119 = sphi 0, %s119
      %s121 = sphi 0, %s119
      %s122 = sphi 0, %s121
      %s136 = sphi 0, %s122
      %s140 = sphi 0, %s140
      %s142 = sphi 0, %s140
      %s143 = sphi 0, %s142
      %s157 = sphi 0, %s143
      %s161 = sphi 0, %s161
      %s163 = sphi 0, %s161
      %s164 = sphi 0, %s163
      %s178 = sphi 0, %s164
      %s184 = sphi 0, %s186
      %s187 = sphi 0, %s184
      %s188 = sphi 0, %s187
      %s204 = sphi 0, %s188
    $region4: #{tpu_custom_call.1} parent=1 // loop_header_branch
      %25 = sbr.rel (%p23) target = $region8
    $region5: #{tpu_custom_call.1} parent=1 // loop_body
      %s27 = ssub.s32 %s22, 1
      %s28 = ssub.s32 %s22, 2
      %s29 = sadd.s32 %s22, 1
      %s30 = ssub.s32 %s22, %s29
      %p31 = scmp.eq.s32.totalorder %s30, 0
      %s33 = sadd.s32 %s32, 1
      %s34 = scalar_select %p31, %s32, %s33
      %p37 = pneg %p31
      %p38 = scmp.eq.s32.totalorder %s22, 1
      %p39 = por %p37, %p38
      %p40 = scmp.ne.s32.totalorder %s32, %s35
      %p41 = scmp.eq.s32.totalorder %s22, 0
      %p42 = por %p40, %p41
      %p43 = scmp.ne.s32.totalorder %s32, %s35
      %p44 = scmp.eq.s32.totalorder %s27, 1
      %p45 = por %p43, %p44
      %p46 = scmp.ne.s32.totalorder %s35, %s36
      %p47 = scmp.eq.s32.totalorder %s27, 0
      %p48 = por %p46, %p47
      %p49 = scmp.ne.s32.totalorder %s35, %s36
      %p50 = scmp.eq.s32.totalorder %s28, 1
      %p51 = por %p49, %p50
      %p53 = scmp.ne.s32.totalorder %s36, %s52
      %p54 = scmp.eq.s32.totalorder %s28, 0
      %p55 = por %p53, %p54
      %s57 = sadd.s32 %s56, 1
      %p60 = scmp.eq.s32.totalorder %s22, 1
      %p61 = scmp.ne.s32.totalorder %s56, %s58
      %p62 = scmp.eq.s32.totalorder %s22, 0
      %p63 = por %p61, %p62
      %p64 = scmp.ne.s32.totalorder %s56, %s58
      %p65 = scmp.eq.s32.totalorder %s27, 1
      %p66 = por %p64, %p65
      %p67 = scmp.ne.s32.totalorder %s58, %s59
      %p68 = scmp.eq.s32.totalorder %s27, 0
      %p69 = por %p67, %p68
      %p70 = scmp.ne.s32.totalorder %s58, %s59
      %p71 = scmp.eq.s32.totalorder %s28, 1
      %p72 = por %p70, %p71
      %p74 = scmp.ne.s32.totalorder %s59, %s73
      %p75 = scmp.eq.s32.totalorder %s28, 0
      %p76 = por %p74, %p75
      %s78 = sadd.s32 %s77, 1
      %p81 = scmp.eq.s32.totalorder %s22, 1
      %p82 = scmp.ne.s32.totalorder %s77, %s79
      %p83 = scmp.eq.s32.totalorder %s22, 0
      %p84 = por %p82, %p83
      %p85 = scmp.ne.s32.totalorder %s77, %s79
      %p86 = scmp.eq.s32.totalorder %s27, 1
      %p87 = por %p85, %p86
      %p88 = scmp.ne.s32.totalorder %s79, %s80
      %p89 = scmp.eq.s32.totalorder %s27, 0
      %p90 = por %p88, %p89
      %p91 = scmp.ne.s32.totalorder %s79, %s80
      %p92 = scmp.eq.s32.totalorder %s28, 1
      %p93 = por %p91, %p92
      %p95 = scmp.ne.s32.totalorder %s80, %s94
      %p96 = scmp.eq.s32.totalorder %s28, 0
      %p97 = por %p95, %p96
      %s99 = sadd.s32 %s98, 1
      %p102 = scmp.eq.s32.totalorder %s22, 1
      %p103 = scmp.ne.s32.totalorder %s98, %s100
      %p104 = scmp.eq.s32.totalorder %s22, 0
      %p105 = por %p103, %p104
      %p106 = scmp.ne.s32.totalorder %s98, %s100
      %p107 = scmp.eq.s32.totalorder %s27, 1
      %p108 = por %p106, %p107
      %p109 = scmp.ne.s32.totalorder %s100, %s101
      %p110 = scmp.eq.s32.totalorder %s27, 0
      %p111 = por %p109, %p110
      %p112 = scmp.ne.s32.totalorder %s100, %s101
      %p113 = scmp.eq.s32.totalorder %s28, 1
      %p114 = por %p112, %p113
      %p116 = scmp.ne.s32.totalorder %s101, %s115
      %p117 = scmp.eq.s32.totalorder %s28, 0
      %p118 = por %p116, %p117
      %s120 = sadd.s32 %s119, 1
      %p123 = scmp.eq.s32.totalorder %s22, 1
      %p124 = scmp.ne.s32.totalorder %s119, %s121
      %p125 = scmp.eq.s32.totalorder %s22, 0
      %p126 = por %p124, %p125
      %p127 = scmp.ne.s32.totalorder %s119, %s121
      %p128 = scmp.eq.s32.totalorder %s27, 1
      %p129 = por %p127, %p128
      %p130 = scmp.ne.s32.totalorder %s121, %s122
      %p131 = scmp.eq.s32.totalorder %s27, 0
      %p132 = por %p130, %p131
      %p133 = scmp.ne.s32.totalorder %s121, %s122
      %p134 = scmp.eq.s32.totalorder %s28, 1
      %p135 = por %p133, %p134
      %p137 = scmp.ne.s32.totalorder %s122, %s136
      %p138 = scmp.eq.s32.totalorder %s28, 0
      %p139 = por %p137, %p138
      %s141 = sadd.s32 %s140, 1
      %p144 = scmp.eq.s32.totalorder %s22, 1
      %p145 = scmp.ne.s32.totalorder %s140, %s142
      %p146 = scmp.eq.s32.totalorder %s22, 0
      %p147 = por %p145, %p146
      %p148 = scmp.ne.s32.totalorder %s140, %s142
      %p149 = scmp.eq.s32.totalorder %s27, 1
      %p150 = por %p148, %p149
      %p151 = scmp.ne.s32.totalorder %s142, %s143
      %p152 = scmp.eq.s32.totalorder %s27, 0
      %p153 = por %p151, %p152
      %p154 = scmp.ne.s32.totalorder %s142, %s143
      %p155 = scmp.eq.s32.totalorder %s28, 1
      %p156 = por %p154, %p155
      %p158 = scmp.ne.s32.totalorder %s143, %s157
      %p159 = scmp.eq.s32.totalorder %s28, 0
      %p160 = por %p158, %p159
      %s162 = sadd.s32 %s161, 1
      %p165 = scmp.eq.s32.totalorder %s22, 1
      %p166 = scmp.ne.s32.totalorder %s161, %s163
      %p167 = scmp.eq.s32.totalorder %s22, 0
      %p168 = por %p166, %p167
      %p169 = scmp.ne.s32.totalorder %s161, %s163
      %p170 = scmp.eq.s32.totalorder %s27, 1
      %p171 = por %p169, %p170
      %p172 = scmp.ne.s32.totalorder %s163, %s164
      %p173 = scmp.eq.s32.totalorder %s27, 0
      %p174 = por %p172, %p173
      %p175 = scmp.ne.s32.totalorder %s163, %s164
      %p176 = scmp.eq.s32.totalorder %s28, 1
      %p177 = por %p175, %p176
      %p179 = scmp.ne.s32.totalorder %s164, %s178
      %p180 = scmp.eq.s32.totalorder %s28, 0
      %p181 = por %p179, %p180
      %s182 = ssub.s32 %s22, %s29
      %p183 = scmp.eq.s32.totalorder %s182, 0
      %s185 = sadd.s32 %s184, 1
      %s186 = scalar_select %p183, %s184, %s185
      %p189 = pneg %p183
      %p190 = scmp.eq.s32.totalorder %s22, 1
      %p191 = por %p189, %p190
      %p192 = scmp.ne.s32.totalorder %s184, %s187
      %p193 = scmp.eq.s32.totalorder %s22, 0
      %p194 = por %p192, %p193
      %p195 = scmp.ne.s32.totalorder %s184, %s187
      %p196 = scmp.eq.s32.totalorder %s27, 1
      %p197 = por %p195, %p196
      %p198 = scmp.ne.s32.totalorder %s187, %s188
      %p199 = scmp.eq.s32.totalorder %s27, 0
      %p200 = por %p198, %p199
      %p201 = scmp.ne.s32.totalorder %s187, %s188
      %p202 = scmp.eq.s32.totalorder %s28, 1
      %p203 = por %p201, %p202
      %p205 = scmp.ne.s32.totalorder %s188, %s204
      %p206 = scmp.eq.s32.totalorder %s28, 0
      %p207 = por %p205, %p206
      %p208 = scmp.le.s32.totalorder 1, %s22
      %p209 = scmp.lt.s32.totalorder %s22, 3
      %p210 = pnand %p208, %p209
      %p211 = pneg %p210
      // Predicated region
      $region9: #{tpu_custom_call.1} parent=5 // pred_check
        _
      $region10: #{tpu_custom_call.1} parent=5 // pred_check_branch
        %213 = sbr.rel (%p210) target = $region12
      $region11: #{tpu_custom_call.1} parent=5 // pred_region
        %s214 = ssub.s32 %s22, 1
        // Predicated region
        $region13: #{tpu_custom_call.1} parent=11 // pred_check
          %p215 = pneg %p69
        $region14: #{tpu_custom_call.1} parent=11 // pred_check_branch
          %217 = sbr.rel (%p215) target = $region16
        $region15: #{tpu_custom_call.1} parent=11 // pred_region
          %219 = vsyncadd [#allocation6], 0
          %s220 = sshll.u32 %s1, 4
          %s221 = int_to_ptr.hbm [resolvable:$true] %s220
          %s222 = sshll.u32 [#allocation5], 4
          %s223 = int_to_ptr.vmem [resolvable:$true] %s222
          %228 = dma.hbm_to_vmem [thread:$0]  %s221, 8192, %s223, [#allocation6], 512, 512, 32
        $region16: #{tpu_custom_call.1} parent=11 // pred_fallthru
          _
        // Predicated region
        $region17: #{tpu_custom_call.1} parent=11 // pred_check
          %p229 = pneg %p90
        $region18: #{tpu_custom_call.1} parent=11 // pred_check_branch
          %231 = sbr.rel (%p229) target = $region20
        $region19: #{tpu_custom_call.1} parent=11 // pred_region
          %233 = vsyncadd [#allocation6], 0
          %s234 = sshll.u32 %s2, 4
          %s235 = int_to_ptr.hbm [resolvable:$true] %s234
          %s236 = sshll.u32 [#allocation7], 4
          %s237 = int_to_ptr.vmem [resolvable:$true] %s236
          %242 = dma.hbm_to_vmem [thread:$0]  %s235, 16384, %s237, [#allocation6], 128, 128, 8
        $region20: #{tpu_custom_call.1} parent=11 // pred_fallthru
          _
        // Predicated region
        $region21: #{tpu_custom_call.1} parent=11 // pred_check
          %p243 = pneg %p111
        $region22: #{tpu_custom_call.1} parent=11 // pred_check_branch
          %245 = sbr.rel (%p243) target = $region24
        $region23: #{tpu_custom_call.1} parent=11 // pred_region
          %247 = vsyncadd [#allocation9], 0
          %s248 = sshll.u32 %s3, 4
          %s249 = int_to_ptr.hbm [resolvable:$true] %s248
          %s250 = sshll.u32 [#allocation8], 4
          %s251 = int_to_ptr.vmem [resolvable:$true] %s250
          %256 = dma.hbm_to_vmem [thread:$0]  %s249, 4096, %s251, [#allocation9], 256, 256, 16
        $region24: #{tpu_custom_call.1} parent=11 // pred_fallthru
          _
        // Predicated region
        $region25: #{tpu_custom_call.1} parent=11 // pred_check
          %p257 = pneg %p132
        $region26: #{tpu_custom_call.1} parent=11 // pred_check_branch
          %259 = sbr.rel (%p257) target = $region28
        $region27: #{tpu_custom_call.1} parent=11 // pred_region
          %261 = vsyncadd [#allocation9], 0
          %s262 = sshll.u32 %s4, 4
          %s263 = int_to_ptr.hbm [resolvable:$true] %s262
          %s264 = sshll.u32 [#allocation10], 4
          %s265 = int_to_ptr.vmem [resolvable:$true] %s264
          %270 = dma.hbm_to_vmem [thread:$0]  %s263, 4096, %s265, [#allocation9], 256, 256, 16
        $region28: #{tpu_custom_call.1} parent=11 // pred_fallthru
          _
        // Predicated region
        $region29: #{tpu_custom_call.1} parent=11 // pred_check
          %p271 = pneg %p153
        $region30: #{tpu_custom_call.1} parent=11 // pred_check_branch
          %273 = sbr.rel (%p271) target = $region32
        $region31: #{tpu_custom_call.1} parent=11 // pred_region
          %275 = vsyncadd [#allocation12], 0
          %s276 = sshll.u32 %s5, 4
          %s277 = int_to_ptr.hbm [resolvable:$true] %s276
          %s278 = sshll.u32 [#allocation11], 4
          %s279 = int_to_ptr.vmem [resolvable:$true] %s278
          %284 = dma.hbm_to_vmem [thread:$0]  %s277, 2048, %s279, [#allocation12], 64, 64, 4
        $region32: #{tpu_custom_call.1} parent=11 // pred_fallthru
          _
        // Predicated region
        $region33: #{tpu_custom_call.1} parent=11 // pred_check
          %p285 = pneg %p174
        $region34: #{tpu_custom_call.1} parent=11 // pred_check_branch
          %287 = sbr.rel (%p285) target = $region36
        $region35: #{tpu_custom_call.1} parent=11 // pred_region
          _
        $region36: #{tpu_custom_call.1} parent=11 // pred_fallthru
          _
      $region12: #{tpu_custom_call.1} parent=5 // pred_fallthru
        _
      %p288 = scmp.lt.s32.totalorder %s22, 2
      // Predicated region
      $region37: #{tpu_custom_call.1} parent=5 // pred_check
        %p289 = pneg %p288
      $region38: #{tpu_custom_call.1} parent=5 // pred_check_branch
        %291 = sbr.rel (%p289) target = $region40
      $region39: #{tpu_custom_call.1} parent=5 // pred_region
        // Predicated region
        $region41: #{tpu_custom_call.1} parent=39 // pred_check
          %p292 = pneg %p42
        $region42: #{tpu_custom_call.1} parent=39 // pred_check_branch
          %294 = sbr.rel (%p292) target = $region44
        $region43: #{tpu_custom_call.1} parent=39 // pred_region
          %s295 = sand.u32 %s32, 1
          %s296 = scalar_lea.sflag [#allocation3], %s295
          %s297 = sand.u32 %s32, 1
          %s298 = smul.addr %s297, 1024
          %s299 = scalar_lea.vmem [#allocation2], %s298
          %s300 = smul.u32 2, %s22
          %302 = vsyncadd %s296, 0
          %s303 = smul.addr %s300, 128
          %s304 = smul.addr %s303, 4
          %s305 = scalar_lea.hbm %s0, %s304
          %s306 = sshll.u32 %s305, 4
          %s307 = int_to_ptr.hbm [resolvable:$true] %s306
          %s308 = sshll.u32 %s299, 4
          %s309 = int_to_ptr.vmem [resolvable:$true] %s308
          %314 = dma.hbm_to_vmem [thread:$0]  %s307, 16384, %s309, %s296, 512, 512, 32
        $region44: #{tpu_custom_call.1} parent=39 // pred_fallthru
          _
      $region40: #{tpu_custom_call.1} parent=5 // pred_fallthru
        _
      %p315 = scmp.le.s32.totalorder 1, %s22
      %p316 = scmp.lt.s32.totalorder %s22, 3
      %p317 = pnand %p315, %p316
      %p318 = pneg %p317
      // Predicated region
      $region45: #{tpu_custom_call.1} parent=5 // pred_check
        _
      $region46: #{tpu_custom_call.1} parent=5 // pred_check_branch
        %320 = sbr.rel (%p317) target = $region48
      $region47: #{tpu_custom_call.1} parent=5 // pred_region
        %s321 = ssub.s32 %s22, 1
        %s322 = sand.u32 %s35, 1
        %s323 = scalar_lea.sflag [#allocation3], %s322
        %s324 = sand.u32 %s35, 1
        %s325 = smul.addr %s324, 1024
        %s326 = scalar_lea.vmem [#allocation2], %s325
        // Predicated region
        $region49: #{tpu_custom_call.1} parent=47 // pred_check
          %p327 = pneg %p48
        $region50: #{tpu_custom_call.1} parent=47 // pred_check_branch
          %329 = sbr.rel (%p327) target = $region52
        $region51: #{tpu_custom_call.1} parent=47 // pred_region
          %331 = dma.done %s323, 16384
        $region52: #{tpu_custom_call.1} parent=47 // pred_fallthru
          _
        // Predicated region
        $region53: #{tpu_custom_call.1} parent=47 // pred_check
          %p332 = pneg %p69
        $region54: #{tpu_custom_call.1} parent=47 // pred_check_branch
          %334 = sbr.rel (%p332) target = $region56
        $region55: #{tpu_custom_call.1} parent=47 // pred_region
          %336 = dma.done [#allocation6], 8192
        $region56: #{tpu_custom_call.1} parent=47 // pred_fallthru
          _
        // Predicated region
        $region57: #{tpu_custom_call.1} parent=47 // pred_check
          %p337 = pneg %p90
        $region58: #{tpu_custom_call.1} parent=47 // pred_check_branch
          %339 = sbr.rel (%p337) target = $region60
        $region59: #{tpu_custom_call.1} parent=47 // pred_region
          %341 = dma.done [#allocation6], 16384
        $region60: #{tpu_custom_call.1} parent=47 // pred_fallthru
          _
        // Predicated region
        $region61: #{tpu_custom_call.1} parent=47 // pred_check
          %p342 = pneg %p111
        $region62: #{tpu_custom_call.1} parent=47 // pred_check_branch
          %344 = sbr.rel (%p342) target = $region64
        $region63: #{tpu_custom_call.1} parent=47 // pred_region
          %346 = dma.done [#allocation9], 4096
        $region64: #{tpu_custom_call.1} parent=47 // pred_fallthru
          _
        // Predicated region
        $region65: #{tpu_custom_call.1} parent=47 // pred_check
          %p347 = pneg %p132
        $region66: #{tpu_custom_call.1} parent=47 // pred_check_branch
          %349 = sbr.rel (%p347) target = $region68
        $region67: #{tpu_custom_call.1} parent=47 // pred_region
          %351 = dma.done [#allocation9], 4096
        $region68: #{tpu_custom_call.1} parent=47 // pred_fallthru
          _
        // Predicated region
        $region69: #{tpu_custom_call.1} parent=47 // pred_check
          %p352 = pneg %p153
        $region70: #{tpu_custom_call.1} parent=47 // pred_check_branch
          %354 = sbr.rel (%p352) target = $region72
        $region71: #{tpu_custom_call.1} parent=47 // pred_region
          %356 = dma.done [#allocation12], 2048
        $region72: #{tpu_custom_call.1} parent=47 // pred_fallthru
          _
        %s357 = sand.u32 %s35, 1
        %s358 = scalar_lea.sflag [#allocation3], %s357
        %s359 = sand.u32 %s35, 1
        %s360 = smul.addr %s359, 1024
        %s361 = scalar_lea.vmem [#allocation2], %s360
        %p362 = pneg %p48
        %p363 = pneg %p45
        %p364 = pneg %p69
        %p365 = pneg %p66
        %p366 = pneg %p90
        %p367 = pneg %p87
        %p368 = pneg %p111
        %p369 = pneg %p108
        %p370 = pneg %p132
        %p371 = pneg %p129
        %p372 = pneg %p153
        %p373 = pneg %p150
        %p374 = pneg %p174
        %p375 = pneg %p171
        %p376 = pneg %p200
        %p377 = pneg %p197
        %s378 = sand.u32 %s187, 1
        %s379 = scalar_lea.sflag [#allocation4], %s378
        %s380 = sand.u32 %s187, 1
        %s381 = smul.addr %s380, 2
        %s382 = scalar_lea.vmem [#allocation13], %s381
        %s383 = smul.u32 2, %s27
        %s384 = smul.u32 2, %s27
        %v385 = vld [vmem:[%s326] sm:$0xff]
        %v386 = vld [vmem:[%s326 + $0x8] sm:$0xff]
        %v387 = vld [vmem:[%s326 + $0x10] sm:$0xff]
        %v388 = vld [vmem:[%s326 + $0x18] sm:$0xff]
        %v389 = vld [vmem:[%s326 + $0x20] sm:$0xff]
        %v390 = vld [vmem:[%s326 + $0x28] sm:$0xff]
        %v391 = vld [vmem:[%s326 + $0x30] sm:$0xff]
        %v392 = vld [vmem:[%s326 + $0x38] sm:$0xff]
        %v393 = vld [vmem:[%s326 + $0x40] sm:$0xff]
        %v394 = vld [vmem:[%s326 + $0x48] sm:$0xff]
        %v395 = vld [vmem:[%s326 + $0x50] sm:$0xff]
        %v396 = vld [vmem:[%s326 + $0x58] sm:$0xff]
        %v397 = vld [vmem:[%s326 + $0x60] sm:$0xff]
        %v398 = vld [vmem:[%s326 + $0x68] sm:$0xff]
        %v399 = vld [vmem:[%s326 + $0x70] sm:$0xff]
        %v400 = vld [vmem:[%s326 + $0x78] sm:$0xff]
        %v401 = vld [vmem:[%s326 + $0x80] sm:$0xff]
        %v402 = vld [vmem:[%s326 + $0x88] sm:$0xff]
        %v403 = vld [vmem:[%s326 + $0x90] sm:$0xff]
        %v404 = vld [vmem:[%s326 + $0x98] sm:$0xff]
        %v405 = vld [vmem:[%s326 + $0xa0] sm:$0xff]
        %v406 = vld [vmem:[%s326 + $0xa8] sm:$0xff]
        %v407 = vld [vmem:[%s326 + $0xb0] sm:$0xff]
        %v408 = vld [vmem:[%s326 + $0xb8] sm:$0xff]
        %v409 = vld [vmem:[%s326 + $0xc0] sm:$0xff]
        %v410 = vld [vmem:[%s326 + $0xc8] sm:$0xff]
        %v411 = vld [vmem:[%s326 + $0xd0] sm:$0xff]
        %v412 = vld [vmem:[%s326 + $0xd8] sm:$0xff]
        %v413 = vld [vmem:[%s326 + $0xe0] sm:$0xff]
        %v414 = vld [vmem:[%s326 + $0xe8] sm:$0xff]
        %v415 = vld [vmem:[%s326 + $0xf0] sm:$0xff]
        %v416 = vld [vmem:[%s326 + $0xf8] sm:$0xff]
        %v417 = vld [vmem:[%s326 + $0x100] sm:$0xff]
        %v418 = vld [vmem:[%s326 + $0x108] sm:$0xff]
        %v419 = vld [vmem:[%s326 + $0x110] sm:$0xff]
        %v420 = vld [vmem:[%s326 + $0x118] sm:$0xff]
        %v421 = vld [vmem:[%s326 + $0x120] sm:$0xff]
        %v422 = vld [vmem:[%s326 + $0x128] sm:$0xff]
        %v423 = vld [vmem:[%s326 + $0x130] sm:$0xff]
        %v424 = vld [vmem:[%s326 + $0x138] sm:$0xff]
        %v425 = vld [vmem:[%s326 + $0x140] sm:$0xff]
        %v426 = vld [vmem:[%s326 + $0x148] sm:$0xff]
        %v427 = vld [vmem:[%s326 + $0x150] sm:$0xff]
        %v428 = vld [vmem:[%s326 + $0x158] sm:$0xff]
        %v429 = vld [vmem:[%s326 + $0x160] sm:$0xff]
        %v430 = vld [vmem:[%s326 + $0x168] sm:$0xff]
        %v431 = vld [vmem:[%s326 + $0x170] sm:$0xff]
        %v432 = vld [vmem:[%s326 + $0x178] sm:$0xff]
        %v433 = vld [vmem:[%s326 + $0x180] sm:$0xff]
        %v434 = vld [vmem:[%s326 + $0x188] sm:$0xff]
        %v435 = vld [vmem:[%s326 + $0x190] sm:$0xff]
        %v436 = vld [vmem:[%s326 + $0x198] sm:$0xff]
        %v437 = vld [vmem:[%s326 + $0x1a0] sm:$0xff]
        %v438 = vld [vmem:[%s326 + $0x1a8] sm:$0xff]
        %v439 = vld [vmem:[%s326 + $0x1b0] sm:$0xff]
        %v440 = vld [vmem:[%s326 + $0x1b8] sm:$0xff]
        %v441 = vld [vmem:[%s326 + $0x1c0] sm:$0xff]
        %v442 = vld [vmem:[%s326 + $0x1c8] sm:$0xff]
        %v443 = vld [vmem:[%s326 + $0x1d0] sm:$0xff]
        %v444 = vld [vmem:[%s326 + $0x1d8] sm:$0xff]
        %v445 = vld [vmem:[%s326 + $0x1e0] sm:$0xff]
        %v446 = vld [vmem:[%s326 + $0x1e8] sm:$0xff]
        %v447 = vld [vmem:[%s326 + $0x1f0] sm:$0xff]
        %v448 = vld [vmem:[%s326 + $0x1f8] sm:$0xff]
        %v449 = vld [vmem:[%s326 + $0x200] sm:$0xff]
        %v450 = vld [vmem:[%s326 + $0x208] sm:$0xff]
        %v451 = vld [vmem:[%s326 + $0x210] sm:$0xff]
        %v452 = vld [vmem:[%s326 + $0x218] sm:$0xff]
        %v453 = vld [vmem:[%s326 + $0x220] sm:$0xff]
        %v454 = vld [vmem:[%s326 + $0x228] sm:$0xff]
        %v455 = vld [vmem:[%s326 + $0x230] sm:$0xff]
        %v456 = vld [vmem:[%s326 + $0x238] sm:$0xff]
        %v457 = vld [vmem:[%s326 + $0x240] sm:$0xff]
        %v458 = vld [vmem:[%s326 + $0x248] sm:$0xff]
        %v459 = vld [vmem:[%s326 + $0x250] sm:$0xff]
        %v460 = vld [vmem:[%s326 + $0x258] sm:$0xff]
        %v461 = vld [vmem:[%s326 + $0x260] sm:$0xff]
        %v462 = vld [vmem:[%s326 + $0x268] sm:$0xff]
        %v463 = vld [vmem:[%s326 + $0x270] sm:$0xff]
        %v464 = vld [vmem:[%s326 + $0x278] sm:$0xff]
        %v465 = vld [vmem:[%s326 + $0x280] sm:$0xff]
        %v466 = vld [vmem:[%s326 + $0x288] sm:$0xff]
        %v467 = vld [vmem:[%s326 + $0x290] sm:$0xff]
        %v468 = vld [vmem:[%s326 + $0x298] sm:$0xff]
        %v469 = vld [vmem:[%s326 + $0x2a0] sm:$0xff]
        %v470 = vld [vmem:[%s326 + $0x2a8] sm:$0xff]
        %v471 = vld [vmem:[%s326 + $0x2b0] sm:$0xff]
        %v472 = vld [vmem:[%s326 + $0x2b8] sm:$0xff]
        %v473 = vld [vmem:[%s326 + $0x2c0] sm:$0xff]
        %v474 = vld [vmem:[%s326 + $0x2c8] sm:$0xff]
        %v475 = vld [vmem:[%s326 + $0x2d0] sm:$0xff]
        %v476 = vld [vmem:[%s326 + $0x2d8] sm:$0xff]
        %v477 = vld [vmem:[%s326 + $0x2e0] sm:$0xff]
        %v478 = vld [vmem:[%s326 + $0x2e8] sm:$0xff]
        %v479 = vld [vmem:[%s326 + $0x2f0] sm:$0xff]
        %v480 = vld [vmem:[%s326 + $0x2f8] sm:$0xff]
        %v481 = vld [vmem:[%s326 + $0x300] sm:$0xff]
        %v482 = vld [vmem:[%s326 + $0x308] sm:$0xff]
        %v483 = vld [vmem:[%s326 + $0x310] sm:$0xff]
        %v484 = vld [vmem:[%s326 + $0x318] sm:$0xff]
        %v485 = vld [vmem:[%s326 + $0x320] sm:$0xff]
        %v486 = vld [vmem:[%s326 + $0x328] sm:$0xff]
        %v487 = vld [vmem:[%s326 + $0x330] sm:$0xff]
        %v488 = vld [vmem:[%s326 + $0x338] sm:$0xff]
        %v489 = vld [vmem:[%s326 + $0x340] sm:$0xff]
        %v490 = vld [vmem:[%s326 + $0x348] sm:$0xff]
        %v491 = vld [vmem:[%s326 + $0x350] sm:$0xff]
        %v492 = vld [vmem:[%s326 + $0x358] sm:$0xff]
        %v493 = vld [vmem:[%s326 + $0x360] sm:$0xff]
        %v494 = vld [vmem:[%s326 + $0x368] sm:$0xff]
        %v495 = vld [vmem:[%s326 + $0x370] sm:$0xff]
        %v496 = vld [vmem:[%s326 + $0x378] sm:$0xff]
        %v497 = vld [vmem:[%s326 + $0x380] sm:$0xff]
        %v498 = vld [vmem:[%s326 + $0x388] sm:$0xff]
        %v499 = vld [vmem:[%s326 + $0x390] sm:$0xff]
        %v500 = vld [vmem:[%s326 + $0x398] sm:$0xff]
        %v501 = vld [vmem:[%s326 + $0x3a0] sm:$0xff]
        %v502 = vld [vmem:[%s326 + $0x3a8] sm:$0xff]
        %v503 = vld [vmem:[%s326 + $0x3b0] sm:$0xff]
        %v504 = vld [vmem:[%s326 + $0x3b8] sm:$0xff]
        %v505 = vld [vmem:[%s326 + $0x3c0] sm:$0xff]
        %v506 = vld [vmem:[%s326 + $0x3c8] sm:$0xff]
        %v507 = vld [vmem:[%s326 + $0x3d0] sm:$0xff]
        %v508 = vld [vmem:[%s326 + $0x3d8] sm:$0xff]
        %v509 = vld [vmem:[%s326 + $0x3e0] sm:$0xff]
        %v510 = vld [vmem:[%s326 + $0x3e8] sm:$0xff]
        %v511 = vld [vmem:[%s326 + $0x3f0] sm:$0xff]
        %v512 = vld [vmem:[%s326 + $0x3f8] sm:$0xff]
        %v513 = vunpack.c.l.bf16 %v385
        %v514 = vunpack.c.h.bf16 %v385
        %v515 = vunpack.c.l.bf16 %v386
        %v516 = vunpack.c.h.bf16 %v386
        %v517 = vunpack.c.l.bf16 %v387
        %v518 = vunpack.c.h.bf16 %v387
        %v519 = vunpack.c.l.bf16 %v388
        %v520 = vunpack.c.h.bf16 %v388
        %v521 = vunpack.c.l.bf16 %v389
        %v522 = vunpack.c.h.bf16 %v389
        %v523 = vunpack.c.l.bf16 %v390
        %v524 = vunpack.c.h.bf16 %v390
        %v525 = vunpack.c.l.bf16 %v391
        %v526 = vunpack.c.h.bf16 %v391
        %v527 = vunpack.c.l.bf16 %v392
        %v528 = vunpack.c.h.bf16 %v392
        %v529 = vunpack.c.l.bf16 %v393
        %v530 = vunpack.c.h.bf16 %v393
        %v531 = vunpack.c.l.bf16 %v394
        %v532 = vunpack.c.h.bf16 %v394
        %v533 = vunpack.c.l.bf16 %v395
        %v534 = vunpack.c.h.bf16 %v395
        %v535 = vunpack.c.l.bf16 %v396
        %v536 = vunpack.c.h.bf16 %v396
        %v537 = vunpack.c.l.bf16 %v397
        %v538 = vunpack.c.h.bf16 %v397
        %v539 = vunpack.c.l.bf16 %v398
        %v540 = vunpack.c.h.bf16 %v398
        %v541 = vunpack.c.l.bf16 %v399
        %v542 = vunpack.c.h.bf16 %v399
        %v543 = vunpack.c.l.bf16 %v400
        %v544 = vunpack.c.h.bf16 %v400
        %v545 = vunpack.c.l.bf16 %v401
        %v546 = vunpack.c.h.bf16 %v401
        %v547 = vunpack.c.l.bf16 %v402
        %v548 = vunpack.c.h.bf16 %v402
        %v549 = vunpack.c.l.bf16 %v403
        %v550 = vunpack.c.h.bf16 %v403
        %v551 = vunpack.c.l.bf16 %v404
        %v552 = vunpack.c.h.bf16 %v404
        %v553 = vunpack.c.l.bf16 %v405
        %v554 = vunpack.c.h.bf16 %v405
        %v555 = vunpack.c.l.bf16 %v406
        %v556 = vunpack.c.h.bf16 %v406
        %v557 = vunpack.c.l.bf16 %v407
        %v558 = vunpack.c.h.bf16 %v407
        %v559 = vunpack.c.l.bf16 %v408
        %v560 = vunpack.c.h.bf16 %v408
        %v561 = vunpack.c.l.bf16 %v409
        %v562 = vunpack.c.h.bf16 %v409
        %v563 = vunpack.c.l.bf16 %v410
        %v564 = vunpack.c.h.bf16 %v410
        %v565 = vunpack.c.l.bf16 %v411
        %v566 = vunpack.c.h.bf16 %v411
        %v567 = vunpack.c.l.bf16 %v412
        %v568 = vunpack.c.h.bf16 %v412
        %v569 = vunpack.c.l.bf16 %v413
        %v570 = vunpack.c.h.bf16 %v413
        %v571 = vunpack.c.l.bf16 %v414
        %v572 = vunpack.c.h.bf16 %v414
        %v573 = vunpack.c.l.bf16 %v415
        %v574 = vunpack.c.h.bf16 %v415
        %v575 = vunpack.c.l.bf16 %v416
        %v576 = vunpack.c.h.bf16 %v416
        %v577 = vunpack.c.l.bf16 %v417
        %v578 = vunpack.c.h.bf16 %v417
        %v579 = vunpack.c.l.bf16 %v418
        %v580 = vunpack.c.h.bf16 %v418
        %v581 = vunpack.c.l.bf16 %v419
        %v582 = vunpack.c.h.bf16 %v419
        %v583 = vunpack.c.l.bf16 %v420
        %v584 = vunpack.c.h.bf16 %v420
        %v585 = vunpack.c.l.bf16 %v421
        %v586 = vunpack.c.h.bf16 %v421
        %v587 = vunpack.c.l.bf16 %v422
        %v588 = vunpack.c.h.bf16 %v422
        %v589 = vunpack.c.l.bf16 %v423
        %v590 = vunpack.c.h.bf16 %v423
        %v591 = vunpack.c.l.bf16 %v424
        %v592 = vunpack.c.h.bf16 %v424
        %v593 = vunpack.c.l.bf16 %v425
        %v594 = vunpack.c.h.bf16 %v425
        %v595 = vunpack.c.l.bf16 %v426
        %v596 = vunpack.c.h.bf16 %v426
        %v597 = vunpack.c.l.bf16 %v427
        %v598 = vunpack.c.h.bf16 %v427
        %v599 = vunpack.c.l.bf16 %v428
        %v600 = vunpack.c.h.bf16 %v428
        %v601 = vunpack.c.l.bf16 %v429
        %v602 = vunpack.c.h.bf16 %v429
        %v603 = vunpack.c.l.bf16 %v430
        %v604 = vunpack.c.h.bf16 %v430
        %v605 = vunpack.c.l.bf16 %v431
        %v606 = vunpack.c.h.bf16 %v431
        %v607 = vunpack.c.l.bf16 %v432
        %v608 = vunpack.c.h.bf16 %v432
        %v609 = vunpack.c.l.bf16 %v433
        %v610 = vunpack.c.h.bf16 %v433
        %v611 = vunpack.c.l.bf16 %v434
        %v612 = vunpack.c.h.bf16 %v434
        %v613 = vunpack.c.l.bf16 %v435
        %v614 = vunpack.c.h.bf16 %v435
        %v615 = vunpack.c.l.bf16 %v436
        %v616 = vunpack.c.h.bf16 %v436
        %v617 = vunpack.c.l.bf16 %v437
        %v618 = vunpack.c.h.bf16 %v437
        %v619 = vunpack.c.l.bf16 %v438
        %v620 = vunpack.c.h.bf16 %v438
        %v621 = vunpack.c.l.bf16 %v439
        %v622 = vunpack.c.h.bf16 %v439
        %v623 = vunpack.c.l.bf16 %v440
        %v624 = vunpack.c.h.bf16 %v440
        %v625 = vunpack.c.l.bf16 %v441
        %v626 = vunpack.c.h.bf16 %v441
        %v627 = vunpack.c.l.bf16 %v442
        %v628 = vunpack.c.h.bf16 %v442
        %v629 = vunpack.c.l.bf16 %v443
        %v630 = vunpack.c.h.bf16 %v443
        %v631 = vunpack.c.l.bf16 %v444
        %v632 = vunpack.c.h.bf16 %v444
        %v633 = vunpack.c.l.bf16 %v445
        %v634 = vunpack.c.h.bf16 %v445
        %v635 = vunpack.c.l.bf16 %v446
        %v636 = vunpack.c.h.bf16 %v446
        %v637 = vunpack.c.l.bf16 %v447
        %v638 = vunpack.c.h.bf16 %v447
        %v639 = vunpack.c.l.bf16 %v448
        %v640 = vunpack.c.h.bf16 %v448
        %v641 = vunpack.c.l.bf16 %v449
        %v642 = vunpack.c.h.bf16 %v449
        %v643 = vunpack.c.l.bf16 %v450
        %v644 = vunpack.c.h.bf16 %v450
        %v645 = vunpack.c.l.bf16 %v451
        %v646 = vunpack.c.h.bf16 %v451
        %v647 = vunpack.c.l.bf16 %v452
        %v648 = vunpack.c.h.bf16 %v452
        %v649 = vunpack.c.l.bf16 %v453
        %v650 = vunpack.c.h.bf16 %v453
        %v651 = vunpack.c.l.bf16 %v454
        %v652 = vunpack.c.h.bf16 %v454
        %v653 = vunpack.c.l.bf16 %v455
        %v654 = vunpack.c.h.bf16 %v455
        %v655 = vunpack.c.l.bf16 %v456
        %v656 = vunpack.c.h.bf16 %v456
        %v657 = vunpack.c.l.bf16 %v457
        %v658 = vunpack.c.h.bf16 %v457
        %v659 = vunpack.c.l.bf16 %v458
        %v660 = vunpack.c.h.bf16 %v458
        %v661 = vunpack.c.l.bf16 %v459
        %v662 = vunpack.c.h.bf16 %v459
        %v663 = vunpack.c.l.bf16 %v460
        %v664 = vunpack.c.h.bf16 %v460
        %v665 = vunpack.c.l.bf16 %v461
        %v666 = vunpack.c.h.bf16 %v461
        %v667 = vunpack.c.l.bf16 %v462
        %v668 = vunpack.c.h.bf16 %v462
        %v669 = vunpack.c.l.bf16 %v463
        %v670 = vunpack.c.h.bf16 %v463
        %v671 = vunpack.c.l.bf16 %v464
        %v672 = vunpack.c.h.bf16 %v464
        %v673 = vunpack.c.l.bf16 %v465
        %v674 = vunpack.c.h.bf16 %v465
        %v675 = vunpack.c.l.bf16 %v466
        %v676 = vunpack.c.h.bf16 %v466
        %v677 = vunpack.c.l.bf16 %v467
        %v678 = vunpack.c.h.bf16 %v467
        %v679 = vunpack.c.l.bf16 %v468
        %v680 = vunpack.c.h.bf16 %v468
        %v681 = vunpack.c.l.bf16 %v469
        %v682 = vunpack.c.h.bf16 %v469
        %v683 = vunpack.c.l.bf16 %v470
        %v684 = vunpack.c.h.bf16 %v470
        %v685 = vunpack.c.l.bf16 %v471
        %v686 = vunpack.c.h.bf16 %v471
        %v687 = vunpack.c.l.bf16 %v472
        %v688 = vunpack.c.h.bf16 %v472
        %v689 = vunpack.c.l.bf16 %v473
        %v690 = vunpack.c.h.bf16 %v473
        %v691 = vunpack.c.l.bf16 %v474
        %v692 = vunpack.c.h.bf16 %v474
        %v693 = vunpack.c.l.bf16 %v475
        %v694 = vunpack.c.h.bf16 %v475
        %v695 = vunpack.c.l.bf16 %v476
        %v696 = vunpack.c.h.bf16 %v476
        %v697 = vunpack.c.l.bf16 %v477
        %v698 = vunpack.c.h.bf16 %v477
        %v699 = vunpack.c.l.bf16 %v478
        %v700 = vunpack.c.h.bf16 %v478
        %v701 = vunpack.c.l.bf16 %v479
        %v702 = vunpack.c.h.bf16 %v479
        %v703 = vunpack.c.l.bf16 %v480
        %v704 = vunpack.c.h.bf16 %v480
        %v705 = vunpack.c.l.bf16 %v481
        %v706 = vunpack.c.h.bf16 %v481
        %v707 = vunpack.c.l.bf16 %v482
        %v708 = vunpack.c.h.bf16 %v482
        %v709 = vunpack.c.l.bf16 %v483
        %v710 = vunpack.c.h.bf16 %v483
        %v711 = vunpack.c.l.bf16 %v484
        %v712 = vunpack.c.h.bf16 %v484
        %v713 = vunpack.c.l.bf16 %v485
        %v714 = vunpack.c.h.bf16 %v485
        %v715 = vunpack.c.l.bf16 %v486
        %v716 = vunpack.c.h.bf16 %v486
        %v717 = vunpack.c.l.bf16 %v487
        %v718 = vunpack.c.h.bf16 %v487
        %v719 = vunpack.c.l.bf16 %v488
        %v720 = vunpack.c.h.bf16 %v488
        %v721 = vunpack.c.l.bf16 %v489
        %v722 = vunpack.c.h.bf16 %v489
        %v723 = vunpack.c.l.bf16 %v490
        %v724 = vunpack.c.h.bf16 %v490
        %v725 = vunpack.c.l.bf16 %v491
        %v726 = vunpack.c.h.bf16 %v491
        %v727 = vunpack.c.l.bf16 %v492
        %v728 = vunpack.c.h.bf16 %v492
        %v729 = vunpack.c.l.bf16 %v493
        %v730 = vunpack.c.h.bf16 %v493
        %v731 = vunpack.c.l.bf16 %v494
        %v732 = vunpack.c.h.bf16 %v494
        %v733 = vunpack.c.l.bf16 %v495
        %v734 = vunpack.c.h.bf16 %v495
        %v735 = vunpack.c.l.bf16 %v496
        %v736 = vunpack.c.h.bf16 %v496
        %v737 = vunpack.c.l.bf16 %v497
        %v738 = vunpack.c.h.bf16 %v497
        %v739 = vunpack.c.l.bf16 %v498
        %v740 = vunpack.c.h.bf16 %v498
        %v741 = vunpack.c.l.bf16 %v499
        %v742 = vunpack.c.h.bf16 %v499
        %v743 = vunpack.c.l.bf16 %v500
        %v744 = vunpack.c.h.bf16 %v500
        %v745 = vunpack.c.l.bf16 %v501
        %v746 = vunpack.c.h.bf16 %v501
        %v747 = vunpack.c.l.bf16 %v502
        %v748 = vunpack.c.h.bf16 %v502
        %v749 = vunpack.c.l.bf16 %v503
        %v750 = vunpack.c.h.bf16 %v503
        %v751 = vunpack.c.l.bf16 %v504
        %v752 = vunpack.c.h.bf16 %v504
        %v753 = vunpack.c.l.bf16 %v505
        %v754 = vunpack.c.h.bf16 %v505
        %v755 = vunpack.c.l.bf16 %v506
        %v756 = vunpack.c.h.bf16 %v506
        %v757 = vunpack.c.l.bf16 %v507
        %v758 = vunpack.c.h.bf16 %v507
        %v759 = vunpack.c.l.bf16 %v508
        %v760 = vunpack.c.h.bf16 %v508
        %v761 = vunpack.c.l.bf16 %v509
        %v762 = vunpack.c.h.bf16 %v509
        %v763 = vunpack.c.l.bf16 %v510
        %v764 = vunpack.c.h.bf16 %v510
        %v765 = vunpack.c.l.bf16 %v511
        %v766 = vunpack.c.h.bf16 %v511
        %v767 = vunpack.c.l.bf16 %v512
        %v768 = vunpack.c.h.bf16 %v512
        %v769 = vadd.f32 %v513, %v521
        %v770 = vadd.f32 %v769, %v529
        %v771 = vadd.f32 %v770, %v537
        %v772 = vadd.f32 %v771, %v545
        %v773 = vadd.f32 %v772, %v553
        %v774 = vadd.f32 %v773, %v561
        %v775 = vadd.f32 %v774, %v569
        %v776 = vadd.f32 %v775, %v577
        %v777 = vadd.f32 %v776, %v585
        %v778 = vadd.f32 %v777, %v593
        %v779 = vadd.f32 %v778, %v601
        %v780 = vadd.f32 %v779, %v609
        %v781 = vadd.f32 %v780, %v617
        %v782 = vadd.f32 %v781, %v625
        %v783 = vadd.f32 %v782, %v633
        %v784 = vrot.slane %v783, 4
        %v785 = vadd.f32 %v783, %v784
        %v786 = vrot.slane %v785, 2
        %v787 = vadd.f32 %v785, %v786
        %v788 = vrot.slane %v787, 1
        %v789 = vadd.f32 %v787, %v788
        %v790 = vadd.f32 %v514, %v522
        %v791 = vadd.f32 %v790, %v530
        %v792 = vadd.f32 %v791, %v538
        %v793 = vadd.f32 %v792, %v546
        %v794 = vadd.f32 %v793, %v554
        %v795 = vadd.f32 %v794, %v562
        %v796 = vadd.f32 %v795, %v570
        %v797 = vadd.f32 %v796, %v578
        %v798 = vadd.f32 %v797, %v586
        %v799 = vadd.f32 %v798, %v594
        %v800 = vadd.f32 %v799, %v602
        %v801 = vadd.f32 %v800, %v610
        %v802 = vadd.f32 %v801, %v618
        %v803 = vadd.f32 %v802, %v626
        %v804 = vadd.f32 %v803, %v634
        %v805 = vrot.slane %v804, 4
        %v806 = vadd.f32 %v804, %v805
        %v807 = vrot.slane %v806, 2
        %v808 = vadd.f32 %v806, %v807
        %v809 = vrot.slane %v808, 1
        %v810 = vadd.f32 %v808, %v809
        %v811 = vadd.f32 %v515, %v523
        %v812 = vadd.f32 %v811, %v531
        %v813 = vadd.f32 %v812, %v539
        %v814 = vadd.f32 %v813, %v547
        %v815 = vadd.f32 %v814, %v555
        %v816 = vadd.f32 %v815, %v563
        %v817 = vadd.f32 %v816, %v571
        %v818 = vadd.f32 %v817, %v579
        %v819 = vadd.f32 %v818, %v587
        %v820 = vadd.f32 %v819, %v595
        %v821 = vadd.f32 %v820, %v603
        %v822 = vadd.f32 %v821, %v611
        %v823 = vadd.f32 %v822, %v619
        %v824 = vadd.f32 %v823, %v627
        %v825 = vadd.f32 %v824, %v635
        %v826 = vrot.slane %v825, 4
        %v827 = vadd.f32 %v825, %v826
        %v828 = vrot.slane %v827, 2
        %v829 = vadd.f32 %v827, %v828
        %v830 = vrot.slane %v829, 1
        %v831 = vadd.f32 %v829, %v830
        %v832 = vadd.f32 %v516, %v524
        %v833 = vadd.f32 %v832, %v532
        %v834 = vadd.f32 %v833, %v540
        %v835 = vadd.f32 %v834, %v548
        %v836 = vadd.f32 %v835, %v556
        %v837 = vadd.f32 %v836, %v564
        %v838 = vadd.f32 %v837, %v572
        %v839 = vadd.f32 %v838, %v580
        %v840 = vadd.f32 %v839, %v588
        %v841 = vadd.f32 %v840, %v596
        %v842 = vadd.f32 %v841, %v604
        %v843 = vadd.f32 %v842, %v612
        %v844 = vadd.f32 %v843, %v620
        %v845 = vadd.f32 %v844, %v628
        %v846 = vadd.f32 %v845, %v636
        %v847 = vrot.slane %v846, 4
        %v848 = vadd.f32 %v846, %v847
        %v849 = vrot.slane %v848, 2
        %v850 = vadd.f32 %v848, %v849
        %v851 = vrot.slane %v850, 1
        %v852 = vadd.f32 %v850, %v851
        %v853 = vadd.f32 %v517, %v525
        %v854 = vadd.f32 %v853, %v533
        %v855 = vadd.f32 %v854, %v541
        %v856 = vadd.f32 %v855, %v549
        %v857 = vadd.f32 %v856, %v557
        %v858 = vadd.f32 %v857, %v565
        %v859 = vadd.f32 %v858, %v573
        %v860 = vadd.f32 %v859, %v581
        %v861 = vadd.f32 %v860, %v589
        %v862 = vadd.f32 %v861, %v597
        %v863 = vadd.f32 %v862, %v605
        %v864 = vadd.f32 %v863, %v613
        %v865 = vadd.f32 %v864, %v621
        %v866 = vadd.f32 %v865, %v629
        %v867 = vadd.f32 %v866, %v637
        %v868 = vrot.slane %v867, 4
        %v869 = vadd.f32 %v867, %v868
        %v870 = vrot.slane %v869, 2
        %v871 = vadd.f32 %v869, %v870
        %v872 = vrot.slane %v871, 1
        %v873 = vadd.f32 %v871, %v872
        %v874 = vadd.f32 %v518, %v526
        %v875 = vadd.f32 %v874, %v534
        %v876 = vadd.f32 %v875, %v542
        %v877 = vadd.f32 %v876, %v550
        %v878 = vadd.f32 %v877, %v558
        %v879 = vadd.f32 %v878, %v566
        %v880 = vadd.f32 %v879, %v574
        %v881 = vadd.f32 %v880, %v582
        %v882 = vadd.f32 %v881, %v590
        %v883 = vadd.f32 %v882, %v598
        %v884 = vadd.f32 %v883, %v606
        %v885 = vadd.f32 %v884, %v614
        %v886 = vadd.f32 %v885, %v622
        %v887 = vadd.f32 %v886, %v630
        %v888 = vadd.f32 %v887, %v638
        %v889 = vrot.slane %v888, 4
        %v890 = vadd.f32 %v888, %v889
        %v891 = vrot.slane %v890, 2
        %v892 = vadd.f32 %v890, %v891
        %v893 = vrot.slane %v892, 1
        %v894 = vadd.f32 %v892, %v893
        %v895 = vadd.f32 %v519, %v527
        %v896 = vadd.f32 %v895, %v535
        %v897 = vadd.f32 %v896, %v543
        %v898 = vadd.f32 %v897, %v551
        %v899 = vadd.f32 %v898, %v559
        %v900 = vadd.f32 %v899, %v567
        %v901 = vadd.f32 %v900, %v575
        %v902 = vadd.f32 %v901, %v583
        %v903 = vadd.f32 %v902, %v591
        %v904 = vadd.f32 %v903, %v599
        %v905 = vadd.f32 %v904, %v607
        %v906 = vadd.f32 %v905, %v615
        %v907 = vadd.f32 %v906, %v623
        %v908 = vadd.f32 %v907, %v631
        %v909 = vadd.f32 %v908, %v639
        %v910 = vrot.slane %v909, 4
        %v911 = vadd.f32 %v909, %v910
        %v912 = vrot.slane %v911, 2
        %v913 = vadd.f32 %v911, %v912
        %v914 = vrot.slane %v913, 1
        %v915 = vadd.f32 %v913, %v914
        %v916 = vadd.f32 %v520, %v528
        %v917 = vadd.f32 %v916, %v536
        %v918 = vadd.f32 %v917, %v544
        %v919 = vadd.f32 %v918, %v552
        %v920 = vadd.f32 %v919, %v560
        %v921 = vadd.f32 %v920, %v568
        %v922 = vadd.f32 %v921, %v576
        %v923 = vadd.f32 %v922, %v584
        %v924 = vadd.f32 %v923, %v592
        %v925 = vadd.f32 %v924, %v600
        %v926 = vadd.f32 %v925, %v608
        %v927 = vadd.f32 %v926, %v616
        %v928 = vadd.f32 %v927, %v624
        %v929 = vadd.f32 %v928, %v632
        %v930 = vadd.f32 %v929, %v640
        %v931 = vrot.slane %v930, 4
        %v932 = vadd.f32 %v930, %v931
        %v933 = vrot.slane %v932, 2
        %v934 = vadd.f32 %v932, %v933
        %v935 = vrot.slane %v934, 1
        %v936 = vadd.f32 %v934, %v935
        %v937 = vadd.f32 %v641, %v649
        %v938 = vadd.f32 %v937, %v657
        %v939 = vadd.f32 %v938, %v665
        %v940 = vadd.f32 %v939, %v673
        %v941 = vadd.f32 %v940, %v681
        %v942 = vadd.f32 %v941, %v689
        %v943 = vadd.f32 %v942, %v697
        %v944 = vadd.f32 %v943, %v705
        %v945 = vadd.f32 %v944, %v713
        %v946 = vadd.f32 %v945, %v721
        %v947 = vadd.f32 %v946, %v729
        %v948 = vadd.f32 %v947, %v737
        %v949 = vadd.f32 %v948, %v745
        %v950 = vadd.f32 %v949, %v753
        %v951 = vadd.f32 %v950, %v761
        %v952 = vrot.slane %v951, 4
        %v953 = vadd.f32 %v951, %v952
        %v954 = vrot.slane %v953, 2
        %v955 = vadd.f32 %v953, %v954
        %v956 = vrot.slane %v955, 1
        %v957 = vadd.f32 %v955, %v956
        %v958 = vadd.f32 %v642, %v650
        %v959 = vadd.f32 %v958, %v658
        %v960 = vadd.f32 %v959, %v666
        %v961 = vadd.f32 %v960, %v674
        %v962 = vadd.f32 %v961, %v682
        %v963 = vadd.f32 %v962, %v690
        %v964 = vadd.f32 %v963, %v698
        %v965 = vadd.f32 %v964, %v706
        %v966 = vadd.f32 %v965, %v714
        %v967 = vadd.f32 %v966, %v722
        %v968 = vadd.f32 %v967, %v730
        %v969 = vadd.f32 %v968, %v738
        %v970 = vadd.f32 %v969, %v746
        %v971 = vadd.f32 %v970, %v754
        %v972 = vadd.f32 %v971, %v762
        %v973 = vrot.slane %v972, 4
        %v974 = vadd.f32 %v972, %v973
        %v975 = vrot.slane %v974, 2
        %v976 = vadd.f32 %v974, %v975
        %v977 = vrot.slane %v976, 1
        %v978 = vadd.f32 %v976, %v977
        %v979 = vadd.f32 %v643, %v651
        %v980 = vadd.f32 %v979, %v659
        %v981 = vadd.f32 %v980, %v667
        %v982 = vadd.f32 %v981, %v675
        %v983 = vadd.f32 %v982, %v683
        %v984 = vadd.f32 %v983, %v691
        %v985 = vadd.f32 %v984, %v699
        %v986 = vadd.f32 %v985, %v707
        %v987 = vadd.f32 %v986, %v715
        %v988 = vadd.f32 %v987, %v723
        %v989 = vadd.f32 %v988, %v731
        %v990 = vadd.f32 %v989, %v739
        %v991 = vadd.f32 %v990, %v747
        %v992 = vadd.f32 %v991, %v755
        %v993 = vadd.f32 %v992, %v763
        %v994 = vrot.slane %v993, 4
        %v995 = vadd.f32 %v993, %v994
        %v996 = vrot.slane %v995, 2
        %v997 = vadd.f32 %v995, %v996
        %v998 = vrot.slane %v997, 1
        %v999 = vadd.f32 %v997, %v998
        %v1000 = vadd.f32 %v644, %v652
        %v1001 = vadd.f32 %v1000, %v660
        %v1002 = vadd.f32 %v1001, %v668
        %v1003 = vadd.f32 %v1002, %v676
        %v1004 = vadd.f32 %v1003, %v684
        %v1005 = vadd.f32 %v1004, %v692
        %v1006 = vadd.f32 %v1005, %v700
        %v1007 = vadd.f32 %v1006, %v708
        %v1008 = vadd.f32 %v1007, %v716
        %v1009 = vadd.f32 %v1008, %v724
        %v1010 = vadd.f32 %v1009, %v732
        %v1011 = vadd.f32 %v1010, %v740
        %v1012 = vadd.f32 %v1011, %v748
        %v1013 = vadd.f32 %v1012, %v756
        %v1014 = vadd.f32 %v1013, %v764
        %v1015 = vrot.slane %v1014, 4
        %v1016 = vadd.f32 %v1014, %v1015
        %v1017 = vrot.slane %v1016, 2
        %v1018 = vadd.f32 %v1016, %v1017
        %v1019 = vrot.slane %v1018, 1
        %v1020 = vadd.f32 %v1018, %v1019
        %v1021 = vadd.f32 %v645, %v653
        %v1022 = vadd.f32 %v1021, %v661
        %v1023 = vadd.f32 %v1022, %v669
        %v1024 = vadd.f32 %v1023, %v677
        %v1025 = vadd.f32 %v1024, %v685
        %v1026 = vadd.f32 %v1025, %v693
        %v1027 = vadd.f32 %v1026, %v701
        %v1028 = vadd.f32 %v1027, %v709
        %v1029 = vadd.f32 %v1028, %v717
        %v1030 = vadd.f32 %v1029, %v725
        %v1031 = vadd.f32 %v1030, %v733
        %v1032 = vadd.f32 %v1031, %v741
        %v1033 = vadd.f32 %v1032, %v749
        %v1034 = vadd.f32 %v1033, %v757
        %v1035 = vadd.f32 %v1034, %v765
        %v1036 = vrot.slane %v1035, 4
        %v1037 = vadd.f32 %v1035, %v1036
        %v1038 = vrot.slane %v1037, 2
        %v1039 = vadd.f32 %v1037, %v1038
        %v1040 = vrot.slane %v1039, 1
        %v1041 = vadd.f32 %v1039, %v1040
        %v1042 = vadd.f32 %v646, %v654
        %v1043 = vadd.f32 %v1042, %v662
        %v1044 = vadd.f32 %v1043, %v670
        %v1045 = vadd.f32 %v1044, %v678
        %v1046 = vadd.f32 %v1045, %v686
        %v1047 = vadd.f32 %v1046, %v694
        %v1048 = vadd.f32 %v1047, %v702
        %v1049 = vadd.f32 %v1048, %v710
        %v1050 = vadd.f32 %v1049, %v718
        %v1051 = vadd.f32 %v1050, %v726
        %v1052 = vadd.f32 %v1051, %v734
        %v1053 = vadd.f32 %v1052, %v742
        %v1054 = vadd.f32 %v1053, %v750
        %v1055 = vadd.f32 %v1054, %v758
        %v1056 = vadd.f32 %v1055, %v766
        %v1057 = vrot.slane %v1056, 4
        %v1058 = vadd.f32 %v1056, %v1057
        %v1059 = vrot.slane %v1058, 2
        %v1060 = vadd.f32 %v1058, %v1059
        %v1061 = vrot.slane %v1060, 1
        %v1062 = vadd.f32 %v1060, %v1061
        %v1063 = vadd.f32 %v647, %v655
        %v1064 = vadd.f32 %v1063, %v663
        %v1065 = vadd.f32 %v1064, %v671
        %v1066 = vadd.f32 %v1065, %v679
        %v1067 = vadd.f32 %v1066, %v687
        %v1068 = vadd.f32 %v1067, %v695
        %v1069 = vadd.f32 %v1068, %v703
        %v1070 = vadd.f32 %v1069, %v711
        %v1071 = vadd.f32 %v1070, %v719
        %v1072 = vadd.f32 %v1071, %v727
        %v1073 = vadd.f32 %v1072, %v735
        %v1074 = vadd.f32 %v1073, %v743
        %v1075 = vadd.f32 %v1074, %v751
        %v1076 = vadd.f32 %v1075, %v759
        %v1077 = vadd.f32 %v1076, %v767
        %v1078 = vrot.slane %v1077, 4
        %v1079 = vadd.f32 %v1077, %v1078
        %v1080 = vrot.slane %v1079, 2
        %v1081 = vadd.f32 %v1079, %v1080
        %v1082 = vrot.slane %v1081, 1
        %v1083 = vadd.f32 %v1081, %v1082
        %v1084 = vadd.f32 %v648, %v656
        %v1085 = vadd.f32 %v1084, %v664
        %v1086 = vadd.f32 %v1085, %v672
        %v1087 = vadd.f32 %v1086, %v680
        %v1088 = vadd.f32 %v1087, %v688
        %v1089 = vadd.f32 %v1088, %v696
        %v1090 = vadd.f32 %v1089, %v704
        %v1091 = vadd.f32 %v1090, %v712
        %v1092 = vadd.f32 %v1091, %v720
        %v1093 = vadd.f32 %v1092, %v728
        %v1094 = vadd.f32 %v1093, %v736
        %v1095 = vadd.f32 %v1094, %v744
        %v1096 = vadd.f32 %v1095, %v752
        %v1097 = vadd.f32 %v1096, %v760
        %v1098 = vadd.f32 %v1097, %v768
        %v1099 = vrot.slane %v1098, 4
        %v1100 = vadd.f32 %v1098, %v1099
        %v1101 = vrot.slane %v1100, 2
        %v1102 = vadd.f32 %v1100, %v1101
        %v1103 = vrot.slane %v1102, 1
        %v1104 = vadd.f32 %v1102, %v1103
        %v1105 = vadd.f32 %v789, %v810
        %v1106 = vadd.f32 %v1105, %v831
        %v1107 = vadd.f32 %v1106, %v852
        %v1108 = vadd.f32 %v1107, %v873
        %v1109 = vadd.f32 %v1108, %v894
        %v1110 = vadd.f32 %v1109, %v915
        %v1111 = vadd.f32 %v1110, %v936
        %1112 = vadd.xlane.f32.xlu0 %v1111
        %v1113 = vpop.xlane.xlu0 %1112
        %v1114 = vadd.f32 %v957, %v978
        %v1115 = vadd.f32 %v1114, %v999
        %v1116 = vadd.f32 %v1115, %v1020
        %v1117 = vadd.f32 %v1116, %v1041
        %v1118 = vadd.f32 %v1117, %v1062
        %v1119 = vadd.f32 %v1118, %v1083
        %v1120 = vadd.f32 %v1119, %v1104
        %1121 = vadd.xlane.f32.xlu0 %v1120
        %v1122 = vpop.xlane.xlu0 %1121
        %v1123 = vmul.f32 %v1113, 7.6293945e-06
        %v1124 = vmul.f32 %v1122, 7.6293945e-06
        %v1125 = vmul.f32 %v513, %v513
        %v1126 = vmul.f32 %v514, %v514
        %v1127 = vmul.f32 %v515, %v515
        %v1128 = vmul.f32 %v516, %v516
        %v1129 = vmul.f32 %v517, %v517
        %v1130 = vmul.f32 %v518, %v518
        %v1131 = vmul.f32 %v519, %v519
        %v1132 = vmul.f32 %v520, %v520
        %v1133 = vmul.f32 %v521, %v521
        %v1134 = vmul.f32 %v522, %v522
        %v1135 = vmul.f32 %v523, %v523
        %v1136 = vmul.f32 %v524, %v524
        %v1137 = vmul.f32 %v525, %v525
        %v1138 = vmul.f32 %v526, %v526
        %v1139 = vmul.f32 %v527, %v527
        %v1140 = vmul.f32 %v528, %v528
        %v1141 = vmul.f32 %v529, %v529
        %v1142 = vmul.f32 %v530, %v530
        %v1143 = vmul.f32 %v531, %v531
        %v1144 = vmul.f32 %v532, %v532
        %v1145 = vmul.f32 %v533, %v533
        %v1146 = vmul.f32 %v534, %v534
        %v1147 = vmul.f32 %v535, %v535
        %v1148 = vmul.f32 %v536, %v536
        %v1149 = vmul.f32 %v537, %v537
        %v1150 = vmul.f32 %v538, %v538
        %v1151 = vmul.f32 %v539, %v539
        %v1152 = vmul.f32 %v540, %v540
        %v1153 = vmul.f32 %v541, %v541
        %v1154 = vmul.f32 %v542, %v542
        %v1155 = vmul.f32 %v543, %v543
        %v1156 = vmul.f32 %v544, %v544
        %v1157 = vmul.f32 %v545, %v545
        %v1158 = vmul.f32 %v546, %v546
        %v1159 = vmul.f32 %v547, %v547
        %v1160 = vmul.f32 %v548, %v548
        %v1161 = vmul.f32 %v549, %v549
        %v1162 = vmul.f32 %v550, %v550
        %v1163 = vmul.f32 %v551, %v551
        %v1164 = vmul.f32 %v552, %v552
        %v1165 = vmul.f32 %v553, %v553
        %v1166 = vmul.f32 %v554, %v554
        %v1167 = vmul.f32 %v555, %v555
        %v1168 = vmul.f32 %v556, %v556
        %v1169 = vmul.f32 %v557, %v557
        %v1170 = vmul.f32 %v558, %v558
        %v1171 = vmul.f32 %v559, %v559
        %v1172 = vmul.f32 %v560, %v560
        %v1173 = vmul.f32 %v561, %v561
        %v1174 = vmul.f32 %v562, %v562
        %v1175 = vmul.f32 %v563, %v563
        %v1176 = vmul.f32 %v564, %v564
        %v1177 = vmul.f32 %v565, %v565
        %v1178 = vmul.f32 %v566, %v566
        %v1179 = vmul.f32 %v567, %v567
        %v1180 = vmul.f32 %v568, %v568
        %v1181 = vmul.f32 %v569, %v569
        %v1182 = vmul.f32 %v570, %v570
        %v1183 = vmul.f32 %v571, %v571
        %v1184 = vmul.f32 %v572, %v572
        %v1185 = vmul.f32 %v573, %v573
        %v1186 = vmul.f32 %v574, %v574
        %v1187 = vmul.f32 %v575, %v575
        %v1188 = vmul.f32 %v576, %v576
        %v1189 = vmul.f32 %v577, %v577
        %v1190 = vmul.f32 %v578, %v578
        %v1191 = vmul.f32 %v579, %v579
        %v1192 = vmul.f32 %v580, %v580
        %v1193 = vmul.f32 %v581, %v581
        %v1194 = vmul.f32 %v582, %v582
        %v1195 = vmul.f32 %v583, %v583
        %v1196 = vmul.f32 %v584, %v584
        %v1197 = vmul.f32 %v585, %v585
        %v1198 = vmul.f32 %v586, %v586
        %v1199 = vmul.f32 %v587, %v587
        %v1200 = vmul.f32 %v588, %v588
        %v1201 = vmul.f32 %v589, %v589
        %v1202 = vmul.f32 %v590, %v590
        %v1203 = vmul.f32 %v591, %v591
        %v1204 = vmul.f32 %v592, %v592
        %v1205 = vmul.f32 %v593, %v593
        %v1206 = vmul.f32 %v594, %v594
        %v1207 = vmul.f32 %v595, %v595
        %v1208 = vmul.f32 %v596, %v596
        %v1209 = vmul.f32 %v597, %v597
        %v1210 = vmul.f32 %v598, %v598
        %v1211 = vmul.f32 %v599, %v599
        %v1212 = vmul.f32 %v600, %v600
        %v1213 = vmul.f32 %v601, %v601
        %v1214 = vmul.f32 %v602, %v602
        %v1215 = vmul.f32 %v603, %v603
        %v1216 = vmul.f32 %v604, %v604
        %v1217 = vmul.f32 %v605, %v605
        %v1218 = vmul.f32 %v606, %v606
        %v1219 = vmul.f32 %v607, %v607
        %v1220 = vmul.f32 %v608, %v608
        %v1221 = vmul.f32 %v609, %v609
        %v1222 = vmul.f32 %v610, %v610
        %v1223 = vmul.f32 %v611, %v611
        %v1224 = vmul.f32 %v612, %v612
        %v1225 = vmul.f32 %v613, %v613
        %v1226 = vmul.f32 %v614, %v614
        %v1227 = vmul.f32 %v615, %v615
        %v1228 = vmul.f32 %v616, %v616
        %v1229 = vmul.f32 %v617, %v617
        %v1230 = vmul.f32 %v618, %v618
        %v1231 = vmul.f32 %v619, %v619
        %v1232 = vmul.f32 %v620, %v620
        %v1233 = vmul.f32 %v621, %v621
        %v1234 = vmul.f32 %v622, %v622
        %v1235 = vmul.f32 %v623, %v623
        %v1236 = vmul.f32 %v624, %v624
        %v1237 = vmul.f32 %v625, %v625
        %v1238 = vmul.f32 %v626, %v626
        %v1239 = vmul.f32 %v627, %v627
        %v1240 = vmul.f32 %v628, %v628
        %v1241 = vmul.f32 %v629, %v629
        %v1242 = vmul.f32 %v630, %v630
        %v1243 = vmul.f32 %v631, %v631
        %v1244 = vmul.f32 %v632, %v632
        %v1245 = vmul.f32 %v633, %v633
        %v1246 = vmul.f32 %v634, %v634
        %v1247 = vmul.f32 %v635, %v635
        %v1248 = vmul.f32 %v636, %v636
        %v1249 = vmul.f32 %v637, %v637
        %v1250 = vmul.f32 %v638, %v638
        %v1251 = vmul.f32 %v639, %v639
        %v1252 = vmul.f32 %v640, %v640
        %v1253 = vmul.f32 %v641, %v641
        %v1254 = vmul.f32 %v642, %v642
        %v1255 = vmul.f32 %v643, %v643
        %v1256 = vmul.f32 %v644, %v644
        %v1257 = vmul.f32 %v645, %v645
        %v1258 = vmul.f32 %v646, %v646
        %v1259 = vmul.f32 %v647, %v647
        %v1260 = vmul.f32 %v648, %v648
        %v1261 = vmul.f32 %v649, %v649
        %v1262 = vmul.f32 %v650, %v650
        %v1263 = vmul.f32 %v651, %v651
        %v1264 = vmul.f32 %v652, %v652
        %v1265 = vmul.f32 %v653, %v653
        %v1266 = vmul.f32 %v654, %v654
        %v1267 = vmul.f32 %v655, %v655
        %v1268 = vmul.f32 %v656, %v656
        %v1269 = vmul.f32 %v657, %v657
        %v1270 = vmul.f32 %v658, %v658
        %v1271 = vmul.f32 %v659, %v659
        %v1272 = vmul.f32 %v660, %v660
        %v1273 = vmul.f32 %v661, %v661
        %v1274 = vmul.f32 %v662, %v662
        %v1275 = vmul.f32 %v663, %v663
        %v1276 = vmul.f32 %v664, %v664
        %v1277 = vmul.f32 %v665, %v665
        %v1278 = vmul.f32 %v666, %v666
        %v1279 = vmul.f32 %v667, %v667
        %v1280 = vmul.f32 %v668, %v668
        %v1281 = vmul.f32 %v669, %v669
        %v1282 = vmul.f32 %v670, %v670
        %v1283 = vmul.f32 %v671, %v671
        %v1284 = vmul.f32 %v672, %v672
        %v1285 = vmul.f32 %v673, %v673
        %v1286 = vmul.f32 %v674, %v674
        %v1287 = vmul.f32 %v675, %v675
        %v1288 = vmul.f32 %v676, %v676
        %v1289 = vmul.f32 %v677, %v677
        %v1290 = vmul.f32 %v678, %v678
        %v1291 = vmul.f32 %v679, %v679
        %v1292 = vmul.f32 %v680, %v680
        %v1293 = vmul.f32 %v681, %v681
        %v1294 = vmul.f32 %v682, %v682
        %v1295 = vmul.f32 %v683, %v683
        %v1296 = vmul.f32 %v684, %v684
        %v1297 = vmul.f32 %v685, %v685
        %v1298 = vmul.f32 %v686, %v686
        %v1299 = vmul.f32 %v687, %v687
        %v1300 = vmul.f32 %v688, %v688
        %v1301 = vmul.f32 %v689, %v689
        %v1302 = vmul.f32 %v690, %v690
        %v1303 = vmul.f32 %v691, %v691
        %v1304 = vmul.f32 %v692, %v692
        %v1305 = vmul.f32 %v693, %v693
        %v1306 = vmul.f32 %v694, %v694
        %v1307 = vmul.f32 %v695, %v695
        %v1308 = vmul.f32 %v696, %v696
        %v1309 = vmul.f32 %v697, %v697
        %v1310 = vmul.f32 %v698, %v698
        %v1311 = vmul.f32 %v699, %v699
        %v1312 = vmul.f32 %v700, %v700
        %v1313 = vmul.f32 %v701, %v701
        %v1314 = vmul.f32 %v702, %v702
        %v1315 = vmul.f32 %v703, %v703
        %v1316 = vmul.f32 %v704, %v704
        %v1317 = vmul.f32 %v705, %v705
        %v1318 = vmul.f32 %v706, %v706
        %v1319 = vmul.f32 %v707, %v707
        %v1320 = vmul.f32 %v708, %v708
        %v1321 = vmul.f32 %v709, %v709
        %v1322 = vmul.f32 %v710, %v710
        %v1323 = vmul.f32 %v711, %v711
        %v1324 = vmul.f32 %v712, %v712
        %v1325 = vmul.f32 %v713, %v713
        %v1326 = vmul.f32 %v714, %v714
        %v1327 = vmul.f32 %v715, %v715
        %v1328 = vmul.f32 %v716, %v716
        %v1329 = vmul.f32 %v717, %v717
        %v1330 = vmul.f32 %v718, %v718
        %v1331 = vmul.f32 %v719, %v719
        %v1332 = vmul.f32 %v720, %v720
        %v1333 = vmul.f32 %v721, %v721
        %v1334 = vmul.f32 %v722, %v722
        %v1335 = vmul.f32 %v723, %v723
        %v1336 = vmul.f32 %v724, %v724
        %v1337 = vmul.f32 %v725, %v725
        %v1338 = vmul.f32 %v726, %v726
        %v1339 = vmul.f32 %v727, %v727
        %v1340 = vmul.f32 %v728, %v728
        %v1341 = vmul.f32 %v729, %v729
        %v1342 = vmul.f32 %v730, %v730
        %v1343 = vmul.f32 %v731, %v731
        %v1344 = vmul.f32 %v732, %v732
        %v1345 = vmul.f32 %v733, %v733
        %v1346 = vmul.f32 %v734, %v734
        %v1347 = vmul.f32 %v735, %v735
        %v1348 = vmul.f32 %v736, %v736
        %v1349 = vmul.f32 %v737, %v737
        %v1350 = vmul.f32 %v738, %v738
        %v1351 = vmul.f32 %v739, %v739
        %v1352 = vmul.f32 %v740, %v740
        %v1353 = vmul.f32 %v741, %v741
        %v1354 = vmul.f32 %v742, %v742
        %v1355 = vmul.f32 %v743, %v743
        %v1356 = vmul.f32 %v744, %v744
        %v1357 = vmul.f32 %v745, %v745
        %v1358 = vmul.f32 %v746, %v746
        %v1359 = vmul.f32 %v747, %v747
        %v1360 = vmul.f32 %v748, %v748
        %v1361 = vmul.f32 %v749, %v749
        %v1362 = vmul.f32 %v750, %v750
        %v1363 = vmul.f32 %v751, %v751
        %v1364 = vmul.f32 %v752, %v752
        %v1365 = vmul.f32 %v753, %v753
        %v1366 = vmul.f32 %v754, %v754
        %v1367 = vmul.f32 %v755, %v755
        %v1368 = vmul.f32 %v756, %v756
        %v1369 = vmul.f32 %v757, %v757
        %v1370 = vmul.f32 %v758, %v758
        %v1371 = vmul.f32 %v759, %v759
        %v1372 = vmul.f32 %v760, %v760
        %v1373 = vmul.f32 %v761, %v761
        %v1374 = vmul.f32 %v762, %v762
        %v1375 = vmul.f32 %v763, %v763
        %v1376 = vmul.f32 %v764, %v764
        %v1377 = vmul.f32 %v765, %v765
        %v1378 = vmul.f32 %v766, %v766
        %v1379 = vmul.f32 %v767, %v767
        %v1380 = vmul.f32 %v768, %v768
        %v1381 = vadd.f32 %v1125, %v1133
        %v1382 = vadd.f32 %v1381, %v1141
        %v1383 = vadd.f32 %v1382, %v1149
        %v1384 = vadd.f32 %v1383, %v1157
        %v1385 = vadd.f32 %v1384, %v1165
        %v1386 = vadd.f32 %v1385, %v1173
        %v1387 = vadd.f32 %v1386, %v1181
        %v1388 = vadd.f32 %v1387, %v1189
        %v1389 = vadd.f32 %v1388, %v1197
        %v1390 = vadd.f32 %v1389, %v1205
        %v1391 = vadd.f32 %v1390, %v1213
        %v1392 = vadd.f32 %v1391, %v1221
        %v1393 = vadd.f32 %v1392, %v1229
        %v1394 = vadd.f32 %v1393, %v1237
        %v1395 = vadd.f32 %v1394, %v1245
        %v1396 = vrot.slane %v1395, 4
        %v1397 = vadd.f32 %v1395, %v1396
        %v1398 = vrot.slane %v1397, 2
        %v1399 = vadd.f32 %v1397, %v1398
        %v1400 = vrot.slane %v1399, 1
        %v1401 = vadd.f32 %v1399, %v1400
        %v1402 = vadd.f32 %v1126, %v1134
        %v1403 = vadd.f32 %v1402, %v1142
        %v1404 = vadd.f32 %v1403, %v1150
        %v1405 = vadd.f32 %v1404, %v1158
        %v1406 = vadd.f32 %v1405, %v1166
        %v1407 = vadd.f32 %v1406, %v1174
        %v1408 = vadd.f32 %v1407, %v1182
        %v1409 = vadd.f32 %v1408, %v1190
        %v1410 = vadd.f32 %v1409, %v1198
        %v1411 = vadd.f32 %v1410, %v1206
        %v1412 = vadd.f32 %v1411, %v1214
        %v1413 = vadd.f32 %v1412, %v1222
        %v1414 = vadd.f32 %v1413, %v1230
        %v1415 = vadd.f32 %v1414, %v1238
        %v1416 = vadd.f32 %v1415, %v1246
        %v1417 = vrot.slane %v1416, 4
        %v1418 = vadd.f32 %v1416, %v1417
        %v1419 = vrot.slane %v1418, 2
        %v1420 = vadd.f32 %v1418, %v1419
        %v1421 = vrot.slane %v1420, 1
        %v1422 = vadd.f32 %v1420, %v1421
        %v1423 = vadd.f32 %v1127, %v1135
        %v1424 = vadd.f32 %v1423, %v1143
        %v1425 = vadd.f32 %v1424, %v1151
        %v1426 = vadd.f32 %v1425, %v1159
        %v1427 = vadd.f32 %v1426, %v1167
        %v1428 = vadd.f32 %v1427, %v1175
        %v1429 = vadd.f32 %v1428, %v1183
        %v1430 = vadd.f32 %v1429, %v1191
        %v1431 = vadd.f32 %v1430, %v1199
        %v1432 = vadd.f32 %v1431, %v1207
        %v1433 = vadd.f32 %v1432, %v1215
        %v1434 = vadd.f32 %v1433, %v1223
        %v1435 = vadd.f32 %v1434, %v1231
        %v1436 = vadd.f32 %v1435, %v1239
        %v1437 = vadd.f32 %v1436, %v1247
        %v1438 = vrot.slane %v1437, 4
        %v1439 = vadd.f32 %v1437, %v1438
        %v1440 = vrot.slane %v1439, 2
        %v1441 = vadd.f32 %v1439, %v1440
        %v1442 = vrot.slane %v1441, 1
        %v1443 = vadd.f32 %v1441, %v1442
        %v1444 = vadd.f32 %v1128, %v1136
        %v1445 = vadd.f32 %v1444, %v1144
        %v1446 = vadd.f32 %v1445, %v1152
        %v1447 = vadd.f32 %v1446, %v1160
        %v1448 = vadd.f32 %v1447, %v1168
        %v1449 = vadd.f32 %v1448, %v1176
        %v1450 = vadd.f32 %v1449, %v1184
        %v1451 = vadd.f32 %v1450, %v1192
        %v1452 = vadd.f32 %v1451, %v1200
        %v1453 = vadd.f32 %v1452, %v1208
        %v1454 = vadd.f32 %v1453, %v1216
        %v1455 = vadd.f32 %v1454, %v1224
        %v1456 = vadd.f32 %v1455, %v1232
        %v1457 = vadd.f32 %v1456, %v1240
        %v1458 = vadd.f32 %v1457, %v1248
        %v1459 = vrot.slane %v1458, 4
        %v1460 = vadd.f32 %v1458, %v1459
        %v1461 = vrot.slane %v1460, 2
        %v1462 = vadd.f32 %v1460, %v1461
        %v1463 = vrot.slane %v1462, 1
        %v1464 = vadd.f32 %v1462, %v1463
        %v1465 = vadd.f32 %v1129, %v1137
        %v1466 = vadd.f32 %v1465, %v1145
        %v1467 = vadd.f32 %v1466, %v1153
        %v1468 = vadd.f32 %v1467, %v1161
        %v1469 = vadd.f32 %v1468, %v1169
        %v1470 = vadd.f32 %v1469, %v1177
        %v1471 = vadd.f32 %v1470, %v1185
        %v1472 = vadd.f32 %v1471, %v1193
        %v1473 = vadd.f32 %v1472, %v1201
        %v1474 = vadd.f32 %v1473, %v1209
        %v1475 = vadd.f32 %v1474, %v1217
        %v1476 = vadd.f32 %v1475, %v1225
        %v1477 = vadd.f32 %v1476, %v1233
        %v1478 = vadd.f32 %v1477, %v1241
        %v1479 = vadd.f32 %v1478, %v1249
        %v1480 = vrot.slane %v1479, 4
        %v1481 = vadd.f32 %v1479, %v1480
        %v1482 = vrot.slane %v1481, 2
        %v1483 = vadd.f32 %v1481, %v1482
        %v1484 = vrot.slane %v1483, 1
        %v1485 = vadd.f32 %v1483, %v1484
        %v1486 = vadd.f32 %v1130, %v1138
        %v1487 = vadd.f32 %v1486, %v1146
        %v1488 = vadd.f32 %v1487, %v1154
        %v1489 = vadd.f32 %v1488, %v1162
        %v1490 = vadd.f32 %v1489, %v1170
        %v1491 = vadd.f32 %v1490, %v1178
        %v1492 = vadd.f32 %v1491, %v1186
        %v1493 = vadd.f32 %v1492, %v1194
        %v1494 = vadd.f32 %v1493, %v1202
        %v1495 = vadd.f32 %v1494, %v1210
        %v1496 = vadd.f32 %v1495, %v1218
        %v1497 = vadd.f32 %v1496, %v1226
        %v1498 = vadd.f32 %v1497, %v1234
        %v1499 = vadd.f32 %v1498, %v1242
        %v1500 = vadd.f32 %v1499, %v1250
        %v1501 = vrot.slane %v1500, 4
        %v1502 = vadd.f32 %v1500, %v1501
        %v1503 = vrot.slane %v1502, 2
        %v1504 = vadd.f32 %v1502, %v1503
        %v1505 = vrot.slane %v1504, 1
        %v1506 = vadd.f32 %v1504, %v1505
        %v1507 = vadd.f32 %v1131, %v1139
        %v1508 = vadd.f32 %v1507, %v1147
        %v1509 = vadd.f32 %v1508, %v1155
        %v1510 = vadd.f32 %v1509, %v1163
        %v1511 = vadd.f32 %v1510, %v1171
        %v1512 = vadd.f32 %v1511, %v1179
        %v1513 = vadd.f32 %v1512, %v1187
        %v1514 = vadd.f32 %v1513, %v1195
        %v1515 = vadd.f32 %v1514, %v1203
        %v1516 = vadd.f32 %v1515, %v1211
        %v1517 = vadd.f32 %v1516, %v1219
        %v1518 = vadd.f32 %v1517, %v1227
        %v1519 = vadd.f32 %v1518, %v1235
        %v1520 = vadd.f32 %v1519, %v1243
        %v1521 = vadd.f32 %v1520, %v1251
        %v1522 = vrot.slane %v1521, 4
        %v1523 = vadd.f32 %v1521, %v1522
        %v1524 = vrot.slane %v1523, 2
        %v1525 = vadd.f32 %v1523, %v1524
        %v1526 = vrot.slane %v1525, 1
        %v1527 = vadd.f32 %v1525, %v1526
        %v1528 = vadd.f32 %v1132, %v1140
        %v1529 = vadd.f32 %v1528, %v1148
        %v1530 = vadd.f32 %v1529, %v1156
        %v1531 = vadd.f32 %v1530, %v1164
        %v1532 = vadd.f32 %v1531, %v1172
        %v1533 = vadd.f32 %v1532, %v1180
        %v1534 = vadd.f32 %v1533, %v1188
        %v1535 = vadd.f32 %v1534, %v1196
        %v1536 = vadd.f32 %v1535, %v1204
        %v1537 = vadd.f32 %v1536, %v1212
        %v1538 = vadd.f32 %v1537, %v1220
        %v1539 = vadd.f32 %v1538, %v1228
        %v1540 = vadd.f32 %v1539, %v1236
        %v1541 = vadd.f32 %v1540, %v1244
        %v1542 = vadd.f32 %v1541, %v1252
        %v1543 = vrot.slane %v1542, 4
        %v1544 = vadd.f32 %v1542, %v1543
        %v1545 = vrot.slane %v1544, 2
        %v1546 = vadd.f32 %v1544, %v1545
        %v1547 = vrot.slane %v1546, 1
        %v1548 = vadd.f32 %v1546, %v1547
        %v1549 = vadd.f32 %v1253, %v1261
        %v1550 = vadd.f32 %v1549, %v1269
        %v1551 = vadd.f32 %v1550, %v1277
        %v1552 = vadd.f32 %v1551, %v1285
        %v1553 = vadd.f32 %v1552, %v1293
        %v1554 = vadd.f32 %v1553, %v1301
        %v1555 = vadd.f32 %v1554, %v1309
        %v1556 = vadd.f32 %v1555, %v1317
        %v1557 = vadd.f32 %v1556, %v1325
        %v1558 = vadd.f32 %v1557, %v1333
        %v1559 = vadd.f32 %v1558, %v1341
        %v1560 = vadd.f32 %v1559, %v1349
        %v1561 = vadd.f32 %v1560, %v1357
        %v1562 = vadd.f32 %v1561, %v1365
        %v1563 = vadd.f32 %v1562, %v1373
        %v1564 = vrot.slane %v1563, 4
        %v1565 = vadd.f32 %v1563, %v1564
        %v1566 = vrot.slane %v1565, 2
        %v1567 = vadd.f32 %v1565, %v1566
        %v1568 = vrot.slane %v1567, 1
        %v1569 = vadd.f32 %v1567, %v1568
        %v1570 = vadd.f32 %v1254, %v1262
        %v1571 = vadd.f32 %v1570, %v1270
        %v1572 = vadd.f32 %v1571, %v1278
        %v1573 = vadd.f32 %v1572, %v1286
        %v1574 = vadd.f32 %v1573, %v1294
        %v1575 = vadd.f32 %v1574, %v1302
        %v1576 = vadd.f32 %v1575, %v1310
        %v1577 = vadd.f32 %v1576, %v1318
        %v1578 = vadd.f32 %v1577, %v1326
        %v1579 = vadd.f32 %v1578, %v1334
        %v1580 = vadd.f32 %v1579, %v1342
        %v1581 = vadd.f32 %v1580, %v1350
        %v1582 = vadd.f32 %v1581, %v1358
        %v1583 = vadd.f32 %v1582, %v1366
        %v1584 = vadd.f32 %v1583, %v1374
        %v1585 = vrot.slane %v1584, 4
        %v1586 = vadd.f32 %v1584, %v1585
        %v1587 = vrot.slane %v1586, 2
        %v1588 = vadd.f32 %v1586, %v1587
        %v1589 = vrot.slane %v1588, 1
        %v1590 = vadd.f32 %v1588, %v1589
        %v1591 = vadd.f32 %v1255, %v1263
        %v1592 = vadd.f32 %v1591, %v1271
        %v1593 = vadd.f32 %v1592, %v1279
        %v1594 = vadd.f32 %v1593, %v1287
        %v1595 = vadd.f32 %v1594, %v1295
        %v1596 = vadd.f32 %v1595, %v1303
        %v1597 = vadd.f32 %v1596, %v1311
        %v1598 = vadd.f32 %v1597, %v1319
        %v1599 = vadd.f32 %v1598, %v1327
        %v1600 = vadd.f32 %v1599, %v1335
        %v1601 = vadd.f32 %v1600, %v1343
        %v1602 = vadd.f32 %v1601, %v1351
        %v1603 = vadd.f32 %v1602, %v1359
        %v1604 = vadd.f32 %v1603, %v1367
        %v1605 = vadd.f32 %v1604, %v1375
        %v1606 = vrot.slane %v1605, 4
        %v1607 = vadd.f32 %v1605, %v1606
        %v1608 = vrot.slane %v1607, 2
        %v1609 = vadd.f32 %v1607, %v1608
        %v1610 = vrot.slane %v1609, 1
        %v1611 = vadd.f32 %v1609, %v1610
        %v1612 = vadd.f32 %v1256, %v1264
        %v1613 = vadd.f32 %v1612, %v1272
        %v1614 = vadd.f32 %v1613, %v1280
        %v1615 = vadd.f32 %v1614, %v1288
        %v1616 = vadd.f32 %v1615, %v1296
        %v1617 = vadd.f32 %v1616, %v1304
        %v1618 = vadd.f32 %v1617, %v1312
        %v1619 = vadd.f32 %v1618, %v1320
        %v1620 = vadd.f32 %v1619, %v1328
        %v1621 = vadd.f32 %v1620, %v1336
        %v1622 = vadd.f32 %v1621, %v1344
        %v1623 = vadd.f32 %v1622, %v1352
        %v1624 = vadd.f32 %v1623, %v1360
        %v1625 = vadd.f32 %v1624, %v1368
        %v1626 = vadd.f32 %v1625, %v1376
        %v1627 = vrot.slane %v1626, 4
        %v1628 = vadd.f32 %v1626, %v1627
        %v1629 = vrot.slane %v1628, 2
        %v1630 = vadd.f32 %v1628, %v1629
        %v1631 = vrot.slane %v1630, 1
        %v1632 = vadd.f32 %v1630, %v1631
        %v1633 = vadd.f32 %v1257, %v1265
        %v1634 = vadd.f32 %v1633, %v1273
        %v1635 = vadd.f32 %v1634, %v1281
        %v1636 = vadd.f32 %v1635, %v1289
        %v1637 = vadd.f32 %v1636, %v1297
        %v1638 = vadd.f32 %v1637, %v1305
        %v1639 = vadd.f32 %v1638, %v1313
        %v1640 = vadd.f32 %v1639, %v1321
        %v1641 = vadd.f32 %v1640, %v1329
        %v1642 = vadd.f32 %v1641, %v1337
        %v1643 = vadd.f32 %v1642, %v1345
        %v1644 = vadd.f32 %v1643, %v1353
        %v1645 = vadd.f32 %v1644, %v1361
        %v1646 = vadd.f32 %v1645, %v1369
        %v1647 = vadd.f32 %v1646, %v1377
        %v1648 = vrot.slane %v1647, 4
        %v1649 = vadd.f32 %v1647, %v1648
        %v1650 = vrot.slane %v1649, 2
        %v1651 = vadd.f32 %v1649, %v1650
        %v1652 = vrot.slane %v1651, 1
        %v1653 = vadd.f32 %v1651, %v1652
        %v1654 = vadd.f32 %v1258, %v1266
        %v1655 = vadd.f32 %v1654, %v1274
        %v1656 = vadd.f32 %v1655, %v1282
        %v1657 = vadd.f32 %v1656, %v1290
        %v1658 = vadd.f32 %v1657, %v1298
        %v1659 = vadd.f32 %v1658, %v1306
        %v1660 = vadd.f32 %v1659, %v1314
        %v1661 = vadd.f32 %v1660, %v1322
        %v1662 = vadd.f32 %v1661, %v1330
        %v1663 = vadd.f32 %v1662, %v1338
        %v1664 = vadd.f32 %v1663, %v1346
        %v1665 = vadd.f32 %v1664, %v1354
        %v1666 = vadd.f32 %v1665, %v1362
        %v1667 = vadd.f32 %v1666, %v1370
        %v1668 = vadd.f32 %v1667, %v1378
        %v1669 = vrot.slane %v1668, 4
        %v1670 = vadd.f32 %v1668, %v1669
        %v1671 = vrot.slane %v1670, 2
        %v1672 = vadd.f32 %v1670, %v1671
        %v1673 = vrot.slane %v1672, 1
        %v1674 = vadd.f32 %v1672, %v1673
        %v1675 = vadd.f32 %v1259, %v1267
        %v1676 = vadd.f32 %v1675, %v1275
        %v1677 = vadd.f32 %v1676, %v1283
        %v1678 = vadd.f32 %v1677, %v1291
        %v1679 = vadd.f32 %v1678, %v1299
        %v1680 = vadd.f32 %v1679, %v1307
        %v1681 = vadd.f32 %v1680, %v1315
        %v1682 = vadd.f32 %v1681, %v1323
        %v1683 = vadd.f32 %v1682, %v1331
        %v1684 = vadd.f32 %v1683, %v1339
        %v1685 = vadd.f32 %v1684, %v1347
        %v1686 = vadd.f32 %v1685, %v1355
        %v1687 = vadd.f32 %v1686, %v1363
        %v1688 = vadd.f32 %v1687, %v1371
        %v1689 = vadd.f32 %v1688, %v1379
        %v1690 = vrot.slane %v1689, 4
        %v1691 = vadd.f32 %v1689, %v1690
        %v1692 = vrot.slane %v1691, 2
        %v1693 = vadd.f32 %v1691, %v1692
        %v1694 = vrot.slane %v1693, 1
        %v1695 = vadd.f32 %v1693, %v1694
        %v1696 = vadd.f32 %v1260, %v1268
        %v1697 = vadd.f32 %v1696, %v1276
        %v1698 = vadd.f32 %v1697, %v1284
        %v1699 = vadd.f32 %v1698, %v1292
        %v1700 = vadd.f32 %v1699, %v1300
        %v1701 = vadd.f32 %v1700, %v1308
        %v1702 = vadd.f32 %v1701, %v1316
        %v1703 = vadd.f32 %v1702, %v1324
        %v1704 = vadd.f32 %v1703, %v1332
        %v1705 = vadd.f32 %v1704, %v1340
        %v1706 = vadd.f32 %v1705, %v1348
        %v1707 = vadd.f32 %v1706, %v1356
        %v1708 = vadd.f32 %v1707, %v1364
        %v1709 = vadd.f32 %v1708, %v1372
        %v1710 = vadd.f32 %v1709, %v1380
        %v1711 = vrot.slane %v1710, 4
        %v1712 = vadd.f32 %v1710, %v1711
        %v1713 = vrot.slane %v1712, 2
        %v1714 = vadd.f32 %v1712, %v1713
        %v1715 = vrot.slane %v1714, 1
        %v1716 = vadd.f32 %v1714, %v1715
        %v1717 = vadd.f32 %v1401, %v1422
        %v1718 = vadd.f32 %v1717, %v1443
        %v1719 = vadd.f32 %v1718, %v1464
        %v1720 = vadd.f32 %v1719, %v1485
        %v1721 = vadd.f32 %v1720, %v1506
        %v1722 = vadd.f32 %v1721, %v1527
        %v1723 = vadd.f32 %v1722, %v1548
        %1724 = vadd.xlane.f32.xlu0 %v1723
        %v1725 = vpop.xlane.xlu0 %1724
        %v1726 = vadd.f32 %v1569, %v1590
        %v1727 = vadd.f32 %v1726, %v1611
        %v1728 = vadd.f32 %v1727, %v1632
        %v1729 = vadd.f32 %v1728, %v1653
        %v1730 = vadd.f32 %v1729, %v1674
        %v1731 = vadd.f32 %v1730, %v1695
        %v1732 = vadd.f32 %v1731, %v1716
        %1733 = vadd.xlane.f32.xlu0 %v1732
        %v1734 = vpop.xlane.xlu0 %1733
        %v1735 = vmul.f32 %v1725, 7.6293945e-06
        %v1736 = vmul.f32 %v1734, 7.6293945e-06
        %v1737 = vmul.f32 %v1123, %v1123
        %v1738 = vmul.f32 %v1124, %v1124
        %v1739 = vsub.f32 %v1735, %v1737
        %v1740 = vsub.f32 %v1736, %v1738
        %v1741 = vadd.f32 %v1739, 1e-05
        %v1742 = vadd.f32 %v1740, 1e-05
        %v1743 = vrsqrt.pop %v1741
        %v1744 = vmul.f32 %v1743, %v1741
        %v1745 = vmul.f32 %v1744, %v1743
        %v1746 = vmul.f32 0.5, %v1745
        %v1747 = vsub.f32 1.5, %v1746
        %v1748 = vmul.f32 %v1743, %v1747
        %vm1749 = vweird.f32 %v1741
        %vm1750 = vweird.f32 %v1743
        %vm1751 = vmor %vm1749, %vm1750
        %v1752 = vsel %vm1751, %v1743, %v1748
        %v1753 = vrsqrt.pop %v1742
        %v1754 = vmul.f32 %v1753, %v1742
        %v1755 = vmul.f32 %v1754, %v1753
        %v1756 = vmul.f32 0.5, %v1755
        %v1757 = vsub.f32 1.5, %v1756
        %v1758 = vmul.f32 %v1753, %v1757
        %vm1759 = vweird.f32 %v1742
        %vm1760 = vweird.f32 %v1753
        %vm1761 = vmor %vm1759, %vm1760
        %v1762 = vsel %vm1761, %v1753, %v1758
        %v1763 = vld [vmem:[#allocation5] sm:$0xff]
        %v1764 = vld [vmem:[#allocation5 + $0x8] sm:$0xff]
        %v1765 = vld [vmem:[#allocation5 + $0x10] sm:$0xff]
        %v1766 = vld [vmem:[#allocation5 + $0x18] sm:$0xff]
        %v1767 = vld [vmem:[#allocation5 + $0x20] sm:$0xff]
        %v1768 = vld [vmem:[#allocation5 + $0x28] sm:$0xff]
        %v1769 = vld [vmem:[#allocation5 + $0x30] sm:$0xff]
        %v1770 = vld [vmem:[#allocation5 + $0x38] sm:$0xff]
        %v1771 = vld [vmem:[#allocation5 + $0x40] sm:$0xff]
        %v1772 = vld [vmem:[#allocation5 + $0x48] sm:$0xff]
        %v1773 = vld [vmem:[#allocation5 + $0x50] sm:$0xff]
        %v1774 = vld [vmem:[#allocation5 + $0x58] sm:$0xff]
        %v1775 = vld [vmem:[#allocation5 + $0x60] sm:$0xff]
        %v1776 = vld [vmem:[#allocation5 + $0x68] sm:$0xff]
        %v1777 = vld [vmem:[#allocation5 + $0x70] sm:$0xff]
        %v1778 = vld [vmem:[#allocation5 + $0x78] sm:$0xff]
        %v1779 = vld [vmem:[#allocation5 + $0x80] sm:$0xff]
        %v1780 = vld [vmem:[#allocation5 + $0x88] sm:$0xff]
        %v1781 = vld [vmem:[#allocation5 + $0x90] sm:$0xff]
        %v1782 = vld [vmem:[#allocation5 + $0x98] sm:$0xff]
        %v1783 = vld [vmem:[#allocation5 + $0xa0] sm:$0xff]
        %v1784 = vld [vmem:[#allocation5 + $0xa8] sm:$0xff]
        %v1785 = vld [vmem:[#allocation5 + $0xb0] sm:$0xff]
        %v1786 = vld [vmem:[#allocation5 + $0xb8] sm:$0xff]
        %v1787 = vld [vmem:[#allocation5 + $0xc0] sm:$0xff]
        %v1788 = vld [vmem:[#allocation5 + $0xc8] sm:$0xff]
        %v1789 = vld [vmem:[#allocation5 + $0xd0] sm:$0xff]
        %v1790 = vld [vmem:[#allocation5 + $0xd8] sm:$0xff]
        %v1791 = vld [vmem:[#allocation5 + $0xe0] sm:$0xff]
        %v1792 = vld [vmem:[#allocation5 + $0xe8] sm:$0xff]
        %v1793 = vld [vmem:[#allocation5 + $0xf0] sm:$0xff]
        %v1794 = vld [vmem:[#allocation5 + $0xf8] sm:$0xff]
        %v1795 = vld [vmem:[#allocation5 + $0x100] sm:$0xff]
        %v1796 = vld [vmem:[#allocation5 + $0x108] sm:$0xff]
        %v1797 = vld [vmem:[#allocation5 + $0x110] sm:$0xff]
        %v1798 = vld [vmem:[#allocation5 + $0x118] sm:$0xff]
        %v1799 = vld [vmem:[#allocation5 + $0x120] sm:$0xff]
        %v1800 = vld [vmem:[#allocation5 + $0x128] sm:$0xff]
        %v1801 = vld [vmem:[#allocation5 + $0x130] sm:$0xff]
        %v1802 = vld [vmem:[#allocation5 + $0x138] sm:$0xff]
        %v1803 = vld [vmem:[#allocation5 + $0x140] sm:$0xff]
        %v1804 = vld [vmem:[#allocation5 + $0x148] sm:$0xff]
        %v1805 = vld [vmem:[#allocation5 + $0x150] sm:$0xff]
        %v1806 = vld [vmem:[#allocation5 + $0x158] sm:$0xff]
        %v1807 = vld [vmem:[#allocation5 + $0x160] sm:$0xff]
        %v1808 = vld [vmem:[#allocation5 + $0x168] sm:$0xff]
        %v1809 = vld [vmem:[#allocation5 + $0x170] sm:$0xff]
        %v1810 = vld [vmem:[#allocation5 + $0x178] sm:$0xff]
        %v1811 = vld [vmem:[#allocation5 + $0x180] sm:$0xff]
        %v1812 = vld [vmem:[#allocation5 + $0x188] sm:$0xff]
        %v1813 = vld [vmem:[#allocation5 + $0x190] sm:$0xff]
        %v1814 = vld [vmem:[#allocation5 + $0x198] sm:$0xff]
        %v1815 = vld [vmem:[#allocation5 + $0x1a0] sm:$0xff]
        %v1816 = vld [vmem:[#allocation5 + $0x1a8] sm:$0xff]
        %v1817 = vld [vmem:[#allocation5 + $0x1b0] sm:$0xff]
        %v1818 = vld [vmem:[#allocation5 + $0x1b8] sm:$0xff]
        %v1819 = vld [vmem:[#allocation5 + $0x1c0] sm:$0xff]
        %v1820 = vld [vmem:[#allocation5 + $0x1c8] sm:$0xff]
        %v1821 = vld [vmem:[#allocation5 + $0x1d0] sm:$0xff]
        %v1822 = vld [vmem:[#allocation5 + $0x1d8] sm:$0xff]
        %v1823 = vld [vmem:[#allocation5 + $0x1e0] sm:$0xff]
        %v1824 = vld [vmem:[#allocation5 + $0x1e8] sm:$0xff]
        %v1825 = vld [vmem:[#allocation5 + $0x1f0] sm:$0xff]
        %v1826 = vld [vmem:[#allocation5 + $0x1f8] sm:$0xff]
        %v1827 = vunpack.c.l.bf16 %v1763
        %v1828 = vunpack.c.h.bf16 %v1763
        %v1829 = vunpack.c.l.bf16 %v1764
        %v1830 = vunpack.c.h.bf16 %v1764
        %v1831 = vunpack.c.l.bf16 %v1765
        %v1832 = vunpack.c.h.bf16 %v1765
        %v1833 = vunpack.c.l.bf16 %v1766
        %v1834 = vunpack.c.h.bf16 %v1766
        %v1835 = vunpack.c.l.bf16 %v1767
        %v1836 = vunpack.c.h.bf16 %v1767
        %v1837 = vunpack.c.l.bf16 %v1768
        %v1838 = vunpack.c.h.bf16 %v1768
        %v1839 = vunpack.c.l.bf16 %v1769
        %v1840 = vunpack.c.h.bf16 %v1769
        %v1841 = vunpack.c.l.bf16 %v1770
        %v1842 = vunpack.c.h.bf16 %v1770
        %v1843 = vunpack.c.l.bf16 %v1771
        %v1844 = vunpack.c.h.bf16 %v1771
        %v1845 = vunpack.c.l.bf16 %v1772
        %v1846 = vunpack.c.h.bf16 %v1772
        %v1847 = vunpack.c.l.bf16 %v1773
        %v1848 = vunpack.c.h.bf16 %v1773
        %v1849 = vunpack.c.l.bf16 %v1774
        %v1850 = vunpack.c.h.bf16 %v1774
        %v1851 = vunpack.c.l.bf16 %v1775
        %v1852 = vunpack.c.h.bf16 %v1775
        %v1853 = vunpack.c.l.bf16 %v1776
        %v1854 = vunpack.c.h.bf16 %v1776
        %v1855 = vunpack.c.l.bf16 %v1777
        %v1856 = vunpack.c.h.bf16 %v1777
        %v1857 = vunpack.c.l.bf16 %v1778
        %v1858 = vunpack.c.h.bf16 %v1778
        %v1859 = vunpack.c.l.bf16 %v1779
        %v1860 = vunpack.c.h.bf16 %v1779
        %v1861 = vunpack.c.l.bf16 %v1780
        %v1862 = vunpack.c.h.bf16 %v1780
        %v1863 = vunpack.c.l.bf16 %v1781
        %v1864 = vunpack.c.h.bf16 %v1781
        %v1865 = vunpack.c.l.bf16 %v1782
        %v1866 = vunpack.c.h.bf16 %v1782
        %v1867 = vunpack.c.l.bf16 %v1783
        %v1868 = vunpack.c.h.bf16 %v1783
        %v1869 = vunpack.c.l.bf16 %v1784
        %v1870 = vunpack.c.h.bf16 %v1784
        %v1871 = vunpack.c.l.bf16 %v1785
        %v1872 = vunpack.c.h.bf16 %v1785
        %v1873 = vunpack.c.l.bf16 %v1786
        %v1874 = vunpack.c.h.bf16 %v1786
        %v1875 = vunpack.c.l.bf16 %v1787
        %v1876 = vunpack.c.h.bf16 %v1787
        %v1877 = vunpack.c.l.bf16 %v1788
        %v1878 = vunpack.c.h.bf16 %v1788
        %v1879 = vunpack.c.l.bf16 %v1789
        %v1880 = vunpack.c.h.bf16 %v1789
        %v1881 = vunpack.c.l.bf16 %v1790
        %v1882 = vunpack.c.h.bf16 %v1790
        %v1883 = vunpack.c.l.bf16 %v1791
        %v1884 = vunpack.c.h.bf16 %v1791
        %v1885 = vunpack.c.l.bf16 %v1792
        %v1886 = vunpack.c.h.bf16 %v1792
        %v1887 = vunpack.c.l.bf16 %v1793
        %v1888 = vunpack.c.h.bf16 %v1793
        %v1889 = vunpack.c.l.bf16 %v1794
        %v1890 = vunpack.c.h.bf16 %v1794
        %v1891 = vunpack.c.l.bf16 %v1795
        %v1892 = vunpack.c.h.bf16 %v1795
        %v1893 = vunpack.c.l.bf16 %v1796
        %v1894 = vunpack.c.h.bf16 %v1796
        %v1895 = vunpack.c.l.bf16 %v1797
        %v1896 = vunpack.c.h.bf16 %v1797
        %v1897 = vunpack.c.l.bf16 %v1798
        %v1898 = vunpack.c.h.bf16 %v1798
        %v1899 = vunpack.c.l.bf16 %v1799
        %v1900 = vunpack.c.h.bf16 %v1799
        %v1901 = vunpack.c.l.bf16 %v1800
        %v1902 = vunpack.c.h.bf16 %v1800
        %v1903 = vunpack.c.l.bf16 %v1801
        %v1904 = vunpack.c.h.bf16 %v1801
        %v1905 = vunpack.c.l.bf16 %v1802
        %v1906 = vunpack.c.h.bf16 %v1802
        %v1907 = vunpack.c.l.bf16 %v1803
        %v1908 = vunpack.c.h.bf16 %v1803
        %v1909 = vunpack.c.l.bf16 %v1804
        %v1910 = vunpack.c.h.bf16 %v1804
        %v1911 = vunpack.c.l.bf16 %v1805
        %v1912 = vunpack.c.h.bf16 %v1805
        %v1913 = vunpack.c.l.bf16 %v1806
        %v1914 = vunpack.c.h.bf16 %v1806
        %v1915 = vunpack.c.l.bf16 %v1807
        %v1916 = vunpack.c.h.bf16 %v1807
        %v1917 = vunpack.c.l.bf16 %v1808
        %v1918 = vunpack.c.h.bf16 %v1808
        %v1919 = vunpack.c.l.bf16 %v1809
        %v1920 = vunpack.c.h.bf16 %v1809
        %v1921 = vunpack.c.l.bf16 %v1810
        %v1922 = vunpack.c.h.bf16 %v1810
        %v1923 = vunpack.c.l.bf16 %v1811
        %v1924 = vunpack.c.h.bf16 %v1811
        %v1925 = vunpack.c.l.bf16 %v1812
        %v1926 = vunpack.c.h.bf16 %v1812
        %v1927 = vunpack.c.l.bf16 %v1813
        %v1928 = vunpack.c.h.bf16 %v1813
        %v1929 = vunpack.c.l.bf16 %v1814
        %v1930 = vunpack.c.h.bf16 %v1814
        %v1931 = vunpack.c.l.bf16 %v1815
        %v1932 = vunpack.c.h.bf16 %v1815
        %v1933 = vunpack.c.l.bf16 %v1816
        %v1934 = vunpack.c.h.bf16 %v1816
        %v1935 = vunpack.c.l.bf16 %v1817
        %v1936 = vunpack.c.h.bf16 %v1817
        %v1937 = vunpack.c.l.bf16 %v1818
        %v1938 = vunpack.c.h.bf16 %v1818
        %v1939 = vunpack.c.l.bf16 %v1819
        %v1940 = vunpack.c.h.bf16 %v1819
        %v1941 = vunpack.c.l.bf16 %v1820
        %v1942 = vunpack.c.h.bf16 %v1820
        %v1943 = vunpack.c.l.bf16 %v1821
        %v1944 = vunpack.c.h.bf16 %v1821
        %v1945 = vunpack.c.l.bf16 %v1822
        %v1946 = vunpack.c.h.bf16 %v1822
        %v1947 = vunpack.c.l.bf16 %v1823
        %v1948 = vunpack.c.h.bf16 %v1823
        %v1949 = vunpack.c.l.bf16 %v1824
        %v1950 = vunpack.c.h.bf16 %v1824
        %v1951 = vunpack.c.l.bf16 %v1825
        %v1952 = vunpack.c.h.bf16 %v1825
        %v1953 = vunpack.c.l.bf16 %v1826
        %v1954 = vunpack.c.h.bf16 %v1826
        %v1955 = vmul.f32 %v513, %v1827
        %v1956 = vmul.f32 %v514, %v1828
        %v1957 = vmul.f32 %v515, %v1829
        %v1958 = vmul.f32 %v516, %v1830
        %v1959 = vmul.f32 %v517, %v1831
        %v1960 = vmul.f32 %v518, %v1832
        %v1961 = vmul.f32 %v519, %v1833
        %v1962 = vmul.f32 %v520, %v1834
        %v1963 = vmul.f32 %v521, %v1835
        %v1964 = vmul.f32 %v522, %v1836
        %v1965 = vmul.f32 %v523, %v1837
        %v1966 = vmul.f32 %v524, %v1838
        %v1967 = vmul.f32 %v525, %v1839
        %v1968 = vmul.f32 %v526, %v1840
        %v1969 = vmul.f32 %v527, %v1841
        %v1970 = vmul.f32 %v528, %v1842
        %v1971 = vmul.f32 %v529, %v1843
        %v1972 = vmul.f32 %v530, %v1844
        %v1973 = vmul.f32 %v531, %v1845
        %v1974 = vmul.f32 %v532, %v1846
        %v1975 = vmul.f32 %v533, %v1847
        %v1976 = vmul.f32 %v534, %v1848
        %v1977 = vmul.f32 %v535, %v1849
        %v1978 = vmul.f32 %v536, %v1850
        %v1979 = vmul.f32 %v537, %v1851
        %v1980 = vmul.f32 %v538, %v1852
        %v1981 = vmul.f32 %v539, %v1853
        %v1982 = vmul.f32 %v540, %v1854
        %v1983 = vmul.f32 %v541, %v1855
        %v1984 = vmul.f32 %v542, %v1856
        %v1985 = vmul.f32 %v543, %v1857
        %v1986 = vmul.f32 %v544, %v1858
        %v1987 = vmul.f32 %v545, %v1859
        %v1988 = vmul.f32 %v546, %v1860
        %v1989 = vmul.f32 %v547, %v1861
        %v1990 = vmul.f32 %v548, %v1862
        %v1991 = vmul.f32 %v549, %v1863
        %v1992 = vmul.f32 %v550, %v1864
        %v1993 = vmul.f32 %v551, %v1865
        %v1994 = vmul.f32 %v552, %v1866
        %v1995 = vmul.f32 %v553, %v1867
        %v1996 = vmul.f32 %v554, %v1868
        %v1997 = vmul.f32 %v555, %v1869
        %v1998 = vmul.f32 %v556, %v1870
        %v1999 = vmul.f32 %v557, %v1871
        %v2000 = vmul.f32 %v558, %v1872
        %v2001 = vmul.f32 %v559, %v1873
        %v2002 = vmul.f32 %v560, %v1874
        %v2003 = vmul.f32 %v561, %v1875
        %v2004 = vmul.f32 %v562, %v1876
        %v2005 = vmul.f32 %v563, %v1877
        %v2006 = vmul.f32 %v564, %v1878
        %v2007 = vmul.f32 %v565, %v1879
        %v2008 = vmul.f32 %v566, %v1880
        %v2009 = vmul.f32 %v567, %v1881
        %v2010 = vmul.f32 %v568, %v1882
        %v2011 = vmul.f32 %v569, %v1883
        %v2012 = vmul.f32 %v570, %v1884
        %v2013 = vmul.f32 %v571, %v1885
        %v2014 = vmul.f32 %v572, %v1886
        %v2015 = vmul.f32 %v573, %v1887
        %v2016 = vmul.f32 %v574, %v1888
        %v2017 = vmul.f32 %v575, %v1889
        %v2018 = vmul.f32 %v576, %v1890
        %v2019 = vmul.f32 %v577, %v1891
        %v2020 = vmul.f32 %v578, %v1892
        %v2021 = vmul.f32 %v579, %v1893
        %v2022 = vmul.f32 %v580, %v1894
        %v2023 = vmul.f32 %v581, %v1895
        %v2024 = vmul.f32 %v582, %v1896
        %v2025 = vmul.f32 %v583, %v1897
        %v2026 = vmul.f32 %v584, %v1898
        %v2027 = vmul.f32 %v585, %v1899
        %v2028 = vmul.f32 %v586, %v1900
        %v2029 = vmul.f32 %v587, %v1901
        %v2030 = vmul.f32 %v588, %v1902
        %v2031 = vmul.f32 %v589, %v1903
        %v2032 = vmul.f32 %v590, %v1904
        %v2033 = vmul.f32 %v591, %v1905
        %v2034 = vmul.f32 %v592, %v1906
        %v2035 = vmul.f32 %v593, %v1907
        %v2036 = vmul.f32 %v594, %v1908
        %v2037 = vmul.f32 %v595, %v1909
        %v2038 = vmul.f32 %v596, %v1910
        %v2039 = vmul.f32 %v597, %v1911
        %v2040 = vmul.f32 %v598, %v1912
        %v2041 = vmul.f32 %v599, %v1913
        %v2042 = vmul.f32 %v600, %v1914
        %v2043 = vmul.f32 %v601, %v1915
        %v2044 = vmul.f32 %v602, %v1916
        %v2045 = vmul.f32 %v603, %v1917
        %v2046 = vmul.f32 %v604, %v1918
        %v2047 = vmul.f32 %v605, %v1919
        %v2048 = vmul.f32 %v606, %v1920
        %v2049 = vmul.f32 %v607, %v1921
        %v2050 = vmul.f32 %v608, %v1922
        %v2051 = vmul.f32 %v609, %v1923
        %v2052 = vmul.f32 %v610, %v1924
        %v2053 = vmul.f32 %v611, %v1925
        %v2054 = vmul.f32 %v612, %v1926
        %v2055 = vmul.f32 %v613, %v1927
        %v2056 = vmul.f32 %v614, %v1928
        %v2057 = vmul.f32 %v615, %v1929
        %v2058 = vmul.f32 %v616, %v1930
        %v2059 = vmul.f32 %v617, %v1931
        %v2060 = vmul.f32 %v618, %v1932
        %v2061 = vmul.f32 %v619, %v1933
        %v2062 = vmul.f32 %v620, %v1934
        %v2063 = vmul.f32 %v621, %v1935
        %v2064 = vmul.f32 %v622, %v1936
        %v2065 = vmul.f32 %v623, %v1937
        %v2066 = vmul.f32 %v624, %v1938
        %v2067 = vmul.f32 %v625, %v1939
        %v2068 = vmul.f32 %v626, %v1940
        %v2069 = vmul.f32 %v627, %v1941
        %v2070 = vmul.f32 %v628, %v1942
        %v2071 = vmul.f32 %v629, %v1943
        %v2072 = vmul.f32 %v630, %v1944
        %v2073 = vmul.f32 %v631, %v1945
        %v2074 = vmul.f32 %v632, %v1946
        %v2075 = vmul.f32 %v633, %v1947
        %v2076 = vmul.f32 %v634, %v1948
        %v2077 = vmul.f32 %v635, %v1949
        %v2078 = vmul.f32 %v636, %v1950
        %v2079 = vmul.f32 %v637, %v1951
        %v2080 = vmul.f32 %v638, %v1952
        %v2081 = vmul.f32 %v639, %v1953
        %v2082 = vmul.f32 %v640, %v1954
        %v2083 = vmul.f32 %v641, %v1827
        %v2084 = vmul.f32 %v642, %v1828
        %v2085 = vmul.f32 %v643, %v1829
        %v2086 = vmul.f32 %v644, %v1830
        %v2087 = vmul.f32 %v645, %v1831
        %v2088 = vmul.f32 %v646, %v1832
        %v2089 = vmul.f32 %v647, %v1833
        %v2090 = vmul.f32 %v648, %v1834
        %v2091 = vmul.f32 %v649, %v1835
        %v2092 = vmul.f32 %v650, %v1836
        %v2093 = vmul.f32 %v651, %v1837
        %v2094 = vmul.f32 %v652, %v1838
        %v2095 = vmul.f32 %v653, %v1839
        %v2096 = vmul.f32 %v654, %v1840
        %v2097 = vmul.f32 %v655, %v1841
        %v2098 = vmul.f32 %v656, %v1842
        %v2099 = vmul.f32 %v657, %v1843
        %v2100 = vmul.f32 %v658, %v1844
        %v2101 = vmul.f32 %v659, %v1845
        %v2102 = vmul.f32 %v660, %v1846
        %v2103 = vmul.f32 %v661, %v1847
        %v2104 = vmul.f32 %v662, %v1848
        %v2105 = vmul.f32 %v663, %v1849
        %v2106 = vmul.f32 %v664, %v1850
        %v2107 = vmul.f32 %v665, %v1851
        %v2108 = vmul.f32 %v666, %v1852
        %v2109 = vmul.f32 %v667, %v1853
        %v2110 = vmul.f32 %v668, %v1854
        %v2111 = vmul.f32 %v669, %v1855
        %v2112 = vmul.f32 %v670, %v1856
        %v2113 = vmul.f32 %v671, %v1857
        %v2114 = vmul.f32 %v672, %v1858
        %v2115 = vmul.f32 %v673, %v1859
        %v2116 = vmul.f32 %v674, %v1860
        %v2117 = vmul.f32 %v675, %v1861
        %v2118 = vmul.f32 %v676, %v1862
        %v2119 = vmul.f32 %v677, %v1863
        %v2120 = vmul.f32 %v678, %v1864
        %v2121 = vmul.f32 %v679, %v1865
        %v2122 = vmul.f32 %v680, %v1866
        %v2123 = vmul.f32 %v681, %v1867
        %v2124 = vmul.f32 %v682, %v1868
        %v2125 = vmul.f32 %v683, %v1869
        %v2126 = vmul.f32 %v684, %v1870
        %v2127 = vmul.f32 %v685, %v1871
        %v2128 = vmul.f32 %v686, %v1872
        %v2129 = vmul.f32 %v687, %v1873
        %v2130 = vmul.f32 %v688, %v1874
        %v2131 = vmul.f32 %v689, %v1875
        %v2132 = vmul.f32 %v690, %v1876
        %v2133 = vmul.f32 %v691, %v1877
        %v2134 = vmul.f32 %v692, %v1878
        %v2135 = vmul.f32 %v693, %v1879
        %v2136 = vmul.f32 %v694, %v1880
        %v2137 = vmul.f32 %v695, %v1881
        %v2138 = vmul.f32 %v696, %v1882
        %v2139 = vmul.f32 %v697, %v1883
        %v2140 = vmul.f32 %v698, %v1884
        %v2141 = vmul.f32 %v699, %v1885
        %v2142 = vmul.f32 %v700, %v1886
        %v2143 = vmul.f32 %v701, %v1887
        %v2144 = vmul.f32 %v702, %v1888
        %v2145 = vmul.f32 %v703, %v1889
        %v2146 = vmul.f32 %v704, %v1890
        %v2147 = vmul.f32 %v705, %v1891
        %v2148 = vmul.f32 %v706, %v1892
        %v2149 = vmul.f32 %v707, %v1893
        %v2150 = vmul.f32 %v708, %v1894
        %v2151 = vmul.f32 %v709, %v1895
        %v2152 = vmul.f32 %v710, %v1896
        %v2153 = vmul.f32 %v711, %v1897
        %v2154 = vmul.f32 %v712, %v1898
        %v2155 = vmul.f32 %v713, %v1899
        %v2156 = vmul.f32 %v714, %v1900
        %v2157 = vmul.f32 %v715, %v1901
        %v2158 = vmul.f32 %v716, %v1902
        %v2159 = vmul.f32 %v717, %v1903
        %v2160 = vmul.f32 %v718, %v1904
        %v2161 = vmul.f32 %v719, %v1905
        %v2162 = vmul.f32 %v720, %v1906
        %v2163 = vmul.f32 %v721, %v1907
        %v2164 = vmul.f32 %v722, %v1908
        %v2165 = vmul.f32 %v723, %v1909
        %v2166 = vmul.f32 %v724, %v1910
        %v2167 = vmul.f32 %v725, %v1911
        %v2168 = vmul.f32 %v726, %v1912
        %v2169 = vmul.f32 %v727, %v1913
        %v2170 = vmul.f32 %v728, %v1914
        %v2171 = vmul.f32 %v729, %v1915
        %v2172 = vmul.f32 %v730, %v1916
        %v2173 = vmul.f32 %v731, %v1917
        %v2174 = vmul.f32 %v732, %v1918
        %v2175 = vmul.f32 %v733, %v1919
        %v2176 = vmul.f32 %v734, %v1920
        %v2177 = vmul.f32 %v735, %v1921
        %v2178 = vmul.f32 %v736, %v1922
        %v2179 = vmul.f32 %v737, %v1923
        %v2180 = vmul.f32 %v738, %v1924
        %v2181 = vmul.f32 %v739, %v1925
        %v2182 = vmul.f32 %v740, %v1926
        %v2183 = vmul.f32 %v741, %v1927
        %v2184 = vmul.f32 %v742, %v1928
        %v2185 = vmul.f32 %v743, %v1929
        %v2186 = vmul.f32 %v744, %v1930
        %v2187 = vmul.f32 %v745, %v1931
        %v2188 = vmul.f32 %v746, %v1932
        %v2189 = vmul.f32 %v747, %v1933
        %v2190 = vmul.f32 %v748, %v1934
        %v2191 = vmul.f32 %v749, %v1935
        %v2192 = vmul.f32 %v750, %v1936
        %v2193 = vmul.f32 %v751, %v1937
        %v2194 = vmul.f32 %v752, %v1938
        %v2195 = vmul.f32 %v753, %v1939
        %v2196 = vmul.f32 %v754, %v1940
        %v2197 = vmul.f32 %v755, %v1941
        %v2198 = vmul.f32 %v756, %v1942
        %v2199 = vmul.f32 %v757, %v1943
        %v2200 = vmul.f32 %v758, %v1944
        %v2201 = vmul.f32 %v759, %v1945
        %v2202 = vmul.f32 %v760, %v1946
        %v2203 = vmul.f32 %v761, %v1947
        %v2204 = vmul.f32 %v762, %v1948
        %v2205 = vmul.f32 %v763, %v1949
        %v2206 = vmul.f32 %v764, %v1950
        %v2207 = vmul.f32 %v765, %v1951
        %v2208 = vmul.f32 %v766, %v1952
        %v2209 = vmul.f32 %v767, %v1953
        %v2210 = vmul.f32 %v768, %v1954
        %v2211 = vpack.c.bf16 %v1956, %v1955
        %v2212 = vpack.c.bf16 %v1958, %v1957
        %v2213 = vpack.c.bf16 %v1960, %v1959
        %v2214 = vpack.c.bf16 %v1962, %v1961
        %v2215 = vpack.c.bf16 %v1964, %v1963
        %v2216 = vpack.c.bf16 %v1966, %v1965
        %v2217 = vpack.c.bf16 %v1968, %v1967
        %v2218 = vpack.c.bf16 %v1970, %v1969
        %v2219 = vpack.c.bf16 %v1972, %v1971
        %v2220 = vpack.c.bf16 %v1974, %v1973
        %v2221 = vpack.c.bf16 %v1976, %v1975
        %v2222 = vpack.c.bf16 %v1978, %v1977
        %v2223 = vpack.c.bf16 %v1980, %v1979
        %v2224 = vpack.c.bf16 %v1982, %v1981
        %v2225 = vpack.c.bf16 %v1984, %v1983
        %v2226 = vpack.c.bf16 %v1986, %v1985
        %v2227 = vpack.c.bf16 %v1988, %v1987
        %v2228 = vpack.c.bf16 %v1990, %v1989
        %v2229 = vpack.c.bf16 %v1992, %v1991
        %v2230 = vpack.c.bf16 %v1994, %v1993
        %v2231 = vpack.c.bf16 %v1996, %v1995
        %v2232 = vpack.c.bf16 %v1998, %v1997
        %v2233 = vpack.c.bf16 %v2000, %v1999
        %v2234 = vpack.c.bf16 %v2002, %v2001
        %v2235 = vpack.c.bf16 %v2004, %v2003
        %v2236 = vpack.c.bf16 %v2006, %v2005
        %v2237 = vpack.c.bf16 %v2008, %v2007
        %v2238 = vpack.c.bf16 %v2010, %v2009
        %v2239 = vpack.c.bf16 %v2012, %v2011
        %v2240 = vpack.c.bf16 %v2014, %v2013
        %v2241 = vpack.c.bf16 %v2016, %v2015
        %v2242 = vpack.c.bf16 %v2018, %v2017
        %v2243 = vpack.c.bf16 %v2020, %v2019
        %v2244 = vpack.c.bf16 %v2022, %v2021
        %v2245 = vpack.c.bf16 %v2024, %v2023
        %v2246 = vpack.c.bf16 %v2026, %v2025
        %v2247 = vpack.c.bf16 %v2028, %v2027
        %v2248 = vpack.c.bf16 %v2030, %v2029
        %v2249 = vpack.c.bf16 %v2032, %v2031
        %v2250 = vpack.c.bf16 %v2034, %v2033
        %v2251 = vpack.c.bf16 %v2036, %v2035
        %v2252 = vpack.c.bf16 %v2038, %v2037
        %v2253 = vpack.c.bf16 %v2040, %v2039
        %v2254 = vpack.c.bf16 %v2042, %v2041
        %v2255 = vpack.c.bf16 %v2044, %v2043
        %v2256 = vpack.c.bf16 %v2046, %v2045
        %v2257 = vpack.c.bf16 %v2048, %v2047
        %v2258 = vpack.c.bf16 %v2050, %v2049
        %v2259 = vpack.c.bf16 %v2052, %v2051
        %v2260 = vpack.c.bf16 %v2054, %v2053
        %v2261 = vpack.c.bf16 %v2056, %v2055
        %v2262 = vpack.c.bf16 %v2058, %v2057
        %v2263 = vpack.c.bf16 %v2060, %v2059
        %v2264 = vpack.c.bf16 %v2062, %v2061
        %v2265 = vpack.c.bf16 %v2064, %v2063
        %v2266 = vpack.c.bf16 %v2066, %v2065
        %v2267 = vpack.c.bf16 %v2068, %v2067
        %v2268 = vpack.c.bf16 %v2070, %v2069
        %v2269 = vpack.c.bf16 %v2072, %v2071
        %v2270 = vpack.c.bf16 %v2074, %v2073
        %v2271 = vpack.c.bf16 %v2076, %v2075
        %v2272 = vpack.c.bf16 %v2078, %v2077
        %v2273 = vpack.c.bf16 %v2080, %v2079
        %v2274 = vpack.c.bf16 %v2082, %v2081
        %v2275 = vpack.c.bf16 %v2084, %v2083
        %v2276 = vpack.c.bf16 %v2086, %v2085
        %v2277 = vpack.c.bf16 %v2088, %v2087
        %v2278 = vpack.c.bf16 %v2090, %v2089
        %v2279 = vpack.c.bf16 %v2092, %v2091
        %v2280 = vpack.c.bf16 %v2094, %v2093
        %v2281 = vpack.c.bf16 %v2096, %v2095
        %v2282 = vpack.c.bf16 %v2098, %v2097
        %v2283 = vpack.c.bf16 %v2100, %v2099
        %v2284 = vpack.c.bf16 %v2102, %v2101
        %v2285 = vpack.c.bf16 %v2104, %v2103
        %v2286 = vpack.c.bf16 %v2106, %v2105
        %v2287 = vpack.c.bf16 %v2108, %v2107
        %v2288 = vpack.c.bf16 %v2110, %v2109
        %v2289 = vpack.c.bf16 %v2112, %v2111
        %v2290 = vpack.c.bf16 %v2114, %v2113
        %v2291 = vpack.c.bf16 %v2116, %v2115
        %v2292 = vpack.c.bf16 %v2118, %v2117
        %v2293 = vpack.c.bf16 %v2120, %v2119
        %v2294 = vpack.c.bf16 %v2122, %v2121
        %v2295 = vpack.c.bf16 %v2124, %v2123
        %v2296 = vpack.c.bf16 %v2126, %v2125
        %v2297 = vpack.c.bf16 %v2128, %v2127
        %v2298 = vpack.c.bf16 %v2130, %v2129
        %v2299 = vpack.c.bf16 %v2132, %v2131
        %v2300 = vpack.c.bf16 %v2134, %v2133
        %v2301 = vpack.c.bf16 %v2136, %v2135
        %v2302 = vpack.c.bf16 %v2138, %v2137
        %v2303 = vpack.c.bf16 %v2140, %v2139
        %v2304 = vpack.c.bf16 %v2142, %v2141
        %v2305 = vpack.c.bf16 %v2144, %v2143
        %v2306 = vpack.c.bf16 %v2146, %v2145
        %v2307 = vpack.c.bf16 %v2148, %v2147
        %v2308 = vpack.c.bf16 %v2150, %v2149
        %v2309 = vpack.c.bf16 %v2152, %v2151
        %v2310 = vpack.c.bf16 %v2154, %v2153
        %v2311 = vpack.c.bf16 %v2156, %v2155
        %v2312 = vpack.c.bf16 %v2158, %v2157
        %v2313 = vpack.c.bf16 %v2160, %v2159
        %v2314 = vpack.c.bf16 %v2162, %v2161
        %v2315 = vpack.c.bf16 %v2164, %v2163
        %v2316 = vpack.c.bf16 %v2166, %v2165
        %v2317 = vpack.c.bf16 %v2168, %v2167
        %v2318 = vpack.c.bf16 %v2170, %v2169
        %v2319 = vpack.c.bf16 %v2172, %v2171
        %v2320 = vpack.c.bf16 %v2174, %v2173
        %v2321 = vpack.c.bf16 %v2176, %v2175
        %v2322 = vpack.c.bf16 %v2178, %v2177
        %v2323 = vpack.c.bf16 %v2180, %v2179
        %v2324 = vpack.c.bf16 %v2182, %v2181
        %v2325 = vpack.c.bf16 %v2184, %v2183
        %v2326 = vpack.c.bf16 %v2186, %v2185
        %v2327 = vpack.c.bf16 %v2188, %v2187
        %v2328 = vpack.c.bf16 %v2190, %v2189
        %v2329 = vpack.c.bf16 %v2192, %v2191
        %v2330 = vpack.c.bf16 %v2194, %v2193
        %v2331 = vpack.c.bf16 %v2196, %v2195
        %v2332 = vpack.c.bf16 %v2198, %v2197
        %v2333 = vpack.c.bf16 %v2200, %v2199
        %v2334 = vpack.c.bf16 %v2202, %v2201
        %v2335 = vpack.c.bf16 %v2204, %v2203
        %v2336 = vpack.c.bf16 %v2206, %v2205
        %v2337 = vpack.c.bf16 %v2208, %v2207
        %v2338 = vpack.c.bf16 %v2210, %v2209
        %v2339 = vld [vmem:[#allocation7] sm:$0xff]
        %v2340 = vld [vmem:[#allocation7 + $0x8] sm:$0xff]
        %v2341 = vld [vmem:[#allocation7 + $0x10] sm:$0xff]
        %v2342 = vld [vmem:[#allocation7 + $0x18] sm:$0xff]
        %v2343 = vld [vmem:[#allocation7 + $0x20] sm:$0xff]
        %v2344 = vld [vmem:[#allocation7 + $0x28] sm:$0xff]
        %v2345 = vld [vmem:[#allocation7 + $0x30] sm:$0xff]
        %v2346 = vld [vmem:[#allocation7 + $0x38] sm:$0xff]
        %v2347 = vld [vmem:[#allocation7 + $0x40] sm:$0xff]
        %v2348 = vld [vmem:[#allocation7 + $0x48] sm:$0xff]
        %v2349 = vld [vmem:[#allocation7 + $0x50] sm:$0xff]
        %v2350 = vld [vmem:[#allocation7 + $0x58] sm:$0xff]
        %v2351 = vld [vmem:[#allocation7 + $0x60] sm:$0xff]
        %v2352 = vld [vmem:[#allocation7 + $0x68] sm:$0xff]
        %v2353 = vld [vmem:[#allocation7 + $0x70] sm:$0xff]
        %v2354 = vld [vmem:[#allocation7 + $0x78] sm:$0xff]
        %v2355 = vld [vmem:[#allocation7 + $0x80] sm:$0xff]
        %v2356 = vld [vmem:[#allocation7 + $0x88] sm:$0xff]
        %v2357 = vld [vmem:[#allocation7 + $0x90] sm:$0xff]
        %v2358 = vld [vmem:[#allocation7 + $0x98] sm:$0xff]
        %v2359 = vld [vmem:[#allocation7 + $0xa0] sm:$0xff]
        %v2360 = vld [vmem:[#allocation7 + $0xa8] sm:$0xff]
        %v2361 = vld [vmem:[#allocation7 + $0xb0] sm:$0xff]
        %v2362 = vld [vmem:[#allocation7 + $0xb8] sm:$0xff]
        %v2363 = vld [vmem:[#allocation7 + $0xc0] sm:$0xff]
        %v2364 = vld [vmem:[#allocation7 + $0xc8] sm:$0xff]
        %v2365 = vld [vmem:[#allocation7 + $0xd0] sm:$0xff]
        %v2366 = vld [vmem:[#allocation7 + $0xd8] sm:$0xff]
        %v2367 = vld [vmem:[#allocation7 + $0xe0] sm:$0xff]
        %v2368 = vld [vmem:[#allocation7 + $0xe8] sm:$0xff]
        %v2369 = vld [vmem:[#allocation7 + $0xf0] sm:$0xff]
        %v2370 = vld [vmem:[#allocation7 + $0xf8] sm:$0xff]
        %v2371 = vld [vmem:[#allocation7 + $0x100] sm:$0xff]
        %v2372 = vld [vmem:[#allocation7 + $0x108] sm:$0xff]
        %v2373 = vld [vmem:[#allocation7 + $0x110] sm:$0xff]
        %v2374 = vld [vmem:[#allocation7 + $0x118] sm:$0xff]
        %v2375 = vld [vmem:[#allocation7 + $0x120] sm:$0xff]
        %v2376 = vld [vmem:[#allocation7 + $0x128] sm:$0xff]
        %v2377 = vld [vmem:[#allocation7 + $0x130] sm:$0xff]
        %v2378 = vld [vmem:[#allocation7 + $0x138] sm:$0xff]
        %v2379 = vld [vmem:[#allocation7 + $0x140] sm:$0xff]
        %v2380 = vld [vmem:[#allocation7 + $0x148] sm:$0xff]
        %v2381 = vld [vmem:[#allocation7 + $0x150] sm:$0xff]
        %v2382 = vld [vmem:[#allocation7 + $0x158] sm:$0xff]
        %v2383 = vld [vmem:[#allocation7 + $0x160] sm:$0xff]
        %v2384 = vld [vmem:[#allocation7 + $0x168] sm:$0xff]
        %v2385 = vld [vmem:[#allocation7 + $0x170] sm:$0xff]
        %v2386 = vld [vmem:[#allocation7 + $0x178] sm:$0xff]
        %v2387 = vld [vmem:[#allocation7 + $0x180] sm:$0xff]
        %v2388 = vld [vmem:[#allocation7 + $0x188] sm:$0xff]
        %v2389 = vld [vmem:[#allocation7 + $0x190] sm:$0xff]
        %v2390 = vld [vmem:[#allocation7 + $0x198] sm:$0xff]
        %v2391 = vld [vmem:[#allocation7 + $0x1a0] sm:$0xff]
        %v2392 = vld [vmem:[#allocation7 + $0x1a8] sm:$0xff]
        %v2393 = vld [vmem:[#allocation7 + $0x1b0] sm:$0xff]
        %v2394 = vld [vmem:[#allocation7 + $0x1b8] sm:$0xff]
        %v2395 = vld [vmem:[#allocation7 + $0x1c0] sm:$0xff]
        %v2396 = vld [vmem:[#allocation7 + $0x1c8] sm:$0xff]
        %v2397 = vld [vmem:[#allocation7 + $0x1d0] sm:$0xff]
        %v2398 = vld [vmem:[#allocation7 + $0x1d8] sm:$0xff]
        %v2399 = vld [vmem:[#allocation7 + $0x1e0] sm:$0xff]
        %v2400 = vld [vmem:[#allocation7 + $0x1e8] sm:$0xff]
        %v2401 = vld [vmem:[#allocation7 + $0x1f0] sm:$0xff]
        %v2402 = vld [vmem:[#allocation7 + $0x1f8] sm:$0xff]
        %v2403 = vld [vmem:[#allocation7 + $0x200] sm:$0xff]
        %v2404 = vld [vmem:[#allocation7 + $0x208] sm:$0xff]
        %v2405 = vld [vmem:[#allocation7 + $0x210] sm:$0xff]
        %v2406 = vld [vmem:[#allocation7 + $0x218] sm:$0xff]
        %v2407 = vld [vmem:[#allocation7 + $0x220] sm:$0xff]
        %v2408 = vld [vmem:[#allocation7 + $0x228] sm:$0xff]
        %v2409 = vld [vmem:[#allocation7 + $0x230] sm:$0xff]
        %v2410 = vld [vmem:[#allocation7 + $0x238] sm:$0xff]
        %v2411 = vld [vmem:[#allocation7 + $0x240] sm:$0xff]
        %v2412 = vld [vmem:[#allocation7 + $0x248] sm:$0xff]
        %v2413 = vld [vmem:[#allocation7 + $0x250] sm:$0xff]
        %v2414 = vld [vmem:[#allocation7 + $0x258] sm:$0xff]
        %v2415 = vld [vmem:[#allocation7 + $0x260] sm:$0xff]
        %v2416 = vld [vmem:[#allocation7 + $0x268] sm:$0xff]
        %v2417 = vld [vmem:[#allocation7 + $0x270] sm:$0xff]
        %v2418 = vld [vmem:[#allocation7 + $0x278] sm:$0xff]
        %v2419 = vld [vmem:[#allocation7 + $0x280] sm:$0xff]
        %v2420 = vld [vmem:[#allocation7 + $0x288] sm:$0xff]
        %v2421 = vld [vmem:[#allocation7 + $0x290] sm:$0xff]
        %v2422 = vld [vmem:[#allocation7 + $0x298] sm:$0xff]
        %v2423 = vld [vmem:[#allocation7 + $0x2a0] sm:$0xff]
        %v2424 = vld [vmem:[#allocation7 + $0x2a8] sm:$0xff]
        %v2425 = vld [vmem:[#allocation7 + $0x2b0] sm:$0xff]
        %v2426 = vld [vmem:[#allocation7 + $0x2b8] sm:$0xff]
        %v2427 = vld [vmem:[#allocation7 + $0x2c0] sm:$0xff]
        %v2428 = vld [vmem:[#allocation7 + $0x2c8] sm:$0xff]
        %v2429 = vld [vmem:[#allocation7 + $0x2d0] sm:$0xff]
        %v2430 = vld [vmem:[#allocation7 + $0x2d8] sm:$0xff]
        %v2431 = vld [vmem:[#allocation7 + $0x2e0] sm:$0xff]
        %v2432 = vld [vmem:[#allocation7 + $0x2e8] sm:$0xff]
        %v2433 = vld [vmem:[#allocation7 + $0x2f0] sm:$0xff]
        %v2434 = vld [vmem:[#allocation7 + $0x2f8] sm:$0xff]
        %v2435 = vld [vmem:[#allocation7 + $0x300] sm:$0xff]
        %v2436 = vld [vmem:[#allocation7 + $0x308] sm:$0xff]
        %v2437 = vld [vmem:[#allocation7 + $0x310] sm:$0xff]
        %v2438 = vld [vmem:[#allocation7 + $0x318] sm:$0xff]
        %v2439 = vld [vmem:[#allocation7 + $0x320] sm:$0xff]
        %v2440 = vld [vmem:[#allocation7 + $0x328] sm:$0xff]
        %v2441 = vld [vmem:[#allocation7 + $0x330] sm:$0xff]
        %v2442 = vld [vmem:[#allocation7 + $0x338] sm:$0xff]
        %v2443 = vld [vmem:[#allocation7 + $0x340] sm:$0xff]
        %v2444 = vld [vmem:[#allocation7 + $0x348] sm:$0xff]
        %v2445 = vld [vmem:[#allocation7 + $0x350] sm:$0xff]
        %v2446 = vld [vmem:[#allocation7 + $0x358] sm:$0xff]
        %v2447 = vld [vmem:[#allocation7 + $0x360] sm:$0xff]
        %v2448 = vld [vmem:[#allocation7 + $0x368] sm:$0xff]
        %v2449 = vld [vmem:[#allocation7 + $0x370] sm:$0xff]
        %v2450 = vld [vmem:[#allocation7 + $0x378] sm:$0xff]
        %v2451 = vld [vmem:[#allocation7 + $0x380] sm:$0xff]
        %v2452 = vld [vmem:[#allocation7 + $0x388] sm:$0xff]
        %v2453 = vld [vmem:[#allocation7 + $0x390] sm:$0xff]
        %v2454 = vld [vmem:[#allocation7 + $0x398] sm:$0xff]
        %v2455 = vld [vmem:[#allocation7 + $0x3a0] sm:$0xff]
        %v2456 = vld [vmem:[#allocation7 + $0x3a8] sm:$0xff]
        %v2457 = vld [vmem:[#allocation7 + $0x3b0] sm:$0xff]
        %v2458 = vld [vmem:[#allocation7 + $0x3b8] sm:$0xff]
        %v2459 = vld [vmem:[#allocation7 + $0x3c0] sm:$0xff]
        %v2460 = vld [vmem:[#allocation7 + $0x3c8] sm:$0xff]
        %v2461 = vld [vmem:[#allocation7 + $0x3d0] sm:$0xff]
        %v2462 = vld [vmem:[#allocation7 + $0x3d8] sm:$0xff]
        %v2463 = vld [vmem:[#allocation7 + $0x3e0] sm:$0xff]
        %v2464 = vld [vmem:[#allocation7 + $0x3e8] sm:$0xff]
        %v2465 = vld [vmem:[#allocation7 + $0x3f0] sm:$0xff]
        %v2466 = vld [vmem:[#allocation7 + $0x3f8] sm:$0xff]
        %v2595 = vunpack.c.l.b16 %v2211
        %v2596 = vunpack.c.h.b16 %v2211
        %v2597 = vunpack.c.l.b16 %v2212
        %v2598 = vunpack.c.h.b16 %v2212
        %v2599 = vunpack.c.l.b16 %v2213
        %v2600 = vunpack.c.h.b16 %v2213
        %v2601 = vunpack.c.l.b16 %v2214
        %v2602 = vunpack.c.h.b16 %v2214
        %v2603 = vunpack.c.l.b16 %v2215
        %v2604 = vunpack.c.h.b16 %v2215
        %v2605 = vunpack.c.l.b16 %v2216
        %v2606 = vunpack.c.h.b16 %v2216
        %v2607 = vunpack.c.l.b16 %v2217
        %v2608 = vunpack.c.h.b16 %v2217
        %v2609 = vunpack.c.l.b16 %v2218
        %v2610 = vunpack.c.h.b16 %v2218
        %v2611 = vunpack.c.l.b16 %v2219
        %v2612 = vunpack.c.h.b16 %v2219
        %v2613 = vunpack.c.l.b16 %v2220
        %v2614 = vunpack.c.h.b16 %v2220
        %v2615 = vunpack.c.l.b16 %v2221
        %v2616 = vunpack.c.h.b16 %v2221
        %v2617 = vunpack.c.l.b16 %v2222
        %v2618 = vunpack.c.h.b16 %v2222
        %v2619 = vunpack.c.l.b16 %v2223
        %v2620 = vunpack.c.h.b16 %v2223
        %v2621 = vunpack.c.l.b16 %v2224
        %v2622 = vunpack.c.h.b16 %v2224
        %v2623 = vunpack.c.l.b16 %v2225
        %v2624 = vunpack.c.h.b16 %v2225
        %v2625 = vunpack.c.l.b16 %v2226
        %v2626 = vunpack.c.h.b16 %v2226
        %v2627 = vunpack.c.l.b16 %v2227
        %v2628 = vunpack.c.h.b16 %v2227
        %v2629 = vunpack.c.l.b16 %v2228
        %v2630 = vunpack.c.h.b16 %v2228
        %v2631 = vunpack.c.l.b16 %v2229
        %v2632 = vunpack.c.h.b16 %v2229
        %v2633 = vunpack.c.l.b16 %v2230
        %v2634 = vunpack.c.h.b16 %v2230
        %v2635 = vunpack.c.l.b16 %v2231
        %v2636 = vunpack.c.h.b16 %v2231
        %v2637 = vunpack.c.l.b16 %v2232
        %v2638 = vunpack.c.h.b16 %v2232
        %v2639 = vunpack.c.l.b16 %v2233
        %v2640 = vunpack.c.h.b16 %v2233
        %v2641 = vunpack.c.l.b16 %v2234
        %v2642 = vunpack.c.h.b16 %v2234
        %v2643 = vunpack.c.l.b16 %v2235
        %v2644 = vunpack.c.h.b16 %v2235
        %v2645 = vunpack.c.l.b16 %v2236
        %v2646 = vunpack.c.h.b16 %v2236
        %v2647 = vunpack.c.l.b16 %v2237
        %v2648 = vunpack.c.h.b16 %v2237
        %v2649 = vunpack.c.l.b16 %v2238
        %v2650 = vunpack.c.h.b16 %v2238
        %v2651 = vunpack.c.l.b16 %v2239
        %v2652 = vunpack.c.h.b16 %v2239
        %v2653 = vunpack.c.l.b16 %v2240
        %v2654 = vunpack.c.h.b16 %v2240
        %v2655 = vunpack.c.l.b16 %v2241
        %v2656 = vunpack.c.h.b16 %v2241
        %v2657 = vunpack.c.l.b16 %v2242
        %v2658 = vunpack.c.h.b16 %v2242
        %v2659 = vunpack.c.l.b16 %v2243
        %v2660 = vunpack.c.h.b16 %v2243
        %v2661 = vunpack.c.l.b16 %v2244
        %v2662 = vunpack.c.h.b16 %v2244
        %v2663 = vunpack.c.l.b16 %v2245
        %v2664 = vunpack.c.h.b16 %v2245
        %v2665 = vunpack.c.l.b16 %v2246
        %v2666 = vunpack.c.h.b16 %v2246
        %v2667 = vunpack.c.l.b16 %v2247
        %v2668 = vunpack.c.h.b16 %v2247
        %v2669 = vunpack.c.l.b16 %v2248
        %v2670 = vunpack.c.h.b16 %v2248
        %v2671 = vunpack.c.l.b16 %v2249
        %v2672 = vunpack.c.h.b16 %v2249
        %v2673 = vunpack.c.l.b16 %v2250
        %v2674 = vunpack.c.h.b16 %v2250
        %v2675 = vunpack.c.l.b16 %v2251
        %v2676 = vunpack.c.h.b16 %v2251
        %v2677 = vunpack.c.l.b16 %v2252
        %v2678 = vunpack.c.h.b16 %v2252
        %v2679 = vunpack.c.l.b16 %v2253
        %v2680 = vunpack.c.h.b16 %v2253
        %v2681 = vunpack.c.l.b16 %v2254
        %v2682 = vunpack.c.h.b16 %v2254
        %v2683 = vunpack.c.l.b16 %v2255
        %v2684 = vunpack.c.h.b16 %v2255
        %v2685 = vunpack.c.l.b16 %v2256
        %v2686 = vunpack.c.h.b16 %v2256
        %v2687 = vunpack.c.l.b16 %v2257
        %v2688 = vunpack.c.h.b16 %v2257
        %v2689 = vunpack.c.l.b16 %v2258
        %v2690 = vunpack.c.h.b16 %v2258
        %v2691 = vunpack.c.l.b16 %v2259
        %v2692 = vunpack.c.h.b16 %v2259
        %v2693 = vunpack.c.l.b16 %v2260
        %v2694 = vunpack.c.h.b16 %v2260
        %v2695 = vunpack.c.l.b16 %v2261
        %v2696 = vunpack.c.h.b16 %v2261
        %v2697 = vunpack.c.l.b16 %v2262
        %v2698 = vunpack.c.h.b16 %v2262
        %v2699 = vunpack.c.l.b16 %v2263
        %v2700 = vunpack.c.h.b16 %v2263
        %v2701 = vunpack.c.l.b16 %v2264
        %v2702 = vunpack.c.h.b16 %v2264
        %v2703 = vunpack.c.l.b16 %v2265
        %v2704 = vunpack.c.h.b16 %v2265
        %v2705 = vunpack.c.l.b16 %v2266
        %v2706 = vunpack.c.h.b16 %v2266
        %v2707 = vunpack.c.l.b16 %v2267
        %v2708 = vunpack.c.h.b16 %v2267
        %v2709 = vunpack.c.l.b16 %v2268
        %v2710 = vunpack.c.h.b16 %v2268
        %v2711 = vunpack.c.l.b16 %v2269
        %v2712 = vunpack.c.h.b16 %v2269
        %v2713 = vunpack.c.l.b16 %v2270
        %v2714 = vunpack.c.h.b16 %v2270
        %v2715 = vunpack.c.l.b16 %v2271
        %v2716 = vunpack.c.h.b16 %v2271
        %v2717 = vunpack.c.l.b16 %v2272
        %v2718 = vunpack.c.h.b16 %v2272
        %v2719 = vunpack.c.l.b16 %v2273
        %v2720 = vunpack.c.h.b16 %v2273
        %v2721 = vunpack.c.l.b16 %v2274
        %v2722 = vunpack.c.h.b16 %v2274
        %v2723 = vunpack.c.l.b16 %v2275
        %v2724 = vunpack.c.h.b16 %v2275
        %v2725 = vunpack.c.l.b16 %v2276
        %v2726 = vunpack.c.h.b16 %v2276
        %v2727 = vunpack.c.l.b16 %v2277
        %v2728 = vunpack.c.h.b16 %v2277
        %v2729 = vunpack.c.l.b16 %v2278
        %v2730 = vunpack.c.h.b16 %v2278
        %v2731 = vunpack.c.l.b16 %v2279
        %v2732 = vunpack.c.h.b16 %v2279
        %v2733 = vunpack.c.l.b16 %v2280
        %v2734 = vunpack.c.h.b16 %v2280
        %v2735 = vunpack.c.l.b16 %v2281
        %v2736 = vunpack.c.h.b16 %v2281
        %v2737 = vunpack.c.l.b16 %v2282
        %v2738 = vunpack.c.h.b16 %v2282
        %v2739 = vunpack.c.l.b16 %v2283
        %v2740 = vunpack.c.h.b16 %v2283
        %v2741 = vunpack.c.l.b16 %v2284
        %v2742 = vunpack.c.h.b16 %v2284
        %v2743 = vunpack.c.l.b16 %v2285
        %v2744 = vunpack.c.h.b16 %v2285
        %v2745 = vunpack.c.l.b16 %v2286
        %v2746 = vunpack.c.h.b16 %v2286
        %v2747 = vunpack.c.l.b16 %v2287
        %v2748 = vunpack.c.h.b16 %v2287
        %v2749 = vunpack.c.l.b16 %v2288
        %v2750 = vunpack.c.h.b16 %v2288
        %v2751 = vunpack.c.l.b16 %v2289
        %v2752 = vunpack.c.h.b16 %v2289
        %v2753 = vunpack.c.l.b16 %v2290
        %v2754 = vunpack.c.h.b16 %v2290
        %v2755 = vunpack.c.l.b16 %v2291
        %v2756 = vunpack.c.h.b16 %v2291
        %v2757 = vunpack.c.l.b16 %v2292
        %v2758 = vunpack.c.h.b16 %v2292
        %v2759 = vunpack.c.l.b16 %v2293
        %v2760 = vunpack.c.h.b16 %v2293
        %v2761 = vunpack.c.l.b16 %v2294
        %v2762 = vunpack.c.h.b16 %v2294
        %v2763 = vunpack.c.l.b16 %v2295
        %v2764 = vunpack.c.h.b16 %v2295
        %v2765 = vunpack.c.l.b16 %v2296
        %v2766 = vunpack.c.h.b16 %v2296
        %v2767 = vunpack.c.l.b16 %v2297
        %v2768 = vunpack.c.h.b16 %v2297
        %v2769 = vunpack.c.l.b16 %v2298
        %v2770 = vunpack.c.h.b16 %v2298
        %v2771 = vunpack.c.l.b16 %v2299
        %v2772 = vunpack.c.h.b16 %v2299
        %v2773 = vunpack.c.l.b16 %v2300
        %v2774 = vunpack.c.h.b16 %v2300
        %v2775 = vunpack.c.l.b16 %v2301
        %v2776 = vunpack.c.h.b16 %v2301
        %v2777 = vunpack.c.l.b16 %v2302
        %v2778 = vunpack.c.h.b16 %v2302
        %v2779 = vunpack.c.l.b16 %v2303
        %v2780 = vunpack.c.h.b16 %v2303
        %v2781 = vunpack.c.l.b16 %v2304
        %v2782 = vunpack.c.h.b16 %v2304
        %v2783 = vunpack.c.l.b16 %v2305
        %v2784 = vunpack.c.h.b16 %v2305
        %v2785 = vunpack.c.l.b16 %v2306
        %v2786 = vunpack.c.h.b16 %v2306
        %v2787 = vunpack.c.l.b16 %v2307
        %v2788 = vunpack.c.h.b16 %v2307
        %v2789 = vunpack.c.l.b16 %v2308
        %v2790 = vunpack.c.h.b16 %v2308
        %v2791 = vunpack.c.l.b16 %v2309
        %v2792 = vunpack.c.h.b16 %v2309
        %v2793 = vunpack.c.l.b16 %v2310
        %v2794 = vunpack.c.h.b16 %v2310
        %v2795 = vunpack.c.l.b16 %v2311
        %v2796 = vunpack.c.h.b16 %v2311
        %v2797 = vunpack.c.l.b16 %v2312
        %v2798 = vunpack.c.h.b16 %v2312
        %v2799 = vunpack.c.l.b16 %v2313
        %v2800 = vunpack.c.h.b16 %v2313
        %v2801 = vunpack.c.l.b16 %v2314
        %v2802 = vunpack.c.h.b16 %v2314
        %v2803 = vunpack.c.l.b16 %v2315
        %v2804 = vunpack.c.h.b16 %v2315
        %v2805 = vunpack.c.l.b16 %v2316
        %v2806 = vunpack.c.h.b16 %v2316
        %v2807 = vunpack.c.l.b16 %v2317
        %v2808 = vunpack.c.h.b16 %v2317
        %v2809 = vunpack.c.l.b16 %v2318
        %v2810 = vunpack.c.h.b16 %v2318
        %v2811 = vunpack.c.l.b16 %v2319
        %v2812 = vunpack.c.h.b16 %v2319
        %v2813 = vunpack.c.l.b16 %v2320
        %v2814 = vunpack.c.h.b16 %v2320
        %v2815 = vunpack.c.l.b16 %v2321
        %v2816 = vunpack.c.h.b16 %v2321
        %v2817 = vunpack.c.l.b16 %v2322
        %v2818 = vunpack.c.h.b16 %v2322
        %v2819 = vunpack.c.l.b16 %v2323
        %v2820 = vunpack.c.h.b16 %v2323
        %v2821 = vunpack.c.l.b16 %v2324
        %v2822 = vunpack.c.h.b16 %v2324
        %v2823 = vunpack.c.l.b16 %v2325
        %v2824 = vunpack.c.h.b16 %v2325
        %v2825 = vunpack.c.l.b16 %v2326
        %v2826 = vunpack.c.h.b16 %v2326
        %v2827 = vunpack.c.l.b16 %v2327
        %v2828 = vunpack.c.h.b16 %v2327
        %v2829 = vunpack.c.l.b16 %v2328
        %v2830 = vunpack.c.h.b16 %v2328
        %v2831 = vunpack.c.l.b16 %v2329
        %v2832 = vunpack.c.h.b16 %v2329
        %v2833 = vunpack.c.l.b16 %v2330
        %v2834 = vunpack.c.h.b16 %v2330
        %v2835 = vunpack.c.l.b16 %v2331
        %v2836 = vunpack.c.h.b16 %v2331
        %v2837 = vunpack.c.l.b16 %v2332
        %v2838 = vunpack.c.h.b16 %v2332
        %v2839 = vunpack.c.l.b16 %v2333
        %v2840 = vunpack.c.h.b16 %v2333
        %v2841 = vunpack.c.l.b16 %v2334
        %v2842 = vunpack.c.h.b16 %v2334
        %v2843 = vunpack.c.l.b16 %v2335
        %v2844 = vunpack.c.h.b16 %v2335
        %v2845 = vunpack.c.l.b16 %v2336
        %v2846 = vunpack.c.h.b16 %v2336
        %v2847 = vunpack.c.l.b16 %v2337
        %v2848 = vunpack.c.h.b16 %v2337
        %v2849 = vunpack.c.l.b16 %v2338
        %v2850 = vunpack.c.h.b16 %v2338
        %v2851 = vpack.c.b16 %v2603, %v2595
        %v2852 = vpack.c.b16 %v2604, %v2596
        %v2853 = vpack.c.b16 %v2605, %v2597
        %v2854 = vpack.c.b16 %v2606, %v2598
        %v2855 = vpack.c.b16 %v2607, %v2599
        %v2856 = vpack.c.b16 %v2608, %v2600
        %v2857 = vpack.c.b16 %v2609, %v2601
        %v2858 = vpack.c.b16 %v2610, %v2602
        %v2859 = vpack.c.b16 %v2619, %v2611
        %v2860 = vpack.c.b16 %v2620, %v2612
        %v2861 = vpack.c.b16 %v2621, %v2613
        %v2862 = vpack.c.b16 %v2622, %v2614
        %v2863 = vpack.c.b16 %v2623, %v2615
        %v2864 = vpack.c.b16 %v2624, %v2616
        %v2865 = vpack.c.b16 %v2625, %v2617
        %v2866 = vpack.c.b16 %v2626, %v2618
        %v2867 = vpack.c.b16 %v2635, %v2627
        %v2868 = vpack.c.b16 %v2636, %v2628
        %v2869 = vpack.c.b16 %v2637, %v2629
        %v2870 = vpack.c.b16 %v2638, %v2630
        %v2871 = vpack.c.b16 %v2639, %v2631
        %v2872 = vpack.c.b16 %v2640, %v2632
        %v2873 = vpack.c.b16 %v2641, %v2633
        %v2874 = vpack.c.b16 %v2642, %v2634
        %v2875 = vpack.c.b16 %v2651, %v2643
        %v2876 = vpack.c.b16 %v2652, %v2644
        %v2877 = vpack.c.b16 %v2653, %v2645
        %v2878 = vpack.c.b16 %v2654, %v2646
        %v2879 = vpack.c.b16 %v2655, %v2647
        %v2880 = vpack.c.b16 %v2656, %v2648
        %v2881 = vpack.c.b16 %v2657, %v2649
        %v2882 = vpack.c.b16 %v2658, %v2650
        %v2883 = vpack.c.b16 %v2667, %v2659
        %v2884 = vpack.c.b16 %v2668, %v2660
        %v2885 = vpack.c.b16 %v2669, %v2661
        %v2886 = vpack.c.b16 %v2670, %v2662
        %v2887 = vpack.c.b16 %v2671, %v2663
        %v2888 = vpack.c.b16 %v2672, %v2664
        %v2889 = vpack.c.b16 %v2673, %v2665
        %v2890 = vpack.c.b16 %v2674, %v2666
        %v2891 = vpack.c.b16 %v2683, %v2675
        %v2892 = vpack.c.b16 %v2684, %v2676
        %v2893 = vpack.c.b16 %v2685, %v2677
        %v2894 = vpack.c.b16 %v2686, %v2678
        %v2895 = vpack.c.b16 %v2687, %v2679
        %v2896 = vpack.c.b16 %v2688, %v2680
        %v2897 = vpack.c.b16 %v2689, %v2681
        %v2898 = vpack.c.b16 %v2690, %v2682
        %v2899 = vpack.c.b16 %v2699, %v2691
        %v2900 = vpack.c.b16 %v2700, %v2692
        %v2901 = vpack.c.b16 %v2701, %v2693
        %v2902 = vpack.c.b16 %v2702, %v2694
        %v2903 = vpack.c.b16 %v2703, %v2695
        %v2904 = vpack.c.b16 %v2704, %v2696
        %v2905 = vpack.c.b16 %v2705, %v2697
        %v2906 = vpack.c.b16 %v2706, %v2698
        %v2907 = vpack.c.b16 %v2715, %v2707
        %v2908 = vpack.c.b16 %v2716, %v2708
        %v2909 = vpack.c.b16 %v2717, %v2709
        %v2910 = vpack.c.b16 %v2718, %v2710
        %v2911 = vpack.c.b16 %v2719, %v2711
        %v2912 = vpack.c.b16 %v2720, %v2712
        %v2913 = vpack.c.b16 %v2721, %v2713
        %v2914 = vpack.c.b16 %v2722, %v2714
        %v2915 = vpack.c.b16 %v2731, %v2723
        %v2916 = vpack.c.b16 %v2732, %v2724
        %v2917 = vpack.c.b16 %v2733, %v2725
        %v2918 = vpack.c.b16 %v2734, %v2726
        %v2919 = vpack.c.b16 %v2735, %v2727
        %v2920 = vpack.c.b16 %v2736, %v2728
        %v2921 = vpack.c.b16 %v2737, %v2729
        %v2922 = vpack.c.b16 %v2738, %v2730
        %v2923 = vpack.c.b16 %v2747, %v2739
        %v2924 = vpack.c.b16 %v2748, %v2740
        %v2925 = vpack.c.b16 %v2749, %v2741
        %v2926 = vpack.c.b16 %v2750, %v2742
        %v2927 = vpack.c.b16 %v2751, %v2743
        %v2928 = vpack.c.b16 %v2752, %v2744
        %v2929 = vpack.c.b16 %v2753, %v2745
        %v2930 = vpack.c.b16 %v2754, %v2746
        %v2931 = vpack.c.b16 %v2763, %v2755
        %v2932 = vpack.c.b16 %v2764, %v2756
        %v2933 = vpack.c.b16 %v2765, %v2757
        %v2934 = vpack.c.b16 %v2766, %v2758
        %v2935 = vpack.c.b16 %v2767, %v2759
        %v2936 = vpack.c.b16 %v2768, %v2760
        %v2937 = vpack.c.b16 %v2769, %v2761
        %v2938 = vpack.c.b16 %v2770, %v2762
        %v2939 = vpack.c.b16 %v2779, %v2771
        %v2940 = vpack.c.b16 %v2780, %v2772
        %v2941 = vpack.c.b16 %v2781, %v2773
        %v2942 = vpack.c.b16 %v2782, %v2774
        %v2943 = vpack.c.b16 %v2783, %v2775
        %v2944 = vpack.c.b16 %v2784, %v2776
        %v2945 = vpack.c.b16 %v2785, %v2777
        %v2946 = vpack.c.b16 %v2786, %v2778
        %v2947 = vpack.c.b16 %v2795, %v2787
        %v2948 = vpack.c.b16 %v2796, %v2788
        %v2949 = vpack.c.b16 %v2797, %v2789
        %v2950 = vpack.c.b16 %v2798, %v2790
        %v2951 = vpack.c.b16 %v2799, %v2791
        %v2952 = vpack.c.b16 %v2800, %v2792
        %v2953 = vpack.c.b16 %v2801, %v2793
        %v2954 = vpack.c.b16 %v2802, %v2794
        %v2955 = vpack.c.b16 %v2811, %v2803
        %v2956 = vpack.c.b16 %v2812, %v2804
        %v2957 = vpack.c.b16 %v2813, %v2805
        %v2958 = vpack.c.b16 %v2814, %v2806
        %v2959 = vpack.c.b16 %v2815, %v2807
        %v2960 = vpack.c.b16 %v2816, %v2808
        %v2961 = vpack.c.b16 %v2817, %v2809
        %v2962 = vpack.c.b16 %v2818, %v2810
        %v2963 = vpack.c.b16 %v2827, %v2819
        %v2964 = vpack.c.b16 %v2828, %v2820
        %v2965 = vpack.c.b16 %v2829, %v2821
        %v2966 = vpack.c.b16 %v2830, %v2822
        %v2967 = vpack.c.b16 %v2831, %v2823
        %v2968 = vpack.c.b16 %v2832, %v2824
        %v2969 = vpack.c.b16 %v2833, %v2825
        %v2970 = vpack.c.b16 %v2834, %v2826
        %v2971 = vpack.c.b16 %v2843, %v2835
        %v2972 = vpack.c.b16 %v2844, %v2836
        %v2973 = vpack.c.b16 %v2845, %v2837
        %v2974 = vpack.c.b16 %v2846, %v2838
        %v2975 = vpack.c.b16 %v2847, %v2839
        %v2976 = vpack.c.b16 %v2848, %v2840
        %v2977 = vpack.c.b16 %v2849, %v2841
        %v2978 = vpack.c.b16 %v2850, %v2842
        %v3235 = vunpack.c.l.b16 %v2339
        %v3236 = vunpack.c.h.b16 %v2339
        %v3237 = vunpack.c.l.b16 %v2340
        %v3238 = vunpack.c.h.b16 %v2340
        %v3239 = vunpack.c.l.b16 %v2341
        %v3240 = vunpack.c.h.b16 %v2341
        %v3241 = vunpack.c.l.b16 %v2342
        %v3242 = vunpack.c.h.b16 %v2342
        %v3243 = vunpack.c.l.b16 %v2343
        %v3244 = vunpack.c.h.b16 %v2343
        %v3245 = vunpack.c.l.b16 %v2344
        %v3246 = vunpack.c.h.b16 %v2344
        %v3247 = vunpack.c.l.b16 %v2345
        %v3248 = vunpack.c.h.b16 %v2345
        %v3249 = vunpack.c.l.b16 %v2346
        %v3250 = vunpack.c.h.b16 %v2346
        %v3251 = vunpack.c.l.b16 %v2347
        %v3252 = vunpack.c.h.b16 %v2347
        %v3253 = vunpack.c.l.b16 %v2348
        %v3254 = vunpack.c.h.b16 %v2348
        %v3255 = vunpack.c.l.b16 %v2349
        %v3256 = vunpack.c.h.b16 %v2349
        %v3257 = vunpack.c.l.b16 %v2350
        %v3258 = vunpack.c.h.b16 %v2350
        %v3259 = vunpack.c.l.b16 %v2351
        %v3260 = vunpack.c.h.b16 %v2351
        %v3261 = vunpack.c.l.b16 %v2352
        %v3262 = vunpack.c.h.b16 %v2352
        %v3263 = vunpack.c.l.b16 %v2353
        %v3264 = vunpack.c.h.b16 %v2353
        %v3265 = vunpack.c.l.b16 %v2354
        %v3266 = vunpack.c.h.b16 %v2354
        %v3267 = vunpack.c.l.b16 %v2355
        %v3268 = vunpack.c.h.b16 %v2355
        %v3269 = vunpack.c.l.b16 %v2356
        %v3270 = vunpack.c.h.b16 %v2356
        %v3271 = vunpack.c.l.b16 %v2357
        %v3272 = vunpack.c.h.b16 %v2357
        %v3273 = vunpack.c.l.b16 %v2358
        %v3274 = vunpack.c.h.b16 %v2358
        %v3275 = vunpack.c.l.b16 %v2359
        %v3276 = vunpack.c.h.b16 %v2359
        %v3277 = vunpack.c.l.b16 %v2360
        %v3278 = vunpack.c.h.b16 %v2360
        %v3279 = vunpack.c.l.b16 %v2361
        %v3280 = vunpack.c.h.b16 %v2361
        %v3281 = vunpack.c.l.b16 %v2362
        %v3282 = vunpack.c.h.b16 %v2362
        %v3283 = vunpack.c.l.b16 %v2363
        %v3284 = vunpack.c.h.b16 %v2363
        %v3285 = vunpack.c.l.b16 %v2364
        %v3286 = vunpack.c.h.b16 %v2364
        %v3287 = vunpack.c.l.b16 %v2365
        %v3288 = vunpack.c.h.b16 %v2365
        %v3289 = vunpack.c.l.b16 %v2366
        %v3290 = vunpack.c.h.b16 %v2366
        %v3291 = vunpack.c.l.b16 %v2367
        %v3292 = vunpack.c.h.b16 %v2367
        %v3293 = vunpack.c.l.b16 %v2368
        %v3294 = vunpack.c.h.b16 %v2368
        %v3295 = vunpack.c.l.b16 %v2369
        %v3296 = vunpack.c.h.b16 %v2369
        %v3297 = vunpack.c.l.b16 %v2370
        %v3298 = vunpack.c.h.b16 %v2370
        %v3299 = vunpack.c.l.b16 %v2371
        %v3300 = vunpack.c.h.b16 %v2371
        %v3301 = vunpack.c.l.b16 %v2372
        %v3302 = vunpack.c.h.b16 %v2372
        %v3303 = vunpack.c.l.b16 %v2373
        %v3304 = vunpack.c.h.b16 %v2373
        %v3305 = vunpack.c.l.b16 %v2374
        %v3306 = vunpack.c.h.b16 %v2374
        %v3307 = vunpack.c.l.b16 %v2375
        %v3308 = vunpack.c.h.b16 %v2375
        %v3309 = vunpack.c.l.b16 %v2376
        %v3310 = vunpack.c.h.b16 %v2376
        %v3311 = vunpack.c.l.b16 %v2377
        %v3312 = vunpack.c.h.b16 %v2377
        %v3313 = vunpack.c.l.b16 %v2378
        %v3314 = vunpack.c.h.b16 %v2378
        %v3315 = vunpack.c.l.b16 %v2379
        %v3316 = vunpack.c.h.b16 %v2379
        %v3317 = vunpack.c.l.b16 %v2380
        %v3318 = vunpack.c.h.b16 %v2380
        %v3319 = vunpack.c.l.b16 %v2381
        %v3320 = vunpack.c.h.b16 %v2381
        %v3321 = vunpack.c.l.b16 %v2382
        %v3322 = vunpack.c.h.b16 %v2382
        %v3323 = vunpack.c.l.b16 %v2383
        %v3324 = vunpack.c.h.b16 %v2383
        %v3325 = vunpack.c.l.b16 %v2384
        %v3326 = vunpack.c.h.b16 %v2384
        %v3327 = vunpack.c.l.b16 %v2385
        %v3328 = vunpack.c.h.b16 %v2385
        %v3329 = vunpack.c.l.b16 %v2386
        %v3330 = vunpack.c.h.b16 %v2386
        %v3331 = vunpack.c.l.b16 %v2387
        %v3332 = vunpack.c.h.b16 %v2387
        %v3333 = vunpack.c.l.b16 %v2388
        %v3334 = vunpack.c.h.b16 %v2388
        %v3335 = vunpack.c.l.b16 %v2389
        %v3336 = vunpack.c.h.b16 %v2389
        %v3337 = vunpack.c.l.b16 %v2390
        %v3338 = vunpack.c.h.b16 %v2390
        %v3339 = vunpack.c.l.b16 %v2391
        %v3340 = vunpack.c.h.b16 %v2391
        %v3341 = vunpack.c.l.b16 %v2392
        %v3342 = vunpack.c.h.b16 %v2392
        %v3343 = vunpack.c.l.b16 %v2393
        %v3344 = vunpack.c.h.b16 %v2393
        %v3345 = vunpack.c.l.b16 %v2394
        %v3346 = vunpack.c.h.b16 %v2394
        %v3347 = vunpack.c.l.b16 %v2395
        %v3348 = vunpack.c.h.b16 %v2395
        %v3349 = vunpack.c.l.b16 %v2396
        %v3350 = vunpack.c.h.b16 %v2396
        %v3351 = vunpack.c.l.b16 %v2397
        %v3352 = vunpack.c.h.b16 %v2397
        %v3353 = vunpack.c.l.b16 %v2398
        %v3354 = vunpack.c.h.b16 %v2398
        %v3355 = vunpack.c.l.b16 %v2399
        %v3356 = vunpack.c.h.b16 %v2399
        %v3357 = vunpack.c.l.b16 %v2400
        %v3358 = vunpack.c.h.b16 %v2400
        %v3359 = vunpack.c.l.b16 %v2401
        %v3360 = vunpack.c.h.b16 %v2401
        %v3361 = vunpack.c.l.b16 %v2402
        %v3362 = vunpack.c.h.b16 %v2402
        %v3363 = vunpack.c.l.b16 %v2403
        %v3364 = vunpack.c.h.b16 %v2403
        %v3365 = vunpack.c.l.b16 %v2404
        %v3366 = vunpack.c.h.b16 %v2404
        %v3367 = vunpack.c.l.b16 %v2405
        %v3368 = vunpack.c.h.b16 %v2405
        %v3369 = vunpack.c.l.b16 %v2406
        %v3370 = vunpack.c.h.b16 %v2406
        %v3371 = vunpack.c.l.b16 %v2407
        %v3372 = vunpack.c.h.b16 %v2407
        %v3373 = vunpack.c.l.b16 %v2408
        %v3374 = vunpack.c.h.b16 %v2408
        %v3375 = vunpack.c.l.b16 %v2409
        %v3376 = vunpack.c.h.b16 %v2409
        %v3377 = vunpack.c.l.b16 %v2410
        %v3378 = vunpack.c.h.b16 %v2410
        %v3379 = vunpack.c.l.b16 %v2411
        %v3380 = vunpack.c.h.b16 %v2411
        %v3381 = vunpack.c.l.b16 %v2412
        %v3382 = vunpack.c.h.b16 %v2412
        %v3383 = vunpack.c.l.b16 %v2413
        %v3384 = vunpack.c.h.b16 %v2413
        %v3385 = vunpack.c.l.b16 %v2414
        %v3386 = vunpack.c.h.b16 %v2414
        %v3387 = vunpack.c.l.b16 %v2415
        %v3388 = vunpack.c.h.b16 %v2415
        %v3389 = vunpack.c.l.b16 %v2416
        %v3390 = vunpack.c.h.b16 %v2416
        %v3391 = vunpack.c.l.b16 %v2417
        %v3392 = vunpack.c.h.b16 %v2417
        %v3393 = vunpack.c.l.b16 %v2418
        %v3394 = vunpack.c.h.b16 %v2418
        %v3395 = vunpack.c.l.b16 %v2419
        %v3396 = vunpack.c.h.b16 %v2419
        %v3397 = vunpack.c.l.b16 %v2420
        %v3398 = vunpack.c.h.b16 %v2420
        %v3399 = vunpack.c.l.b16 %v2421
        %v3400 = vunpack.c.h.b16 %v2421
        %v3401 = vunpack.c.l.b16 %v2422
        %v3402 = vunpack.c.h.b16 %v2422
        %v3403 = vunpack.c.l.b16 %v2423
        %v3404 = vunpack.c.h.b16 %v2423
        %v3405 = vunpack.c.l.b16 %v2424
        %v3406 = vunpack.c.h.b16 %v2424
        %v3407 = vunpack.c.l.b16 %v2425
        %v3408 = vunpack.c.h.b16 %v2425
        %v3409 = vunpack.c.l.b16 %v2426
        %v3410 = vunpack.c.h.b16 %v2426
        %v3411 = vunpack.c.l.b16 %v2427
        %v3412 = vunpack.c.h.b16 %v2427
        %v3413 = vunpack.c.l.b16 %v2428
        %v3414 = vunpack.c.h.b16 %v2428
        %v3415 = vunpack.c.l.b16 %v2429
        %v3416 = vunpack.c.h.b16 %v2429
        %v3417 = vunpack.c.l.b16 %v2430
        %v3418 = vunpack.c.h.b16 %v2430
        %v3419 = vunpack.c.l.b16 %v2431
        %v3420 = vunpack.c.h.b16 %v2431
        %v3421 = vunpack.c.l.b16 %v2432
        %v3422 = vunpack.c.h.b16 %v2432
        %v3423 = vunpack.c.l.b16 %v2433
        %v3424 = vunpack.c.h.b16 %v2433
        %v3425 = vunpack.c.l.b16 %v2434
        %v3426 = vunpack.c.h.b16 %v2434
        %v3427 = vunpack.c.l.b16 %v2435
        %v3428 = vunpack.c.h.b16 %v2435
        %v3429 = vunpack.c.l.b16 %v2436
        %v3430 = vunpack.c.h.b16 %v2436
        %v3431 = vunpack.c.l.b16 %v2437
        %v3432 = vunpack.c.h.b16 %v2437
        %v3433 = vunpack.c.l.b16 %v2438
        %v3434 = vunpack.c.h.b16 %v2438
        %v3435 = vunpack.c.l.b16 %v2439
        %v3436 = vunpack.c.h.b16 %v2439
        %v3437 = vunpack.c.l.b16 %v2440
        %v3438 = vunpack.c.h.b16 %v2440
        %v3439 = vunpack.c.l.b16 %v2441
        %v3440 = vunpack.c.h.b16 %v2441
        %v3441 = vunpack.c.l.b16 %v2442
        %v3442 = vunpack.c.h.b16 %v2442
        %v3443 = vunpack.c.l.b16 %v2443
        %v3444 = vunpack.c.h.b16 %v2443
        %v3445 = vunpack.c.l.b16 %v2444
        %v3446 = vunpack.c.h.b16 %v2444
        %v3447 = vunpack.c.l.b16 %v2445
        %v3448 = vunpack.c.h.b16 %v2445
        %v3449 = vunpack.c.l.b16 %v2446
        %v3450 = vunpack.c.h.b16 %v2446
        %v3451 = vunpack.c.l.b16 %v2447
        %v3452 = vunpack.c.h.b16 %v2447
        %v3453 = vunpack.c.l.b16 %v2448
        %v3454 = vunpack.c.h.b16 %v2448
        %v3455 = vunpack.c.l.b16 %v2449
        %v3456 = vunpack.c.h.b16 %v2449
        %v3457 = vunpack.c.l.b16 %v2450
        %v3458 = vunpack.c.h.b16 %v2450
        %v3459 = vunpack.c.l.b16 %v2451
        %v3460 = vunpack.c.h.b16 %v2451
        %v3461 = vunpack.c.l.b16 %v2452
        %v3462 = vunpack.c.h.b16 %v2452
        %v3463 = vunpack.c.l.b16 %v2453
        %v3464 = vunpack.c.h.b16 %v2453
        %v3465 = vunpack.c.l.b16 %v2454
        %v3466 = vunpack.c.h.b16 %v2454
        %v3467 = vunpack.c.l.b16 %v2455
        %v3468 = vunpack.c.h.b16 %v2455
        %v3469 = vunpack.c.l.b16 %v2456
        %v3470 = vunpack.c.h.b16 %v2456
        %v3471 = vunpack.c.l.b16 %v2457
        %v3472 = vunpack.c.h.b16 %v2457
        %v3473 = vunpack.c.l.b16 %v2458
        %v3474 = vunpack.c.h.b16 %v2458
        %v3475 = vunpack.c.l.b16 %v2459
        %v3476 = vunpack.c.h.b16 %v2459
        %v3477 = vunpack.c.l.b16 %v2460
        %v3478 = vunpack.c.h.b16 %v2460
        %v3479 = vunpack.c.l.b16 %v2461
        %v3480 = vunpack.c.h.b16 %v2461
        %v3481 = vunpack.c.l.b16 %v2462
        %v3482 = vunpack.c.h.b16 %v2462
        %v3483 = vunpack.c.l.b16 %v2463
        %v3484 = vunpack.c.h.b16 %v2463
        %v3485 = vunpack.c.l.b16 %v2464
        %v3486 = vunpack.c.h.b16 %v2464
        %v3487 = vunpack.c.l.b16 %v2465
        %v3488 = vunpack.c.h.b16 %v2465
        %v3489 = vunpack.c.l.b16 %v2466
        %v3490 = vunpack.c.h.b16 %v2466
        %v3491 = vpack.c.b16 %v3237, %v3235
        %v3492 = vpack.c.b16 %v3238, %v3236
        %v3493 = vpack.c.b16 %v3241, %v3239
        %v3494 = vpack.c.b16 %v3242, %v3240
        %v3495 = vpack.c.b16 %v3245, %v3243
        %v3496 = vpack.c.b16 %v3246, %v3244
        %v3497 = vpack.c.b16 %v3249, %v3247
        %v3498 = vpack.c.b16 %v3250, %v3248
        %v3499 = vpack.c.b16 %v3253, %v3251
        %v3500 = vpack.c.b16 %v3254, %v3252
        %v3501 = vpack.c.b16 %v3257, %v3255
        %v3502 = vpack.c.b16 %v3258, %v3256
        %v3503 = vpack.c.b16 %v3261, %v3259
        %v3504 = vpack.c.b16 %v3262, %v3260
        %v3505 = vpack.c.b16 %v3265, %v3263
        %v3506 = vpack.c.b16 %v3266, %v3264
        %v3507 = vpack.c.b16 %v3269, %v3267
        %v3508 = vpack.c.b16 %v3270, %v3268
        %v3509 = vpack.c.b16 %v3273, %v3271
        %v3510 = vpack.c.b16 %v3274, %v3272
        %v3511 = vpack.c.b16 %v3277, %v3275
        %v3512 = vpack.c.b16 %v3278, %v3276
        %v3513 = vpack.c.b16 %v3281, %v3279
        %v3514 = vpack.c.b16 %v3282, %v3280
        %v3515 = vpack.c.b16 %v3285, %v3283
        %v3516 = vpack.c.b16 %v3286, %v3284
        %v3517 = vpack.c.b16 %v3289, %v3287
        %v3518 = vpack.c.b16 %v3290, %v3288
        %v3519 = vpack.c.b16 %v3293, %v3291
        %v3520 = vpack.c.b16 %v3294, %v3292
        %v3521 = vpack.c.b16 %v3297, %v3295
        %v3522 = vpack.c.b16 %v3298, %v3296
        %v3523 = vpack.c.b16 %v3301, %v3299
        %v3524 = vpack.c.b16 %v3302, %v3300
        %v3525 = vpack.c.b16 %v3305, %v3303
        %v3526 = vpack.c.b16 %v3306, %v3304
        %v3527 = vpack.c.b16 %v3309, %v3307
        %v3528 = vpack.c.b16 %v3310, %v3308
        %v3529 = vpack.c.b16 %v3313, %v3311
        %v3530 = vpack.c.b16 %v3314, %v3312
        %v3531 = vpack.c.b16 %v3317, %v3315
        %v3532 = vpack.c.b16 %v3318, %v3316
        %v3533 = vpack.c.b16 %v3321, %v3319
        %v3534 = vpack.c.b16 %v3322, %v3320
        %v3535 = vpack.c.b16 %v3325, %v3323
        %v3536 = vpack.c.b16 %v3326, %v3324
        %v3537 = vpack.c.b16 %v3329, %v3327
        %v3538 = vpack.c.b16 %v3330, %v3328
        %v3539 = vpack.c.b16 %v3333, %v3331
        %v3540 = vpack.c.b16 %v3334, %v3332
        %v3541 = vpack.c.b16 %v3337, %v3335
        %v3542 = vpack.c.b16 %v3338, %v3336
        %v3543 = vpack.c.b16 %v3341, %v3339
        %v3544 = vpack.c.b16 %v3342, %v3340
        %v3545 = vpack.c.b16 %v3345, %v3343
        %v3546 = vpack.c.b16 %v3346, %v3344
        %v3547 = vpack.c.b16 %v3349, %v3347
        %v3548 = vpack.c.b16 %v3350, %v3348
        %v3549 = vpack.c.b16 %v3353, %v3351
        %v3550 = vpack.c.b16 %v3354, %v3352
        %v3551 = vpack.c.b16 %v3357, %v3355
        %v3552 = vpack.c.b16 %v3358, %v3356
        %v3553 = vpack.c.b16 %v3361, %v3359
        %v3554 = vpack.c.b16 %v3362, %v3360
        %v3555 = vpack.c.b16 %v3365, %v3363
        %v3556 = vpack.c.b16 %v3366, %v3364
        %v3557 = vpack.c.b16 %v3369, %v3367
        %v3558 = vpack.c.b16 %v3370, %v3368
        %v3559 = vpack.c.b16 %v3373, %v3371
        %v3560 = vpack.c.b16 %v3374, %v3372
        %v3561 = vpack.c.b16 %v3377, %v3375
        %v3562 = vpack.c.b16 %v3378, %v3376
        %v3563 = vpack.c.b16 %v3381, %v3379
        %v3564 = vpack.c.b16 %v3382, %v3380
        %v3565 = vpack.c.b16 %v3385, %v3383
        %v3566 = vpack.c.b16 %v3386, %v3384
        %v3567 = vpack.c.b16 %v3389, %v3387
        %v3568 = vpack.c.b16 %v3390, %v3388
        %v3569 = vpack.c.b16 %v3393, %v3391
        %v3570 = vpack.c.b16 %v3394, %v3392
        %v3571 = vpack.c.b16 %v3397, %v3395
        %v3572 = vpack.c.b16 %v3398, %v3396
        %v3573 = vpack.c.b16 %v3401, %v3399
        %v3574 = vpack.c.b16 %v3402, %v3400
        %v3575 = vpack.c.b16 %v3405, %v3403
        %v3576 = vpack.c.b16 %v3406, %v3404
        %v3577 = vpack.c.b16 %v3409, %v3407
        %v3578 = vpack.c.b16 %v3410, %v3408
        %v3579 = vpack.c.b16 %v3413, %v3411
        %v3580 = vpack.c.b16 %v3414, %v3412
        %v3581 = vpack.c.b16 %v3417, %v3415
        %v3582 = vpack.c.b16 %v3418, %v3416
        %v3583 = vpack.c.b16 %v3421, %v3419
        %v3584 = vpack.c.b16 %v3422, %v3420
        %v3585 = vpack.c.b16 %v3425, %v3423
        %v3586 = vpack.c.b16 %v3426, %v3424
        %v3587 = vpack.c.b16 %v3429, %v3427
        %v3588 = vpack.c.b16 %v3430, %v3428
        %v3589 = vpack.c.b16 %v3433, %v3431
        %v3590 = vpack.c.b16 %v3434, %v3432
        %v3591 = vpack.c.b16 %v3437, %v3435
        %v3592 = vpack.c.b16 %v3438, %v3436
        %v3593 = vpack.c.b16 %v3441, %v3439
        %v3594 = vpack.c.b16 %v3442, %v3440
        %v3595 = vpack.c.b16 %v3445, %v3443
        %v3596 = vpack.c.b16 %v3446, %v3444
        %v3597 = vpack.c.b16 %v3449, %v3447
        %v3598 = vpack.c.b16 %v3450, %v3448
        %v3599 = vpack.c.b16 %v3453, %v3451
        %v3600 = vpack.c.b16 %v3454, %v3452
        %v3601 = vpack.c.b16 %v3457, %v3455
        %v3602 = vpack.c.b16 %v3458, %v3456
        %v3603 = vpack.c.b16 %v3461, %v3459
        %v3604 = vpack.c.b16 %v3462, %v3460
        %v3605 = vpack.c.b16 %v3465, %v3463
        %v3606 = vpack.c.b16 %v3466, %v3464
        %v3607 = vpack.c.b16 %v3469, %v3467
        %v3608 = vpack.c.b16 %v3470, %v3468
        %v3609 = vpack.c.b16 %v3473, %v3471
        %v3610 = vpack.c.b16 %v3474, %v3472
        %v3611 = vpack.c.b16 %v3477, %v3475
        %v3612 = vpack.c.b16 %v3478, %v3476
        %v3613 = vpack.c.b16 %v3481, %v3479
        %v3614 = vpack.c.b16 %v3482, %v3480
        %v3615 = vpack.c.b16 %v3485, %v3483
        %v3616 = vpack.c.b16 %v3486, %v3484
        %v3617 = vpack.c.b16 %v3489, %v3487
        %v3618 = vpack.c.b16 %v3490, %v3488
        %3747 = vmatpush.bf16.msra.mxu0 %v3505
        %3748 = vmatpush.bf16.msra.mxu0 %v3503
        %3749 = vmatpush.bf16.msra.mxu0 %v3501
        %3750 = vmatpush.bf16.msra.mxu0 %v3499
        %3751 = vmatpush.bf16.msra.mxu0 %v3497
        %3752 = vmatpush.bf16.msra.mxu0 %v3495
        %3753 = vmatpush.bf16.msra.mxu0 %v3493
        %3754 = vmatpush.bf16.msra.mxu0 %v3491
        %3755 = vmatmul.bf16.gmra.mxu0 %v2851
        %v3756 = vpop.f32.mrf.mxu0
        %v3757 = vadd.f32 0.0, %v3756
        %v3758 = vpop.f32.mrf.mxu0
        %v3759 = vadd.f32 0.0, %v3758
        %3760 = vmatmul.bf16.gmra.mxu0 %v2859
        %v3761 = vpop.f32.mrf.mxu0
        %v3762 = vadd.f32 0.0, %v3761
        %v3763 = vpop.f32.mrf.mxu0
        %v3764 = vadd.f32 0.0, %v3763
        %3765 = vmatmul.bf16.gmra.mxu0 %v2867
        %v3766 = vpop.f32.mrf.mxu0
        %v3767 = vadd.f32 0.0, %v3766
        %v3768 = vpop.f32.mrf.mxu0
        %v3769 = vadd.f32 0.0, %v3768
        %3770 = vmatmul.bf16.gmra.mxu0 %v2875
        %v3771 = vpop.f32.mrf.mxu0
        %v3772 = vadd.f32 0.0, %v3771
        %v3773 = vpop.f32.mrf.mxu0
        %v3774 = vadd.f32 0.0, %v3773
        %3775 = vmatmul.bf16.gmra.mxu0 %v2883
        %v3776 = vpop.f32.mrf.mxu0
        %v3777 = vadd.f32 0.0, %v3776
        %v3778 = vpop.f32.mrf.mxu0
        %v3779 = vadd.f32 0.0, %v3778
        %3780 = vmatmul.bf16.gmra.mxu0 %v2891
        %v3781 = vpop.f32.mrf.mxu0
        %v3782 = vadd.f32 0.0, %v3781
        %v3783 = vpop.f32.mrf.mxu0
        %v3784 = vadd.f32 0.0, %v3783
        %3785 = vmatmul.bf16.gmra.mxu0 %v2899
        %v3786 = vpop.f32.mrf.mxu0
        %v3787 = vadd.f32 0.0, %v3786
        %v3788 = vpop.f32.mrf.mxu0
        %v3789 = vadd.f32 0.0, %v3788
        %3790 = vmatmul.bf16.gmra.mxu0 %v2907
        %v3791 = vpop.f32.mrf.mxu0
        %v3792 = vadd.f32 0.0, %v3791
        %v3793 = vpop.f32.mrf.mxu0
        %v3794 = vadd.f32 0.0, %v3793
        %3795 = vmatmul.bf16.gmra.mxu0 %v2915
        %v3796 = vpop.f32.mrf.mxu0
        %v3797 = vadd.f32 0.0, %v3796
        %v3798 = vpop.f32.mrf.mxu0
        %v3799 = vadd.f32 0.0, %v3798
        %3800 = vmatmul.bf16.gmra.mxu0 %v2923
        %v3801 = vpop.f32.mrf.mxu0
        %v3802 = vadd.f32 0.0, %v3801
        %v3803 = vpop.f32.mrf.mxu0
        %v3804 = vadd.f32 0.0, %v3803
        %3805 = vmatmul.bf16.gmra.mxu0 %v2931
        %v3806 = vpop.f32.mrf.mxu0
        %v3807 = vadd.f32 0.0, %v3806
        %v3808 = vpop.f32.mrf.mxu0
        %v3809 = vadd.f32 0.0, %v3808
        %3810 = vmatmul.bf16.gmra.mxu0 %v2939
        %v3811 = vpop.f32.mrf.mxu0
        %v3812 = vadd.f32 0.0, %v3811
        %v3813 = vpop.f32.mrf.mxu0
        %v3814 = vadd.f32 0.0, %v3813
        %3815 = vmatmul.bf16.gmra.mxu0 %v2947
        %v3816 = vpop.f32.mrf.mxu0
        %v3817 = vadd.f32 0.0, %v3816
        %v3818 = vpop.f32.mrf.mxu0
        %v3819 = vadd.f32 0.0, %v3818
        %3820 = vmatmul.bf16.gmra.mxu0 %v2955
        %v3821 = vpop.f32.mrf.mxu0
        %v3822 = vadd.f32 0.0, %v3821
        %v3823 = vpop.f32.mrf.mxu0
        %v3824 = vadd.f32 0.0, %v3823
        %3825 = vmatmul.bf16.gmra.mxu0 %v2963
        %v3826 = vpop.f32.mrf.mxu0
        %v3827 = vadd.f32 0.0, %v3826
        %v3828 = vpop.f32.mrf.mxu0
        %v3829 = vadd.f32 0.0, %v3828
        %3830 = vmatmul.bf16.gmra.mxu0 %v2971
        %v3831 = vpop.f32.mrf.mxu0
        %v3832 = vadd.f32 0.0, %v3831
        %v3833 = vpop.f32.mrf.mxu0
        %v3834 = vadd.f32 0.0, %v3833
        %3835 = vdwg.mxu0
        %3836 = vmatpush.bf16.msra.mxu0 %v3521
        %3837 = vmatpush.bf16.msra.mxu0 %v3519
        %3838 = vmatpush.bf16.msra.mxu0 %v3517
        %3839 = vmatpush.bf16.msra.mxu0 %v3515
        %3840 = vmatpush.bf16.msra.mxu0 %v3513
        %3841 = vmatpush.bf16.msra.mxu0 %v3511
        %3842 = vmatpush.bf16.msra.mxu0 %v3509
        %3843 = vmatpush.bf16.msra.mxu0 %v3507
        %3844 = vmatmul.bf16.gmra.mxu0 %v2852
        %v3845 = vpop.f32.mrf.mxu0
        %v3846 = vadd.f32 %v3757, %v3845
        %v3847 = vpop.f32.mrf.mxu0
        %v3848 = vadd.f32 %v3759, %v3847
        %3849 = vmatmul.bf16.gmra.mxu0 %v2860
        %v3850 = vpop.f32.mrf.mxu0
        %v3851 = vadd.f32 %v3762, %v3850
        %v3852 = vpop.f32.mrf.mxu0
        %v3853 = vadd.f32 %v3764, %v3852
        %3854 = vmatmul.bf16.gmra.mxu0 %v2868
        %v3855 = vpop.f32.mrf.mxu0
        %v3856 = vadd.f32 %v3767, %v3855
        %v3857 = vpop.f32.mrf.mxu0
        %v3858 = vadd.f32 %v3769, %v3857
        %3859 = vmatmul.bf16.gmra.mxu0 %v2876
        %v3860 = vpop.f32.mrf.mxu0
        %v3861 = vadd.f32 %v3772, %v3860
        %v3862 = vpop.f32.mrf.mxu0
        %v3863 = vadd.f32 %v3774, %v3862
        %3864 = vmatmul.bf16.gmra.mxu0 %v2884
        %v3865 = vpop.f32.mrf.mxu0
        %v3866 = vadd.f32 %v3777, %v3865
        %v3867 = vpop.f32.mrf.mxu0
        %v3868 = vadd.f32 %v3779, %v3867
        %3869 = vmatmul.bf16.gmra.mxu0 %v2892
        %v3870 = vpop.f32.mrf.mxu0
        %v3871 = vadd.f32 %v3782, %v3870
        %v3872 = vpop.f32.mrf.mxu0
        %v3873 = vadd.f32 %v3784, %v3872
        %3874 = vmatmul.bf16.gmra.mxu0 %v2900
        %v3875 = vpop.f32.mrf.mxu0
        %v3876 = vadd.f32 %v3787, %v3875
        %v3877 = vpop.f32.mrf.mxu0
        %v3878 = vadd.f32 %v3789, %v3877
        %3879 = vmatmul.bf16.gmra.mxu0 %v2908
        %v3880 = vpop.f32.mrf.mxu0
        %v3881 = vadd.f32 %v3792, %v3880
        %v3882 = vpop.f32.mrf.mxu0
        %v3883 = vadd.f32 %v3794, %v3882
        %3884 = vmatmul.bf16.gmra.mxu0 %v2916
        %v3885 = vpop.f32.mrf.mxu0
        %v3886 = vadd.f32 %v3797, %v3885
        %v3887 = vpop.f32.mrf.mxu0
        %v3888 = vadd.f32 %v3799, %v3887
        %3889 = vmatmul.bf16.gmra.mxu0 %v2924
        %v3890 = vpop.f32.mrf.mxu0
        %v3891 = vadd.f32 %v3802, %v3890
        %v3892 = vpop.f32.mrf.mxu0
        %v3893 = vadd.f32 %v3804, %v3892
        %3894 = vmatmul.bf16.gmra.mxu0 %v2932
        %v3895 = vpop.f32.mrf.mxu0
        %v3896 = vadd.f32 %v3807, %v3895
        %v3897 = vpop.f32.mrf.mxu0
        %v3898 = vadd.f32 %v3809, %v3897
        %3899 = vmatmul.bf16.gmra.mxu0 %v2940
        %v3900 = vpop.f32.mrf.mxu0
        %v3901 = vadd.f32 %v3812, %v3900
        %v3902 = vpop.f32.mrf.mxu0
        %v3903 = vadd.f32 %v3814, %v3902
        %3904 = vmatmul.bf16.gmra.mxu0 %v2948
        %v3905 = vpop.f32.mrf.mxu0
        %v3906 = vadd.f32 %v3817, %v3905
        %v3907 = vpop.f32.mrf.mxu0
        %v3908 = vadd.f32 %v3819, %v3907
        %3909 = vmatmul.bf16.gmra.mxu0 %v2956
        %v3910 = vpop.f32.mrf.mxu0
        %v3911 = vadd.f32 %v3822, %v3910
        %v3912 = vpop.f32.mrf.mxu0
        %v3913 = vadd.f32 %v3824, %v3912
        %3914 = vmatmul.bf16.gmra.mxu0 %v2964
        %v3915 = vpop.f32.mrf.mxu0
        %v3916 = vadd.f32 %v3827, %v3915
        %v3917 = vpop.f32.mrf.mxu0
        %v3918 = vadd.f32 %v3829, %v3917
        %3919 = vmatmul.bf16.gmra.mxu0 %v2972
        %v3920 = vpop.f32.mrf.mxu0
        %v3921 = vadd.f32 %v3832, %v3920
        %v3922 = vpop.f32.mrf.mxu0
        %v3923 = vadd.f32 %v3834, %v3922
        %3924 = vdwg.mxu0
        %3925 = vmatpush.bf16.msra.mxu0 %v3537
        %3926 = vmatpush.bf16.msra.mxu0 %v3535
        %3927 = vmatpush.bf16.msra.mxu0 %v3533
        %3928 = vmatpush.bf16.msra.mxu0 %v3531
        %3929 = vmatpush.bf16.msra.mxu0 %v3529
        %3930 = vmatpush.bf16.msra.mxu0 %v3527
        %3931 = vmatpush.bf16.msra.mxu0 %v3525
        %3932 = vmatpush.bf16.msra.mxu0 %v3523
        %3933 = vmatmul.bf16.gmra.mxu0 %v2853
        %v3934 = vpop.f32.mrf.mxu0
        %v3935 = vadd.f32 %v3846, %v3934
        %v3936 = vpop.f32.mrf.mxu0
        %v3937 = vadd.f32 %v3848, %v3936
        %3938 = vmatmul.bf16.gmra.mxu0 %v2861
        %v3939 = vpop.f32.mrf.mxu0
        %v3940 = vadd.f32 %v3851, %v3939
        %v3941 = vpop.f32.mrf.mxu0
        %v3942 = vadd.f32 %v3853, %v3941
        %3943 = vmatmul.bf16.gmra.mxu0 %v2869
        %v3944 = vpop.f32.mrf.mxu0
        %v3945 = vadd.f32 %v3856, %v3944
        %v3946 = vpop.f32.mrf.mxu0
        %v3947 = vadd.f32 %v3858, %v3946
        %3948 = vmatmul.bf16.gmra.mxu0 %v2877
        %v3949 = vpop.f32.mrf.mxu0
        %v3950 = vadd.f32 %v3861, %v3949
        %v3951 = vpop.f32.mrf.mxu0
        %v3952 = vadd.f32 %v3863, %v3951
        %3953 = vmatmul.bf16.gmra.mxu0 %v2885
        %v3954 = vpop.f32.mrf.mxu0
        %v3955 = vadd.f32 %v3866, %v3954
        %v3956 = vpop.f32.mrf.mxu0
        %v3957 = vadd.f32 %v3868, %v3956
        %3958 = vmatmul.bf16.gmra.mxu0 %v2893
        %v3959 = vpop.f32.mrf.mxu0
        %v3960 = vadd.f32 %v3871, %v3959
        %v3961 = vpop.f32.mrf.mxu0
        %v3962 = vadd.f32 %v3873, %v3961
        %3963 = vmatmul.bf16.gmra.mxu0 %v2901
        %v3964 = vpop.f32.mrf.mxu0
        %v3965 = vadd.f32 %v3876, %v3964
        %v3966 = vpop.f32.mrf.mxu0
        %v3967 = vadd.f32 %v3878, %v3966
        %3968 = vmatmul.bf16.gmra.mxu0 %v2909
        %v3969 = vpop.f32.mrf.mxu0
        %v3970 = vadd.f32 %v3881, %v3969
        %v3971 = vpop.f32.mrf.mxu0
        %v3972 = vadd.f32 %v3883, %v3971
        %3973 = vmatmul.bf16.gmra.mxu0 %v2917
        %v3974 = vpop.f32.mrf.mxu0
        %v3975 = vadd.f32 %v3886, %v3974
        %v3976 = vpop.f32.mrf.mxu0
        %v3977 = vadd.f32 %v3888, %v3976
        %3978 = vmatmul.bf16.gmra.mxu0 %v2925
        %v3979 = vpop.f32.mrf.mxu0
        %v3980 = vadd.f32 %v3891, %v3979
        %v3981 = vpop.f32.mrf.mxu0
        %v3982 = vadd.f32 %v3893, %v3981
        %3983 = vmatmul.bf16.gmra.mxu0 %v2933
        %v3984 = vpop.f32.mrf.mxu0
        %v3985 = vadd.f32 %v3896, %v3984
        %v3986 = vpop.f32.mrf.mxu0
        %v3987 = vadd.f32 %v3898, %v3986
        %3988 = vmatmul.bf16.gmra.mxu0 %v2941
        %v3989 = vpop.f32.mrf.mxu0
        %v3990 = vadd.f32 %v3901, %v3989
        %v3991 = vpop.f32.mrf.mxu0
        %v3992 = vadd.f32 %v3903, %v3991
        %3993 = vmatmul.bf16.gmra.mxu0 %v2949
        %v3994 = vpop.f32.mrf.mxu0
        %v3995 = vadd.f32 %v3906, %v3994
        %v3996 = vpop.f32.mrf.mxu0
        %v3997 = vadd.f32 %v3908, %v3996
        %3998 = vmatmul.bf16.gmra.mxu0 %v2957
        %v3999 = vpop.f32.mrf.mxu0
        %v4000 = vadd.f32 %v3911, %v3999
        %v4001 = vpop.f32.mrf.mxu0
        %v4002 = vadd.f32 %v3913, %v4001
        %4003 = vmatmul.bf16.gmra.mxu0 %v2965
        %v4004 = vpop.f32.mrf.mxu0
        %v4005 = vadd.f32 %v3916, %v4004
        %v4006 = vpop.f32.mrf.mxu0
        %v4007 = vadd.f32 %v3918, %v4006
        %4008 = vmatmul.bf16.gmra.mxu0 %v2973
        %v4009 = vpop.f32.mrf.mxu0
        %v4010 = vadd.f32 %v3921, %v4009
        %v4011 = vpop.f32.mrf.mxu0
        %v4012 = vadd.f32 %v3923, %v4011
        %4013 = vdwg.mxu0
        %4014 = vmatpush.bf16.msra.mxu0 %v3553
        %4015 = vmatpush.bf16.msra.mxu0 %v3551
        %4016 = vmatpush.bf16.msra.mxu0 %v3549
        %4017 = vmatpush.bf16.msra.mxu0 %v3547
        %4018 = vmatpush.bf16.msra.mxu0 %v3545
        %4019 = vmatpush.bf16.msra.mxu0 %v3543
        %4020 = vmatpush.bf16.msra.mxu0 %v3541
        %4021 = vmatpush.bf16.msra.mxu0 %v3539
        %4022 = vmatmul.bf16.gmra.mxu0 %v2854
        %v4023 = vpop.f32.mrf.mxu0
        %v4024 = vadd.f32 %v3935, %v4023
        %v4025 = vpop.f32.mrf.mxu0
        %v4026 = vadd.f32 %v3937, %v4025
        %4027 = vmatmul.bf16.gmra.mxu0 %v2862
        %v4028 = vpop.f32.mrf.mxu0
        %v4029 = vadd.f32 %v3940, %v4028
        %v4030 = vpop.f32.mrf.mxu0
        %v4031 = vadd.f32 %v3942, %v4030
        %4032 = vmatmul.bf16.gmra.mxu0 %v2870
        %v4033 = vpop.f32.mrf.mxu0
        %v4034 = vadd.f32 %v3945, %v4033
        %v4035 = vpop.f32.mrf.mxu0
        %v4036 = vadd.f32 %v3947, %v4035
        %4037 = vmatmul.bf16.gmra.mxu0 %v2878
        %v4038 = vpop.f32.mrf.mxu0
        %v4039 = vadd.f32 %v3950, %v4038
        %v4040 = vpop.f32.mrf.mxu0
        %v4041 = vadd.f32 %v3952, %v4040
        %4042 = vmatmul.bf16.gmra.mxu0 %v2886
        %v4043 = vpop.f32.mrf.mxu0
        %v4044 = vadd.f32 %v3955, %v4043
        %v4045 = vpop.f32.mrf.mxu0
        %v4046 = vadd.f32 %v3957, %v4045
        %4047 = vmatmul.bf16.gmra.mxu0 %v2894
        %v4048 = vpop.f32.mrf.mxu0
        %v4049 = vadd.f32 %v3960, %v4048
        %v4050 = vpop.f32.mrf.mxu0
        %v4051 = vadd.f32 %v3962, %v4050
        %4052 = vmatmul.bf16.gmra.mxu0 %v2902
        %v4053 = vpop.f32.mrf.mxu0
        %v4054 = vadd.f32 %v3965, %v4053
        %v4055 = vpop.f32.mrf.mxu0
        %v4056 = vadd.f32 %v3967, %v4055
        %4057 = vmatmul.bf16.gmra.mxu0 %v2910
        %v4058 = vpop.f32.mrf.mxu0
        %v4059 = vadd.f32 %v3970, %v4058
        %v4060 = vpop.f32.mrf.mxu0
        %v4061 = vadd.f32 %v3972, %v4060
        %4062 = vmatmul.bf16.gmra.mxu0 %v2918
        %v4063 = vpop.f32.mrf.mxu0
        %v4064 = vadd.f32 %v3975, %v4063
        %v4065 = vpop.f32.mrf.mxu0
        %v4066 = vadd.f32 %v3977, %v4065
        %4067 = vmatmul.bf16.gmra.mxu0 %v2926
        %v4068 = vpop.f32.mrf.mxu0
        %v4069 = vadd.f32 %v3980, %v4068
        %v4070 = vpop.f32.mrf.mxu0
        %v4071 = vadd.f32 %v3982, %v4070
        %4072 = vmatmul.bf16.gmra.mxu0 %v2934
        %v4073 = vpop.f32.mrf.mxu0
        %v4074 = vadd.f32 %v3985, %v4073
        %v4075 = vpop.f32.mrf.mxu0
        %v4076 = vadd.f32 %v3987, %v4075
        %4077 = vmatmul.bf16.gmra.mxu0 %v2942
        %v4078 = vpop.f32.mrf.mxu0
        %v4079 = vadd.f32 %v3990, %v4078
        %v4080 = vpop.f32.mrf.mxu0
        %v4081 = vadd.f32 %v3992, %v4080
        %4082 = vmatmul.bf16.gmra.mxu0 %v2950
        %v4083 = vpop.f32.mrf.mxu0
        %v4084 = vadd.f32 %v3995, %v4083
        %v4085 = vpop.f32.mrf.mxu0
        %v4086 = vadd.f32 %v3997, %v4085
        %4087 = vmatmul.bf16.gmra.mxu0 %v2958
        %v4088 = vpop.f32.mrf.mxu0
        %v4089 = vadd.f32 %v4000, %v4088
        %v4090 = vpop.f32.mrf.mxu0
        %v4091 = vadd.f32 %v4002, %v4090
        %4092 = vmatmul.bf16.gmra.mxu0 %v2966
        %v4093 = vpop.f32.mrf.mxu0
        %v4094 = vadd.f32 %v4005, %v4093
        %v4095 = vpop.f32.mrf.mxu0
        %v4096 = vadd.f32 %v4007, %v4095
        %4097 = vmatmul.bf16.gmra.mxu0 %v2974
        %v4098 = vpop.f32.mrf.mxu0
        %v4099 = vadd.f32 %v4010, %v4098
        %v4100 = vpop.f32.mrf.mxu0
        %v4101 = vadd.f32 %v4012, %v4100
        %4102 = vdwg.mxu0
        %4103 = vmatpush.bf16.msra.mxu0 %v3569
        %4104 = vmatpush.bf16.msra.mxu0 %v3567
        %4105 = vmatpush.bf16.msra.mxu0 %v3565
        %4106 = vmatpush.bf16.msra.mxu0 %v3563
        %4107 = vmatpush.bf16.msra.mxu0 %v3561
        %4108 = vmatpush.bf16.msra.mxu0 %v3559
        %4109 = vmatpush.bf16.msra.mxu0 %v3557
        %4110 = vmatpush.bf16.msra.mxu0 %v3555
        %4111 = vmatmul.bf16.gmra.mxu0 %v2855
        %v4112 = vpop.f32.mrf.mxu0
        %v4113 = vadd.f32 %v4024, %v4112
        %v4114 = vpop.f32.mrf.mxu0
        %v4115 = vadd.f32 %v4026, %v4114
        %4116 = vmatmul.bf16.gmra.mxu0 %v2863
        %v4117 = vpop.f32.mrf.mxu0
        %v4118 = vadd.f32 %v4029, %v4117
        %v4119 = vpop.f32.mrf.mxu0
        %v4120 = vadd.f32 %v4031, %v4119
        %4121 = vmatmul.bf16.gmra.mxu0 %v2871
        %v4122 = vpop.f32.mrf.mxu0
        %v4123 = vadd.f32 %v4034, %v4122
        %v4124 = vpop.f32.mrf.mxu0
        %v4125 = vadd.f32 %v4036, %v4124
        %4126 = vmatmul.bf16.gmra.mxu0 %v2879
        %v4127 = vpop.f32.mrf.mxu0
        %v4128 = vadd.f32 %v4039, %v4127
        %v4129 = vpop.f32.mrf.mxu0
        %v4130 = vadd.f32 %v4041, %v4129
        %4131 = vmatmul.bf16.gmra.mxu0 %v2887
        %v4132 = vpop.f32.mrf.mxu0
        %v4133 = vadd.f32 %v4044, %v4132
        %v4134 = vpop.f32.mrf.mxu0
        %v4135 = vadd.f32 %v4046, %v4134
        %4136 = vmatmul.bf16.gmra.mxu0 %v2895
        %v4137 = vpop.f32.mrf.mxu0
        %v4138 = vadd.f32 %v4049, %v4137
        %v4139 = vpop.f32.mrf.mxu0
        %v4140 = vadd.f32 %v4051, %v4139
        %4141 = vmatmul.bf16.gmra.mxu0 %v2903
        %v4142 = vpop.f32.mrf.mxu0
        %v4143 = vadd.f32 %v4054, %v4142
        %v4144 = vpop.f32.mrf.mxu0
        %v4145 = vadd.f32 %v4056, %v4144
        %4146 = vmatmul.bf16.gmra.mxu0 %v2911
        %v4147 = vpop.f32.mrf.mxu0
        %v4148 = vadd.f32 %v4059, %v4147
        %v4149 = vpop.f32.mrf.mxu0
        %v4150 = vadd.f32 %v4061, %v4149
        %4151 = vmatmul.bf16.gmra.mxu0 %v2919
        %v4152 = vpop.f32.mrf.mxu0
        %v4153 = vadd.f32 %v4064, %v4152
        %v4154 = vpop.f32.mrf.mxu0
        %v4155 = vadd.f32 %v4066, %v4154
        %4156 = vmatmul.bf16.gmra.mxu0 %v2927
        %v4157 = vpop.f32.mrf.mxu0
        %v4158 = vadd.f32 %v4069, %v4157
        %v4159 = vpop.f32.mrf.mxu0
        %v4160 = vadd.f32 %v4071, %v4159
        %4161 = vmatmul.bf16.gmra.mxu0 %v2935
        %v4162 = vpop.f32.mrf.mxu0
        %v4163 = vadd.f32 %v4074, %v4162
        %v4164 = vpop.f32.mrf.mxu0
        %v4165 = vadd.f32 %v4076, %v4164
        %4166 = vmatmul.bf16.gmra.mxu0 %v2943
        %v4167 = vpop.f32.mrf.mxu0
        %v4168 = vadd.f32 %v4079, %v4167
        %v4169 = vpop.f32.mrf.mxu0
        %v4170 = vadd.f32 %v4081, %v4169
        %4171 = vmatmul.bf16.gmra.mxu0 %v2951
        %v4172 = vpop.f32.mrf.mxu0
        %v4173 = vadd.f32 %v4084, %v4172
        %v4174 = vpop.f32.mrf.mxu0
        %v4175 = vadd.f32 %v4086, %v4174
        %4176 = vmatmul.bf16.gmra.mxu0 %v2959
        %v4177 = vpop.f32.mrf.mxu0
        %v4178 = vadd.f32 %v4089, %v4177
        %v4179 = vpop.f32.mrf.mxu0
        %v4180 = vadd.f32 %v4091, %v4179
        %4181 = vmatmul.bf16.gmra.mxu0 %v2967
        %v4182 = vpop.f32.mrf.mxu0
        %v4183 = vadd.f32 %v4094, %v4182
        %v4184 = vpop.f32.mrf.mxu0
        %v4185 = vadd.f32 %v4096, %v4184
        %4186 = vmatmul.bf16.gmra.mxu0 %v2975
        %v4187 = vpop.f32.mrf.mxu0
        %v4188 = vadd.f32 %v4099, %v4187
        %v4189 = vpop.f32.mrf.mxu0
        %v4190 = vadd.f32 %v4101, %v4189
        %4191 = vdwg.mxu0
        %4192 = vmatpush.bf16.msra.mxu0 %v3585
        %4193 = vmatpush.bf16.msra.mxu0 %v3583
        %4194 = vmatpush.bf16.msra.mxu0 %v3581
        %4195 = vmatpush.bf16.msra.mxu0 %v3579
        %4196 = vmatpush.bf16.msra.mxu0 %v3577
        %4197 = vmatpush.bf16.msra.mxu0 %v3575
        %4198 = vmatpush.bf16.msra.mxu0 %v3573
        %4199 = vmatpush.bf16.msra.mxu0 %v3571
        %4200 = vmatmul.bf16.gmra.mxu0 %v2856
        %v4201 = vpop.f32.mrf.mxu0
        %v4202 = vadd.f32 %v4113, %v4201
        %v4203 = vpop.f32.mrf.mxu0
        %v4204 = vadd.f32 %v4115, %v4203
        %4205 = vmatmul.bf16.gmra.mxu0 %v2864
        %v4206 = vpop.f32.mrf.mxu0
        %v4207 = vadd.f32 %v4118, %v4206
        %v4208 = vpop.f32.mrf.mxu0
        %v4209 = vadd.f32 %v4120, %v4208
        %4210 = vmatmul.bf16.gmra.mxu0 %v2872
        %v4211 = vpop.f32.mrf.mxu0
        %v4212 = vadd.f32 %v4123, %v4211
        %v4213 = vpop.f32.mrf.mxu0
        %v4214 = vadd.f32 %v4125, %v4213
        %4215 = vmatmul.bf16.gmra.mxu0 %v2880
        %v4216 = vpop.f32.mrf.mxu0
        %v4217 = vadd.f32 %v4128, %v4216
        %v4218 = vpop.f32.mrf.mxu0
        %v4219 = vadd.f32 %v4130, %v4218
        %4220 = vmatmul.bf16.gmra.mxu0 %v2888
        %v4221 = vpop.f32.mrf.mxu0
        %v4222 = vadd.f32 %v4133, %v4221
        %v4223 = vpop.f32.mrf.mxu0
        %v4224 = vadd.f32 %v4135, %v4223
        %4225 = vmatmul.bf16.gmra.mxu0 %v2896
        %v4226 = vpop.f32.mrf.mxu0
        %v4227 = vadd.f32 %v4138, %v4226
        %v4228 = vpop.f32.mrf.mxu0
        %v4229 = vadd.f32 %v4140, %v4228
        %4230 = vmatmul.bf16.gmra.mxu0 %v2904
        %v4231 = vpop.f32.mrf.mxu0
        %v4232 = vadd.f32 %v4143, %v4231
        %v4233 = vpop.f32.mrf.mxu0
        %v4234 = vadd.f32 %v4145, %v4233
        %4235 = vmatmul.bf16.gmra.mxu0 %v2912
        %v4236 = vpop.f32.mrf.mxu0
        %v4237 = vadd.f32 %v4148, %v4236
        %v4238 = vpop.f32.mrf.mxu0
        %v4239 = vadd.f32 %v4150, %v4238
        %4240 = vmatmul.bf16.gmra.mxu0 %v2920
        %v4241 = vpop.f32.mrf.mxu0
        %v4242 = vadd.f32 %v4153, %v4241
        %v4243 = vpop.f32.mrf.mxu0
        %v4244 = vadd.f32 %v4155, %v4243
        %4245 = vmatmul.bf16.gmra.mxu0 %v2928
        %v4246 = vpop.f32.mrf.mxu0
        %v4247 = vadd.f32 %v4158, %v4246
        %v4248 = vpop.f32.mrf.mxu0
        %v4249 = vadd.f32 %v4160, %v4248
        %4250 = vmatmul.bf16.gmra.mxu0 %v2936
        %v4251 = vpop.f32.mrf.mxu0
        %v4252 = vadd.f32 %v4163, %v4251
        %v4253 = vpop.f32.mrf.mxu0
        %v4254 = vadd.f32 %v4165, %v4253
        %4255 = vmatmul.bf16.gmra.mxu0 %v2944
        %v4256 = vpop.f32.mrf.mxu0
        %v4257 = vadd.f32 %v4168, %v4256
        %v4258 = vpop.f32.mrf.mxu0
        %v4259 = vadd.f32 %v4170, %v4258
        %4260 = vmatmul.bf16.gmra.mxu0 %v2952
        %v4261 = vpop.f32.mrf.mxu0
        %v4262 = vadd.f32 %v4173, %v4261
        %v4263 = vpop.f32.mrf.mxu0
        %v4264 = vadd.f32 %v4175, %v4263
        %4265 = vmatmul.bf16.gmra.mxu0 %v2960
        %v4266 = vpop.f32.mrf.mxu0
        %v4267 = vadd.f32 %v4178, %v4266
        %v4268 = vpop.f32.mrf.mxu0
        %v4269 = vadd.f32 %v4180, %v4268
        %4270 = vmatmul.bf16.gmra.mxu0 %v2968
        %v4271 = vpop.f32.mrf.mxu0
        %v4272 = vadd.f32 %v4183, %v4271
        %v4273 = vpop.f32.mrf.mxu0
        %v4274 = vadd.f32 %v4185, %v4273
        %4275 = vmatmul.bf16.gmra.mxu0 %v2976
        %v4276 = vpop.f32.mrf.mxu0
        %v4277 = vadd.f32 %v4188, %v4276
        %v4278 = vpop.f32.mrf.mxu0
        %v4279 = vadd.f32 %v4190, %v4278
        %4280 = vdwg.mxu0
        %4281 = vmatpush.bf16.msra.mxu0 %v3601
        %4282 = vmatpush.bf16.msra.mxu0 %v3599
        %4283 = vmatpush.bf16.msra.mxu0 %v3597
        %4284 = vmatpush.bf16.msra.mxu0 %v3595
        %4285 = vmatpush.bf16.msra.mxu0 %v3593
        %4286 = vmatpush.bf16.msra.mxu0 %v3591
        %4287 = vmatpush.bf16.msra.mxu0 %v3589
        %4288 = vmatpush.bf16.msra.mxu0 %v3587
        %4289 = vmatmul.bf16.gmra.mxu0 %v2857
        %v4290 = vpop.f32.mrf.mxu0
        %v4291 = vadd.f32 %v4202, %v4290
        %v4292 = vpop.f32.mrf.mxu0
        %v4293 = vadd.f32 %v4204, %v4292
        %4294 = vmatmul.bf16.gmra.mxu0 %v2865
        %v4295 = vpop.f32.mrf.mxu0
        %v4296 = vadd.f32 %v4207, %v4295
        %v4297 = vpop.f32.mrf.mxu0
        %v4298 = vadd.f32 %v4209, %v4297
        %4299 = vmatmul.bf16.gmra.mxu0 %v2873
        %v4300 = vpop.f32.mrf.mxu0
        %v4301 = vadd.f32 %v4212, %v4300
        %v4302 = vpop.f32.mrf.mxu0
        %v4303 = vadd.f32 %v4214, %v4302
        %4304 = vmatmul.bf16.gmra.mxu0 %v2881
        %v4305 = vpop.f32.mrf.mxu0
        %v4306 = vadd.f32 %v4217, %v4305
        %v4307 = vpop.f32.mrf.mxu0
        %v4308 = vadd.f32 %v4219, %v4307
        %4309 = vmatmul.bf16.gmra.mxu0 %v2889
        %v4310 = vpop.f32.mrf.mxu0
        %v4311 = vadd.f32 %v4222, %v4310
        %v4312 = vpop.f32.mrf.mxu0
        %v4313 = vadd.f32 %v4224, %v4312
        %4314 = vmatmul.bf16.gmra.mxu0 %v2897
        %v4315 = vpop.f32.mrf.mxu0
        %v4316 = vadd.f32 %v4227, %v4315
        %v4317 = vpop.f32.mrf.mxu0
        %v4318 = vadd.f32 %v4229, %v4317
        %4319 = vmatmul.bf16.gmra.mxu0 %v2905
        %v4320 = vpop.f32.mrf.mxu0
        %v4321 = vadd.f32 %v4232, %v4320
        %v4322 = vpop.f32.mrf.mxu0
        %v4323 = vadd.f32 %v4234, %v4322
        %4324 = vmatmul.bf16.gmra.mxu0 %v2913
        %v4325 = vpop.f32.mrf.mxu0
        %v4326 = vadd.f32 %v4237, %v4325
        %v4327 = vpop.f32.mrf.mxu0
        %v4328 = vadd.f32 %v4239, %v4327
        %4329 = vmatmul.bf16.gmra.mxu0 %v2921
        %v4330 = vpop.f32.mrf.mxu0
        %v4331 = vadd.f32 %v4242, %v4330
        %v4332 = vpop.f32.mrf.mxu0
        %v4333 = vadd.f32 %v4244, %v4332
        %4334 = vmatmul.bf16.gmra.mxu0 %v2929
        %v4335 = vpop.f32.mrf.mxu0
        %v4336 = vadd.f32 %v4247, %v4335
        %v4337 = vpop.f32.mrf.mxu0
        %v4338 = vadd.f32 %v4249, %v4337
        %4339 = vmatmul.bf16.gmra.mxu0 %v2937
        %v4340 = vpop.f32.mrf.mxu0
        %v4341 = vadd.f32 %v4252, %v4340
        %v4342 = vpop.f32.mrf.mxu0
        %v4343 = vadd.f32 %v4254, %v4342
        %4344 = vmatmul.bf16.gmra.mxu0 %v2945
        %v4345 = vpop.f32.mrf.mxu0
        %v4346 = vadd.f32 %v4257, %v4345
        %v4347 = vpop.f32.mrf.mxu0
        %v4348 = vadd.f32 %v4259, %v4347
        %4349 = vmatmul.bf16.gmra.mxu0 %v2953
        %v4350 = vpop.f32.mrf.mxu0
        %v4351 = vadd.f32 %v4262, %v4350
        %v4352 = vpop.f32.mrf.mxu0
        %v4353 = vadd.f32 %v4264, %v4352
        %4354 = vmatmul.bf16.gmra.mxu0 %v2961
        %v4355 = vpop.f32.mrf.mxu0
        %v4356 = vadd.f32 %v4267, %v4355
        %v4357 = vpop.f32.mrf.mxu0
        %v4358 = vadd.f32 %v4269, %v4357
        %4359 = vmatmul.bf16.gmra.mxu0 %v2969
        %v4360 = vpop.f32.mrf.mxu0
        %v4361 = vadd.f32 %v4272, %v4360
        %v4362 = vpop.f32.mrf.mxu0
        %v4363 = vadd.f32 %v4274, %v4362
        %4364 = vmatmul.bf16.gmra.mxu0 %v2977
        %v4365 = vpop.f32.mrf.mxu0
        %v4366 = vadd.f32 %v4277, %v4365
        %v4367 = vpop.f32.mrf.mxu0
        %v4368 = vadd.f32 %v4279, %v4367
        %4369 = vdwg.mxu0
        %4370 = vmatpush.bf16.msra.mxu0 %v3617
        %4371 = vmatpush.bf16.msra.mxu0 %v3615
        %4372 = vmatpush.bf16.msra.mxu0 %v3613
        %4373 = vmatpush.bf16.msra.mxu0 %v3611
        %4374 = vmatpush.bf16.msra.mxu0 %v3609
        %4375 = vmatpush.bf16.msra.mxu0 %v3607
        %4376 = vmatpush.bf16.msra.mxu0 %v3605
        %4377 = vmatpush.bf16.msra.mxu0 %v3603
        %4378 = vmatmul.bf16.gmra.mxu0 %v2858
        %v4379 = vpop.f32.mrf.mxu0
        %v4380 = vadd.f32 %v4291, %v4379
        %v4381 = vpop.f32.mrf.mxu0
        %v4382 = vadd.f32 %v4293, %v4381
        %4383 = vmatmul.bf16.gmra.mxu0 %v2866
        %v4384 = vpop.f32.mrf.mxu0
        %v4385 = vadd.f32 %v4296, %v4384
        %v4386 = vpop.f32.mrf.mxu0
        %v4387 = vadd.f32 %v4298, %v4386
        %4388 = vmatmul.bf16.gmra.mxu0 %v2874
        %v4389 = vpop.f32.mrf.mxu0
        %v4390 = vadd.f32 %v4301, %v4389
        %v4391 = vpop.f32.mrf.mxu0
        %v4392 = vadd.f32 %v4303, %v4391
        %4393 = vmatmul.bf16.gmra.mxu0 %v2882
        %v4394 = vpop.f32.mrf.mxu0
        %v4395 = vadd.f32 %v4306, %v4394
        %v4396 = vpop.f32.mrf.mxu0
        %v4397 = vadd.f32 %v4308, %v4396
        %4398 = vmatmul.bf16.gmra.mxu0 %v2890
        %v4399 = vpop.f32.mrf.mxu0
        %v4400 = vadd.f32 %v4311, %v4399
        %v4401 = vpop.f32.mrf.mxu0
        %v4402 = vadd.f32 %v4313, %v4401
        %4403 = vmatmul.bf16.gmra.mxu0 %v2898
        %v4404 = vpop.f32.mrf.mxu0
        %v4405 = vadd.f32 %v4316, %v4404
        %v4406 = vpop.f32.mrf.mxu0
        %v4407 = vadd.f32 %v4318, %v4406
        %4408 = vmatmul.bf16.gmra.mxu0 %v2906
        %v4409 = vpop.f32.mrf.mxu0
        %v4410 = vadd.f32 %v4321, %v4409
        %v4411 = vpop.f32.mrf.mxu0
        %v4412 = vadd.f32 %v4323, %v4411
        %4413 = vmatmul.bf16.gmra.mxu0 %v2914
        %v4414 = vpop.f32.mrf.mxu0
        %v4415 = vadd.f32 %v4326, %v4414
        %v4416 = vpop.f32.mrf.mxu0
        %v4417 = vadd.f32 %v4328, %v4416
        %4418 = vmatmul.bf16.gmra.mxu0 %v2922
        %v4419 = vpop.f32.mrf.mxu0
        %v4420 = vadd.f32 %v4331, %v4419
        %v4421 = vpop.f32.mrf.mxu0
        %v4422 = vadd.f32 %v4333, %v4421
        %4423 = vmatmul.bf16.gmra.mxu0 %v2930
        %v4424 = vpop.f32.mrf.mxu0
        %v4425 = vadd.f32 %v4336, %v4424
        %v4426 = vpop.f32.mrf.mxu0
        %v4427 = vadd.f32 %v4338, %v4426
        %4428 = vmatmul.bf16.gmra.mxu0 %v2938
        %v4429 = vpop.f32.mrf.mxu0
        %v4430 = vadd.f32 %v4341, %v4429
        %v4431 = vpop.f32.mrf.mxu0
        %v4432 = vadd.f32 %v4343, %v4431
        %4433 = vmatmul.bf16.gmra.mxu0 %v2946
        %v4434 = vpop.f32.mrf.mxu0
        %v4435 = vadd.f32 %v4346, %v4434
        %v4436 = vpop.f32.mrf.mxu0
        %v4437 = vadd.f32 %v4348, %v4436
        %4438 = vmatmul.bf16.gmra.mxu0 %v2954
        %v4439 = vpop.f32.mrf.mxu0
        %v4440 = vadd.f32 %v4351, %v4439
        %v4441 = vpop.f32.mrf.mxu0
        %v4442 = vadd.f32 %v4353, %v4441
        %4443 = vmatmul.bf16.gmra.mxu0 %v2962
        %v4444 = vpop.f32.mrf.mxu0
        %v4445 = vadd.f32 %v4356, %v4444
        %v4446 = vpop.f32.mrf.mxu0
        %v4447 = vadd.f32 %v4358, %v4446
        %4448 = vmatmul.bf16.gmra.mxu0 %v2970
        %v4449 = vpop.f32.mrf.mxu0
        %v4450 = vadd.f32 %v4361, %v4449
        %v4451 = vpop.f32.mrf.mxu0
        %v4452 = vadd.f32 %v4363, %v4451
        %4453 = vmatmul.bf16.gmra.mxu0 %v2978
        %v4454 = vpop.f32.mrf.mxu0
        %v4455 = vadd.f32 %v4366, %v4454
        %v4456 = vpop.f32.mrf.mxu0
        %v4457 = vadd.f32 %v4368, %v4456
        %4458 = vdwg.mxu0
        %4459 = vmatpush.bf16.msra.mxu0 %v3506
        %4460 = vmatpush.bf16.msra.mxu0 %v3504
        %4461 = vmatpush.bf16.msra.mxu0 %v3502
        %4462 = vmatpush.bf16.msra.mxu0 %v3500
        %4463 = vmatpush.bf16.msra.mxu0 %v3498
        %4464 = vmatpush.bf16.msra.mxu0 %v3496
        %4465 = vmatpush.bf16.msra.mxu0 %v3494
        %4466 = vmatpush.bf16.msra.mxu0 %v3492
        %4467 = vmatmul.bf16.gmra.mxu0 %v2851
        %v4468 = vpop.f32.mrf.mxu0
        %v4469 = vadd.f32 0.0, %v4468
        %v4470 = vpop.f32.mrf.mxu0
        %v4471 = vadd.f32 0.0, %v4470
        %4472 = vmatmul.bf16.gmra.mxu0 %v2859
        %v4473 = vpop.f32.mrf.mxu0
        %v4474 = vadd.f32 0.0, %v4473
        %v4475 = vpop.f32.mrf.mxu0
        %v4476 = vadd.f32 0.0, %v4475
        %4477 = vmatmul.bf16.gmra.mxu0 %v2867
        %v4478 = vpop.f32.mrf.mxu0
        %v4479 = vadd.f32 0.0, %v4478
        %v4480 = vpop.f32.mrf.mxu0
        %v4481 = vadd.f32 0.0, %v4480
        %4482 = vmatmul.bf16.gmra.mxu0 %v2875
        %v4483 = vpop.f32.mrf.mxu0
        %v4484 = vadd.f32 0.0, %v4483
        %v4485 = vpop.f32.mrf.mxu0
        %v4486 = vadd.f32 0.0, %v4485
        %4487 = vmatmul.bf16.gmra.mxu0 %v2883
        %v4488 = vpop.f32.mrf.mxu0
        %v4489 = vadd.f32 0.0, %v4488
        %v4490 = vpop.f32.mrf.mxu0
        %v4491 = vadd.f32 0.0, %v4490
        %4492 = vmatmul.bf16.gmra.mxu0 %v2891
        %v4493 = vpop.f32.mrf.mxu0
        %v4494 = vadd.f32 0.0, %v4493
        %v4495 = vpop.f32.mrf.mxu0
        %v4496 = vadd.f32 0.0, %v4495
        %4497 = vmatmul.bf16.gmra.mxu0 %v2899
        %v4498 = vpop.f32.mrf.mxu0
        %v4499 = vadd.f32 0.0, %v4498
        %v4500 = vpop.f32.mrf.mxu0
        %v4501 = vadd.f32 0.0, %v4500
        %4502 = vmatmul.bf16.gmra.mxu0 %v2907
        %v4503 = vpop.f32.mrf.mxu0
        %v4504 = vadd.f32 0.0, %v4503
        %v4505 = vpop.f32.mrf.mxu0
        %v4506 = vadd.f32 0.0, %v4505
        %4507 = vmatmul.bf16.gmra.mxu0 %v2915
        %v4508 = vpop.f32.mrf.mxu0
        %v4509 = vadd.f32 0.0, %v4508
        %v4510 = vpop.f32.mrf.mxu0
        %v4511 = vadd.f32 0.0, %v4510
        %4512 = vmatmul.bf16.gmra.mxu0 %v2923
        %v4513 = vpop.f32.mrf.mxu0
        %v4514 = vadd.f32 0.0, %v4513
        %v4515 = vpop.f32.mrf.mxu0
        %v4516 = vadd.f32 0.0, %v4515
        %4517 = vmatmul.bf16.gmra.mxu0 %v2931
        %v4518 = vpop.f32.mrf.mxu0
        %v4519 = vadd.f32 0.0, %v4518
        %v4520 = vpop.f32.mrf.mxu0
        %v4521 = vadd.f32 0.0, %v4520
        %4522 = vmatmul.bf16.gmra.mxu0 %v2939
        %v4523 = vpop.f32.mrf.mxu0
        %v4524 = vadd.f32 0.0, %v4523
        %v4525 = vpop.f32.mrf.mxu0
        %v4526 = vadd.f32 0.0, %v4525
        %4527 = vmatmul.bf16.gmra.mxu0 %v2947
        %v4528 = vpop.f32.mrf.mxu0
        %v4529 = vadd.f32 0.0, %v4528
        %v4530 = vpop.f32.mrf.mxu0
        %v4531 = vadd.f32 0.0, %v4530
        %4532 = vmatmul.bf16.gmra.mxu0 %v2955
        %v4533 = vpop.f32.mrf.mxu0
        %v4534 = vadd.f32 0.0, %v4533
        %v4535 = vpop.f32.mrf.mxu0
        %v4536 = vadd.f32 0.0, %v4535
        %4537 = vmatmul.bf16.gmra.mxu0 %v2963
        %v4538 = vpop.f32.mrf.mxu0
        %v4539 = vadd.f32 0.0, %v4538
        %v4540 = vpop.f32.mrf.mxu0
        %v4541 = vadd.f32 0.0, %v4540
        %4542 = vmatmul.bf16.gmra.mxu0 %v2971
        %v4543 = vpop.f32.mrf.mxu0
        %v4544 = vadd.f32 0.0, %v4543
        %v4545 = vpop.f32.mrf.mxu0
        %v4546 = vadd.f32 0.0, %v4545
        %4547 = vdwg.mxu0
        %4548 = vmatpush.bf16.msra.mxu0 %v3522
        %4549 = vmatpush.bf16.msra.mxu0 %v3520
        %4550 = vmatpush.bf16.msra.mxu0 %v3518
        %4551 = vmatpush.bf16.msra.mxu0 %v3516
        %4552 = vmatpush.bf16.msra.mxu0 %v3514
        %4553 = vmatpush.bf16.msra.mxu0 %v3512
        %4554 = vmatpush.bf16.msra.mxu0 %v3510
        %4555 = vmatpush.bf16.msra.mxu0 %v3508
        %4556 = vmatmul.bf16.gmra.mxu0 %v2852
        %v4557 = vpop.f32.mrf.mxu0
        %v4558 = vadd.f32 %v4469, %v4557
        %v4559 = vpop.f32.mrf.mxu0
        %v4560 = vadd.f32 %v4471, %v4559
        %4561 = vmatmul.bf16.gmra.mxu0 %v2860
        %v4562 = vpop.f32.mrf.mxu0
        %v4563 = vadd.f32 %v4474, %v4562
        %v4564 = vpop.f32.mrf.mxu0
        %v4565 = vadd.f32 %v4476, %v4564
        %4566 = vmatmul.bf16.gmra.mxu0 %v2868
        %v4567 = vpop.f32.mrf.mxu0
        %v4568 = vadd.f32 %v4479, %v4567
        %v4569 = vpop.f32.mrf.mxu0
        %v4570 = vadd.f32 %v4481, %v4569
        %4571 = vmatmul.bf16.gmra.mxu0 %v2876
        %v4572 = vpop.f32.mrf.mxu0
        %v4573 = vadd.f32 %v4484, %v4572
        %v4574 = vpop.f32.mrf.mxu0
        %v4575 = vadd.f32 %v4486, %v4574
        %4576 = vmatmul.bf16.gmra.mxu0 %v2884
        %v4577 = vpop.f32.mrf.mxu0
        %v4578 = vadd.f32 %v4489, %v4577
        %v4579 = vpop.f32.mrf.mxu0
        %v4580 = vadd.f32 %v4491, %v4579
        %4581 = vmatmul.bf16.gmra.mxu0 %v2892
        %v4582 = vpop.f32.mrf.mxu0
        %v4583 = vadd.f32 %v4494, %v4582
        %v4584 = vpop.f32.mrf.mxu0
        %v4585 = vadd.f32 %v4496, %v4584
        %4586 = vmatmul.bf16.gmra.mxu0 %v2900
        %v4587 = vpop.f32.mrf.mxu0
        %v4588 = vadd.f32 %v4499, %v4587
        %v4589 = vpop.f32.mrf.mxu0
        %v4590 = vadd.f32 %v4501, %v4589
        %4591 = vmatmul.bf16.gmra.mxu0 %v2908
        %v4592 = vpop.f32.mrf.mxu0
        %v4593 = vadd.f32 %v4504, %v4592
        %v4594 = vpop.f32.mrf.mxu0
        %v4595 = vadd.f32 %v4506, %v4594
        %4596 = vmatmul.bf16.gmra.mxu0 %v2916
        %v4597 = vpop.f32.mrf.mxu0
        %v4598 = vadd.f32 %v4509, %v4597
        %v4599 = vpop.f32.mrf.mxu0
        %v4600 = vadd.f32 %v4511, %v4599
        %4601 = vmatmul.bf16.gmra.mxu0 %v2924
        %v4602 = vpop.f32.mrf.mxu0
        %v4603 = vadd.f32 %v4514, %v4602
        %v4604 = vpop.f32.mrf.mxu0
        %v4605 = vadd.f32 %v4516, %v4604
        %4606 = vmatmul.bf16.gmra.mxu0 %v2932
        %v4607 = vpop.f32.mrf.mxu0
        %v4608 = vadd.f32 %v4519, %v4607
        %v4609 = vpop.f32.mrf.mxu0
        %v4610 = vadd.f32 %v4521, %v4609
        %4611 = vmatmul.bf16.gmra.mxu0 %v2940
        %v4612 = vpop.f32.mrf.mxu0
        %v4613 = vadd.f32 %v4524, %v4612
        %v4614 = vpop.f32.mrf.mxu0
        %v4615 = vadd.f32 %v4526, %v4614
        %4616 = vmatmul.bf16.gmra.mxu0 %v2948
        %v4617 = vpop.f32.mrf.mxu0
        %v4618 = vadd.f32 %v4529, %v4617
        %v4619 = vpop.f32.mrf.mxu0
        %v4620 = vadd.f32 %v4531, %v4619
        %4621 = vmatmul.bf16.gmra.mxu0 %v2956
        %v4622 = vpop.f32.mrf.mxu0
        %v4623 = vadd.f32 %v4534, %v4622
        %v4624 = vpop.f32.mrf.mxu0
        %v4625 = vadd.f32 %v4536, %v4624
        %4626 = vmatmul.bf16.gmra.mxu0 %v2964
        %v4627 = vpop.f32.mrf.mxu0
        %v4628 = vadd.f32 %v4539, %v4627
        %v4629 = vpop.f32.mrf.mxu0
        %v4630 = vadd.f32 %v4541, %v4629
        %4631 = vmatmul.bf16.gmra.mxu0 %v2972
        %v4632 = vpop.f32.mrf.mxu0
        %v4633 = vadd.f32 %v4544, %v4632
        %v4634 = vpop.f32.mrf.mxu0
        %v4635 = vadd.f32 %v4546, %v4634
        %4636 = vdwg.mxu0
        %4637 = vmatpush.bf16.msra.mxu0 %v3538
        %4638 = vmatpush.bf16.msra.mxu0 %v3536
        %4639 = vmatpush.bf16.msra.mxu0 %v3534
        %4640 = vmatpush.bf16.msra.mxu0 %v3532
        %4641 = vmatpush.bf16.msra.mxu0 %v3530
        %4642 = vmatpush.bf16.msra.mxu0 %v3528
        %4643 = vmatpush.bf16.msra.mxu0 %v3526
        %4644 = vmatpush.bf16.msra.mxu0 %v3524
        %4645 = vmatmul.bf16.gmra.mxu0 %v2853
        %v4646 = vpop.f32.mrf.mxu0
        %v4647 = vadd.f32 %v4558, %v4646
        %v4648 = vpop.f32.mrf.mxu0
        %v4649 = vadd.f32 %v4560, %v4648
        %4650 = vmatmul.bf16.gmra.mxu0 %v2861
        %v4651 = vpop.f32.mrf.mxu0
        %v4652 = vadd.f32 %v4563, %v4651
        %v4653 = vpop.f32.mrf.mxu0
        %v4654 = vadd.f32 %v4565, %v4653
        %4655 = vmatmul.bf16.gmra.mxu0 %v2869
        %v4656 = vpop.f32.mrf.mxu0
        %v4657 = vadd.f32 %v4568, %v4656
        %v4658 = vpop.f32.mrf.mxu0
        %v4659 = vadd.f32 %v4570, %v4658
        %4660 = vmatmul.bf16.gmra.mxu0 %v2877
        %v4661 = vpop.f32.mrf.mxu0
        %v4662 = vadd.f32 %v4573, %v4661
        %v4663 = vpop.f32.mrf.mxu0
        %v4664 = vadd.f32 %v4575, %v4663
        %4665 = vmatmul.bf16.gmra.mxu0 %v2885
        %v4666 = vpop.f32.mrf.mxu0
        %v4667 = vadd.f32 %v4578, %v4666
        %v4668 = vpop.f32.mrf.mxu0
        %v4669 = vadd.f32 %v4580, %v4668
        %4670 = vmatmul.bf16.gmra.mxu0 %v2893
        %v4671 = vpop.f32.mrf.mxu0
        %v4672 = vadd.f32 %v4583, %v4671
        %v4673 = vpop.f32.mrf.mxu0
        %v4674 = vadd.f32 %v4585, %v4673
        %4675 = vmatmul.bf16.gmra.mxu0 %v2901
        %v4676 = vpop.f32.mrf.mxu0
        %v4677 = vadd.f32 %v4588, %v4676
        %v4678 = vpop.f32.mrf.mxu0
        %v4679 = vadd.f32 %v4590, %v4678
        %4680 = vmatmul.bf16.gmra.mxu0 %v2909
        %v4681 = vpop.f32.mrf.mxu0
        %v4682 = vadd.f32 %v4593, %v4681
        %v4683 = vpop.f32.mrf.mxu0
        %v4684 = vadd.f32 %v4595, %v4683
        %4685 = vmatmul.bf16.gmra.mxu0 %v2917
        %v4686 = vpop.f32.mrf.mxu0
        %v4687 = vadd.f32 %v4598, %v4686
        %v4688 = vpop.f32.mrf.mxu0
        %v4689 = vadd.f32 %v4600, %v4688
        %4690 = vmatmul.bf16.gmra.mxu0 %v2925
        %v4691 = vpop.f32.mrf.mxu0
        %v4692 = vadd.f32 %v4603, %v4691
        %v4693 = vpop.f32.mrf.mxu0
        %v4694 = vadd.f32 %v4605, %v4693
        %4695 = vmatmul.bf16.gmra.mxu0 %v2933
        %v4696 = vpop.f32.mrf.mxu0
        %v4697 = vadd.f32 %v4608, %v4696
        %v4698 = vpop.f32.mrf.mxu0
        %v4699 = vadd.f32 %v4610, %v4698
        %4700 = vmatmul.bf16.gmra.mxu0 %v2941
        %v4701 = vpop.f32.mrf.mxu0
        %v4702 = vadd.f32 %v4613, %v4701
        %v4703 = vpop.f32.mrf.mxu0
        %v4704 = vadd.f32 %v4615, %v4703
        %4705 = vmatmul.bf16.gmra.mxu0 %v2949
        %v4706 = vpop.f32.mrf.mxu0
        %v4707 = vadd.f32 %v4618, %v4706
        %v4708 = vpop.f32.mrf.mxu0
        %v4709 = vadd.f32 %v4620, %v4708
        %4710 = vmatmul.bf16.gmra.mxu0 %v2957
        %v4711 = vpop.f32.mrf.mxu0
        %v4712 = vadd.f32 %v4623, %v4711
        %v4713 = vpop.f32.mrf.mxu0
        %v4714 = vadd.f32 %v4625, %v4713
        %4715 = vmatmul.bf16.gmra.mxu0 %v2965
        %v4716 = vpop.f32.mrf.mxu0
        %v4717 = vadd.f32 %v4628, %v4716
        %v4718 = vpop.f32.mrf.mxu0
        %v4719 = vadd.f32 %v4630, %v4718
        %4720 = vmatmul.bf16.gmra.mxu0 %v2973
        %v4721 = vpop.f32.mrf.mxu0
        %v4722 = vadd.f32 %v4633, %v4721
        %v4723 = vpop.f32.mrf.mxu0
        %v4724 = vadd.f32 %v4635, %v4723
        %4725 = vdwg.mxu0
        %4726 = vmatpush.bf16.msra.mxu0 %v3554
        %4727 = vmatpush.bf16.msra.mxu0 %v3552
        %4728 = vmatpush.bf16.msra.mxu0 %v3550
        %4729 = vmatpush.bf16.msra.mxu0 %v3548
        %4730 = vmatpush.bf16.msra.mxu0 %v3546
        %4731 = vmatpush.bf16.msra.mxu0 %v3544
        %4732 = vmatpush.bf16.msra.mxu0 %v3542
        %4733 = vmatpush.bf16.msra.mxu0 %v3540
        %4734 = vmatmul.bf16.gmra.mxu0 %v2854
        %v4735 = vpop.f32.mrf.mxu0
        %v4736 = vadd.f32 %v4647, %v4735
        %v4737 = vpop.f32.mrf.mxu0
        %v4738 = vadd.f32 %v4649, %v4737
        %4739 = vmatmul.bf16.gmra.mxu0 %v2862
        %v4740 = vpop.f32.mrf.mxu0
        %v4741 = vadd.f32 %v4652, %v4740
        %v4742 = vpop.f32.mrf.mxu0
        %v4743 = vadd.f32 %v4654, %v4742
        %4744 = vmatmul.bf16.gmra.mxu0 %v2870
        %v4745 = vpop.f32.mrf.mxu0
        %v4746 = vadd.f32 %v4657, %v4745
        %v4747 = vpop.f32.mrf.mxu0
        %v4748 = vadd.f32 %v4659, %v4747
        %4749 = vmatmul.bf16.gmra.mxu0 %v2878
        %v4750 = vpop.f32.mrf.mxu0
        %v4751 = vadd.f32 %v4662, %v4750
        %v4752 = vpop.f32.mrf.mxu0
        %v4753 = vadd.f32 %v4664, %v4752
        %4754 = vmatmul.bf16.gmra.mxu0 %v2886
        %v4755 = vpop.f32.mrf.mxu0
        %v4756 = vadd.f32 %v4667, %v4755
        %v4757 = vpop.f32.mrf.mxu0
        %v4758 = vadd.f32 %v4669, %v4757
        %4759 = vmatmul.bf16.gmra.mxu0 %v2894
        %v4760 = vpop.f32.mrf.mxu0
        %v4761 = vadd.f32 %v4672, %v4760
        %v4762 = vpop.f32.mrf.mxu0
        %v4763 = vadd.f32 %v4674, %v4762
        %4764 = vmatmul.bf16.gmra.mxu0 %v2902
        %v4765 = vpop.f32.mrf.mxu0
        %v4766 = vadd.f32 %v4677, %v4765
        %v4767 = vpop.f32.mrf.mxu0
        %v4768 = vadd.f32 %v4679, %v4767
        %4769 = vmatmul.bf16.gmra.mxu0 %v2910
        %v4770 = vpop.f32.mrf.mxu0
        %v4771 = vadd.f32 %v4682, %v4770
        %v4772 = vpop.f32.mrf.mxu0
        %v4773 = vadd.f32 %v4684, %v4772
        %4774 = vmatmul.bf16.gmra.mxu0 %v2918
        %v4775 = vpop.f32.mrf.mxu0
        %v4776 = vadd.f32 %v4687, %v4775
        %v4777 = vpop.f32.mrf.mxu0
        %v4778 = vadd.f32 %v4689, %v4777
        %4779 = vmatmul.bf16.gmra.mxu0 %v2926
        %v4780 = vpop.f32.mrf.mxu0
        %v4781 = vadd.f32 %v4692, %v4780
        %v4782 = vpop.f32.mrf.mxu0
        %v4783 = vadd.f32 %v4694, %v4782
        %4784 = vmatmul.bf16.gmra.mxu0 %v2934
        %v4785 = vpop.f32.mrf.mxu0
        %v4786 = vadd.f32 %v4697, %v4785
        %v4787 = vpop.f32.mrf.mxu0
        %v4788 = vadd.f32 %v4699, %v4787
        %4789 = vmatmul.bf16.gmra.mxu0 %v2942
        %v4790 = vpop.f32.mrf.mxu0
        %v4791 = vadd.f32 %v4702, %v4790
        %v4792 = vpop.f32.mrf.mxu0
        %v4793 = vadd.f32 %v4704, %v4792
        %4794 = vmatmul.bf16.gmra.mxu0 %v2950
        %v4795 = vpop.f32.mrf.mxu0
        %v4796 = vadd.f32 %v4707, %v4795
        %v4797 = vpop.f32.mrf.mxu0
        %v4798 = vadd.f32 %v4709, %v4797
        %4799 = vmatmul.bf16.gmra.mxu0 %v2958
        %v4800 = vpop.f32.mrf.mxu0
        %v4801 = vadd.f32 %v4712, %v4800
        %v4802 = vpop.f32.mrf.mxu0
        %v4803 = vadd.f32 %v4714, %v4802
        %4804 = vmatmul.bf16.gmra.mxu0 %v2966
        %v4805 = vpop.f32.mrf.mxu0
        %v4806 = vadd.f32 %v4717, %v4805
        %v4807 = vpop.f32.mrf.mxu0
        %v4808 = vadd.f32 %v4719, %v4807
        %4809 = vmatmul.bf16.gmra.mxu0 %v2974
        %v4810 = vpop.f32.mrf.mxu0
        %v4811 = vadd.f32 %v4722, %v4810
        %v4812 = vpop.f32.mrf.mxu0
        %v4813 = vadd.f32 %v4724, %v4812
        %4814 = vdwg.mxu0
        %4815 = vmatpush.bf16.msra.mxu0 %v3570
        %4816 = vmatpush.bf16.msra.mxu0 %v3568
        %4817 = vmatpush.bf16.msra.mxu0 %v3566
        %4818 = vmatpush.bf16.msra.mxu0 %v3564
        %4819 = vmatpush.bf16.msra.mxu0 %v3562
        %4820 = vmatpush.bf16.msra.mxu0 %v3560
        %4821 = vmatpush.bf16.msra.mxu0 %v3558
        %4822 = vmatpush.bf16.msra.mxu0 %v3556
        %4823 = vmatmul.bf16.gmra.mxu0 %v2855
        %v4824 = vpop.f32.mrf.mxu0
        %v4825 = vadd.f32 %v4736, %v4824
        %v4826 = vpop.f32.mrf.mxu0
        %v4827 = vadd.f32 %v4738, %v4826
        %4828 = vmatmul.bf16.gmra.mxu0 %v2863
        %v4829 = vpop.f32.mrf.mxu0
        %v4830 = vadd.f32 %v4741, %v4829
        %v4831 = vpop.f32.mrf.mxu0
        %v4832 = vadd.f32 %v4743, %v4831
        %4833 = vmatmul.bf16.gmra.mxu0 %v2871
        %v4834 = vpop.f32.mrf.mxu0
        %v4835 = vadd.f32 %v4746, %v4834
        %v4836 = vpop.f32.mrf.mxu0
        %v4837 = vadd.f32 %v4748, %v4836
        %4838 = vmatmul.bf16.gmra.mxu0 %v2879
        %v4839 = vpop.f32.mrf.mxu0
        %v4840 = vadd.f32 %v4751, %v4839
        %v4841 = vpop.f32.mrf.mxu0
        %v4842 = vadd.f32 %v4753, %v4841
        %4843 = vmatmul.bf16.gmra.mxu0 %v2887
        %v4844 = vpop.f32.mrf.mxu0
        %v4845 = vadd.f32 %v4756, %v4844
        %v4846 = vpop.f32.mrf.mxu0
        %v4847 = vadd.f32 %v4758, %v4846
        %4848 = vmatmul.bf16.gmra.mxu0 %v2895
        %v4849 = vpop.f32.mrf.mxu0
        %v4850 = vadd.f32 %v4761, %v4849
        %v4851 = vpop.f32.mrf.mxu0
        %v4852 = vadd.f32 %v4763, %v4851
        %4853 = vmatmul.bf16.gmra.mxu0 %v2903
        %v4854 = vpop.f32.mrf.mxu0
        %v4855 = vadd.f32 %v4766, %v4854
        %v4856 = vpop.f32.mrf.mxu0
        %v4857 = vadd.f32 %v4768, %v4856
        %4858 = vmatmul.bf16.gmra.mxu0 %v2911
        %v4859 = vpop.f32.mrf.mxu0
        %v4860 = vadd.f32 %v4771, %v4859
        %v4861 = vpop.f32.mrf.mxu0
        %v4862 = vadd.f32 %v4773, %v4861
        %4863 = vmatmul.bf16.gmra.mxu0 %v2919
        %v4864 = vpop.f32.mrf.mxu0
        %v4865 = vadd.f32 %v4776, %v4864
        %v4866 = vpop.f32.mrf.mxu0
        %v4867 = vadd.f32 %v4778, %v4866
        %4868 = vmatmul.bf16.gmra.mxu0 %v2927
        %v4869 = vpop.f32.mrf.mxu0
        %v4870 = vadd.f32 %v4781, %v4869
        %v4871 = vpop.f32.mrf.mxu0
        %v4872 = vadd.f32 %v4783, %v4871
        %4873 = vmatmul.bf16.gmra.mxu0 %v2935
        %v4874 = vpop.f32.mrf.mxu0
        %v4875 = vadd.f32 %v4786, %v4874
        %v4876 = vpop.f32.mrf.mxu0
        %v4877 = vadd.f32 %v4788, %v4876
        %4878 = vmatmul.bf16.gmra.mxu0 %v2943
        %v4879 = vpop.f32.mrf.mxu0
        %v4880 = vadd.f32 %v4791, %v4879
        %v4881 = vpop.f32.mrf.mxu0
        %v4882 = vadd.f32 %v4793, %v4881
        %4883 = vmatmul.bf16.gmra.mxu0 %v2951
        %v4884 = vpop.f32.mrf.mxu0
        %v4885 = vadd.f32 %v4796, %v4884
        %v4886 = vpop.f32.mrf.mxu0
        %v4887 = vadd.f32 %v4798, %v4886
        %4888 = vmatmul.bf16.gmra.mxu0 %v2959
        %v4889 = vpop.f32.mrf.mxu0
        %v4890 = vadd.f32 %v4801, %v4889
        %v4891 = vpop.f32.mrf.mxu0
        %v4892 = vadd.f32 %v4803, %v4891
        %4893 = vmatmul.bf16.gmra.mxu0 %v2967
        %v4894 = vpop.f32.mrf.mxu0
        %v4895 = vadd.f32 %v4806, %v4894
        %v4896 = vpop.f32.mrf.mxu0
        %v4897 = vadd.f32 %v4808, %v4896
        %4898 = vmatmul.bf16.gmra.mxu0 %v2975
        %v4899 = vpop.f32.mrf.mxu0
        %v4900 = vadd.f32 %v4811, %v4899
        %v4901 = vpop.f32.mrf.mxu0
        %v4902 = vadd.f32 %v4813, %v4901
        %4903 = vdwg.mxu0
        %4904 = vmatpush.bf16.msra.mxu0 %v3586
        %4905 = vmatpush.bf16.msra.mxu0 %v3584
        %4906 = vmatpush.bf16.msra.mxu0 %v3582
        %4907 = vmatpush.bf16.msra.mxu0 %v3580
        %4908 = vmatpush.bf16.msra.mxu0 %v3578
        %4909 = vmatpush.bf16.msra.mxu0 %v3576
        %4910 = vmatpush.bf16.msra.mxu0 %v3574
        %4911 = vmatpush.bf16.msra.mxu0 %v3572
        %4912 = vmatmul.bf16.gmra.mxu0 %v2856
        %v4913 = vpop.f32.mrf.mxu0
        %v4914 = vadd.f32 %v4825, %v4913
        %v4915 = vpop.f32.mrf.mxu0
        %v4916 = vadd.f32 %v4827, %v4915
        %4917 = vmatmul.bf16.gmra.mxu0 %v2864
        %v4918 = vpop.f32.mrf.mxu0
        %v4919 = vadd.f32 %v4830, %v4918
        %v4920 = vpop.f32.mrf.mxu0
        %v4921 = vadd.f32 %v4832, %v4920
        %4922 = vmatmul.bf16.gmra.mxu0 %v2872
        %v4923 = vpop.f32.mrf.mxu0
        %v4924 = vadd.f32 %v4835, %v4923
        %v4925 = vpop.f32.mrf.mxu0
        %v4926 = vadd.f32 %v4837, %v4925
        %4927 = vmatmul.bf16.gmra.mxu0 %v2880
        %v4928 = vpop.f32.mrf.mxu0
        %v4929 = vadd.f32 %v4840, %v4928
        %v4930 = vpop.f32.mrf.mxu0
        %v4931 = vadd.f32 %v4842, %v4930
        %4932 = vmatmul.bf16.gmra.mxu0 %v2888
        %v4933 = vpop.f32.mrf.mxu0
        %v4934 = vadd.f32 %v4845, %v4933
        %v4935 = vpop.f32.mrf.mxu0
        %v4936 = vadd.f32 %v4847, %v4935
        %4937 = vmatmul.bf16.gmra.mxu0 %v2896
        %v4938 = vpop.f32.mrf.mxu0
        %v4939 = vadd.f32 %v4850, %v4938
        %v4940 = vpop.f32.mrf.mxu0
        %v4941 = vadd.f32 %v4852, %v4940
        %4942 = vmatmul.bf16.gmra.mxu0 %v2904
        %v4943 = vpop.f32.mrf.mxu0
        %v4944 = vadd.f32 %v4855, %v4943
        %v4945 = vpop.f32.mrf.mxu0
        %v4946 = vadd.f32 %v4857, %v4945
        %4947 = vmatmul.bf16.gmra.mxu0 %v2912
        %v4948 = vpop.f32.mrf.mxu0
        %v4949 = vadd.f32 %v4860, %v4948
        %v4950 = vpop.f32.mrf.mxu0
        %v4951 = vadd.f32 %v4862, %v4950
        %4952 = vmatmul.bf16.gmra.mxu0 %v2920
        %v4953 = vpop.f32.mrf.mxu0
        %v4954 = vadd.f32 %v4865, %v4953
        %v4955 = vpop.f32.mrf.mxu0
        %v4956 = vadd.f32 %v4867, %v4955
        %4957 = vmatmul.bf16.gmra.mxu0 %v2928
        %v4958 = vpop.f32.mrf.mxu0
        %v4959 = vadd.f32 %v4870, %v4958
        %v4960 = vpop.f32.mrf.mxu0
        %v4961 = vadd.f32 %v4872, %v4960
        %4962 = vmatmul.bf16.gmra.mxu0 %v2936
        %v4963 = vpop.f32.mrf.mxu0
        %v4964 = vadd.f32 %v4875, %v4963
        %v4965 = vpop.f32.mrf.mxu0
        %v4966 = vadd.f32 %v4877, %v4965
        %4967 = vmatmul.bf16.gmra.mxu0 %v2944
        %v4968 = vpop.f32.mrf.mxu0
        %v4969 = vadd.f32 %v4880, %v4968
        %v4970 = vpop.f32.mrf.mxu0
        %v4971 = vadd.f32 %v4882, %v4970
        %4972 = vmatmul.bf16.gmra.mxu0 %v2952
        %v4973 = vpop.f32.mrf.mxu0
        %v4974 = vadd.f32 %v4885, %v4973
        %v4975 = vpop.f32.mrf.mxu0
        %v4976 = vadd.f32 %v4887, %v4975
        %4977 = vmatmul.bf16.gmra.mxu0 %v2960
        %v4978 = vpop.f32.mrf.mxu0
        %v4979 = vadd.f32 %v4890, %v4978
        %v4980 = vpop.f32.mrf.mxu0
        %v4981 = vadd.f32 %v4892, %v4980
        %4982 = vmatmul.bf16.gmra.mxu0 %v2968
        %v4983 = vpop.f32.mrf.mxu0
        %v4984 = vadd.f32 %v4895, %v4983
        %v4985 = vpop.f32.mrf.mxu0
        %v4986 = vadd.f32 %v4897, %v4985
        %4987 = vmatmul.bf16.gmra.mxu0 %v2976
        %v4988 = vpop.f32.mrf.mxu0
        %v4989 = vadd.f32 %v4900, %v4988
        %v4990 = vpop.f32.mrf.mxu0
        %v4991 = vadd.f32 %v4902, %v4990
        %4992 = vdwg.mxu0
        %4993 = vmatpush.bf16.msra.mxu0 %v3602
        %4994 = vmatpush.bf16.msra.mxu0 %v3600
        %4995 = vmatpush.bf16.msra.mxu0 %v3598
        %4996 = vmatpush.bf16.msra.mxu0 %v3596
        %4997 = vmatpush.bf16.msra.mxu0 %v3594
        %4998 = vmatpush.bf16.msra.mxu0 %v3592
        %4999 = vmatpush.bf16.msra.mxu0 %v3590
        %5000 = vmatpush.bf16.msra.mxu0 %v3588
        %5001 = vmatmul.bf16.gmra.mxu0 %v2857
        %v5002 = vpop.f32.mrf.mxu0
        %v5003 = vadd.f32 %v4914, %v5002
        %v5004 = vpop.f32.mrf.mxu0
        %v5005 = vadd.f32 %v4916, %v5004
        %5006 = vmatmul.bf16.gmra.mxu0 %v2865
        %v5007 = vpop.f32.mrf.mxu0
        %v5008 = vadd.f32 %v4919, %v5007
        %v5009 = vpop.f32.mrf.mxu0
        %v5010 = vadd.f32 %v4921, %v5009
        %5011 = vmatmul.bf16.gmra.mxu0 %v2873
        %v5012 = vpop.f32.mrf.mxu0
        %v5013 = vadd.f32 %v4924, %v5012
        %v5014 = vpop.f32.mrf.mxu0
        %v5015 = vadd.f32 %v4926, %v5014
        %5016 = vmatmul.bf16.gmra.mxu0 %v2881
        %v5017 = vpop.f32.mrf.mxu0
        %v5018 = vadd.f32 %v4929, %v5017
        %v5019 = vpop.f32.mrf.mxu0
        %v5020 = vadd.f32 %v4931, %v5019
        %5021 = vmatmul.bf16.gmra.mxu0 %v2889
        %v5022 = vpop.f32.mrf.mxu0
        %v5023 = vadd.f32 %v4934, %v5022
        %v5024 = vpop.f32.mrf.mxu0
        %v5025 = vadd.f32 %v4936, %v5024
        %5026 = vmatmul.bf16.gmra.mxu0 %v2897
        %v5027 = vpop.f32.mrf.mxu0
        %v5028 = vadd.f32 %v4939, %v5027
        %v5029 = vpop.f32.mrf.mxu0
        %v5030 = vadd.f32 %v4941, %v5029
        %5031 = vmatmul.bf16.gmra.mxu0 %v2905
        %v5032 = vpop.f32.mrf.mxu0
        %v5033 = vadd.f32 %v4944, %v5032
        %v5034 = vpop.f32.mrf.mxu0
        %v5035 = vadd.f32 %v4946, %v5034
        %5036 = vmatmul.bf16.gmra.mxu0 %v2913
        %v5037 = vpop.f32.mrf.mxu0
        %v5038 = vadd.f32 %v4949, %v5037
        %v5039 = vpop.f32.mrf.mxu0
        %v5040 = vadd.f32 %v4951, %v5039
        %5041 = vmatmul.bf16.gmra.mxu0 %v2921
        %v5042 = vpop.f32.mrf.mxu0
        %v5043 = vadd.f32 %v4954, %v5042
        %v5044 = vpop.f32.mrf.mxu0
        %v5045 = vadd.f32 %v4956, %v5044
        %5046 = vmatmul.bf16.gmra.mxu0 %v2929
        %v5047 = vpop.f32.mrf.mxu0
        %v5048 = vadd.f32 %v4959, %v5047
        %v5049 = vpop.f32.mrf.mxu0
        %v5050 = vadd.f32 %v4961, %v5049
        %5051 = vmatmul.bf16.gmra.mxu0 %v2937
        %v5052 = vpop.f32.mrf.mxu0
        %v5053 = vadd.f32 %v4964, %v5052
        %v5054 = vpop.f32.mrf.mxu0
        %v5055 = vadd.f32 %v4966, %v5054
        %5056 = vmatmul.bf16.gmra.mxu0 %v2945
        %v5057 = vpop.f32.mrf.mxu0
        %v5058 = vadd.f32 %v4969, %v5057
        %v5059 = vpop.f32.mrf.mxu0
        %v5060 = vadd.f32 %v4971, %v5059
        %5061 = vmatmul.bf16.gmra.mxu0 %v2953
        %v5062 = vpop.f32.mrf.mxu0
        %v5063 = vadd.f32 %v4974, %v5062
        %v5064 = vpop.f32.mrf.mxu0
        %v5065 = vadd.f32 %v4976, %v5064
        %5066 = vmatmul.bf16.gmra.mxu0 %v2961
        %v5067 = vpop.f32.mrf.mxu0
        %v5068 = vadd.f32 %v4979, %v5067
        %v5069 = vpop.f32.mrf.mxu0
        %v5070 = vadd.f32 %v4981, %v5069
        %5071 = vmatmul.bf16.gmra.mxu0 %v2969
        %v5072 = vpop.f32.mrf.mxu0
        %v5073 = vadd.f32 %v4984, %v5072
        %v5074 = vpop.f32.mrf.mxu0
        %v5075 = vadd.f32 %v4986, %v5074
        %5076 = vmatmul.bf16.gmra.mxu0 %v2977
        %v5077 = vpop.f32.mrf.mxu0
        %v5078 = vadd.f32 %v4989, %v5077
        %v5079 = vpop.f32.mrf.mxu0
        %v5080 = vadd.f32 %v4991, %v5079
        %5081 = vdwg.mxu0
        %5082 = vmatpush.bf16.msra.mxu0 %v3618
        %5083 = vmatpush.bf16.msra.mxu0 %v3616
        %5084 = vmatpush.bf16.msra.mxu0 %v3614
        %5085 = vmatpush.bf16.msra.mxu0 %v3612
        %5086 = vmatpush.bf16.msra.mxu0 %v3610
        %5087 = vmatpush.bf16.msra.mxu0 %v3608
        %5088 = vmatpush.bf16.msra.mxu0 %v3606
        %5089 = vmatpush.bf16.msra.mxu0 %v3604
        %5090 = vmatmul.bf16.gmra.mxu0 %v2858
        %v5091 = vpop.f32.mrf.mxu0
        %v5092 = vadd.f32 %v5003, %v5091
        %v5093 = vpop.f32.mrf.mxu0
        %v5094 = vadd.f32 %v5005, %v5093
        %5095 = vmatmul.bf16.gmra.mxu0 %v2866
        %v5096 = vpop.f32.mrf.mxu0
        %v5097 = vadd.f32 %v5008, %v5096
        %v5098 = vpop.f32.mrf.mxu0
        %v5099 = vadd.f32 %v5010, %v5098
        %5100 = vmatmul.bf16.gmra.mxu0 %v2874
        %v5101 = vpop.f32.mrf.mxu0
        %v5102 = vadd.f32 %v5013, %v5101
        %v5103 = vpop.f32.mrf.mxu0
        %v5104 = vadd.f32 %v5015, %v5103
        %5105 = vmatmul.bf16.gmra.mxu0 %v2882
        %v5106 = vpop.f32.mrf.mxu0
        %v5107 = vadd.f32 %v5018, %v5106
        %v5108 = vpop.f32.mrf.mxu0
        %v5109 = vadd.f32 %v5020, %v5108
        %5110 = vmatmul.bf16.gmra.mxu0 %v2890
        %v5111 = vpop.f32.mrf.mxu0
        %v5112 = vadd.f32 %v5023, %v5111
        %v5113 = vpop.f32.mrf.mxu0
        %v5114 = vadd.f32 %v5025, %v5113
        %5115 = vmatmul.bf16.gmra.mxu0 %v2898
        %v5116 = vpop.f32.mrf.mxu0
        %v5117 = vadd.f32 %v5028, %v5116
        %v5118 = vpop.f32.mrf.mxu0
        %v5119 = vadd.f32 %v5030, %v5118
        %5120 = vmatmul.bf16.gmra.mxu0 %v2906
        %v5121 = vpop.f32.mrf.mxu0
        %v5122 = vadd.f32 %v5033, %v5121
        %v5123 = vpop.f32.mrf.mxu0
        %v5124 = vadd.f32 %v5035, %v5123
        %5125 = vmatmul.bf16.gmra.mxu0 %v2914
        %v5126 = vpop.f32.mrf.mxu0
        %v5127 = vadd.f32 %v5038, %v5126
        %v5128 = vpop.f32.mrf.mxu0
        %v5129 = vadd.f32 %v5040, %v5128
        %5130 = vmatmul.bf16.gmra.mxu0 %v2922
        %v5131 = vpop.f32.mrf.mxu0
        %v5132 = vadd.f32 %v5043, %v5131
        %v5133 = vpop.f32.mrf.mxu0
        %v5134 = vadd.f32 %v5045, %v5133
        %5135 = vmatmul.bf16.gmra.mxu0 %v2930
        %v5136 = vpop.f32.mrf.mxu0
        %v5137 = vadd.f32 %v5048, %v5136
        %v5138 = vpop.f32.mrf.mxu0
        %v5139 = vadd.f32 %v5050, %v5138
        %5140 = vmatmul.bf16.gmra.mxu0 %v2938
        %v5141 = vpop.f32.mrf.mxu0
        %v5142 = vadd.f32 %v5053, %v5141
        %v5143 = vpop.f32.mrf.mxu0
        %v5144 = vadd.f32 %v5055, %v5143
        %5145 = vmatmul.bf16.gmra.mxu0 %v2946
        %v5146 = vpop.f32.mrf.mxu0
        %v5147 = vadd.f32 %v5058, %v5146
        %v5148 = vpop.f32.mrf.mxu0
        %v5149 = vadd.f32 %v5060, %v5148
        %5150 = vmatmul.bf16.gmra.mxu0 %v2954
        %v5151 = vpop.f32.mrf.mxu0
        %v5152 = vadd.f32 %v5063, %v5151
        %v5153 = vpop.f32.mrf.mxu0
        %v5154 = vadd.f32 %v5065, %v5153
        %5155 = vmatmul.bf16.gmra.mxu0 %v2962
        %v5156 = vpop.f32.mrf.mxu0
        %v5157 = vadd.f32 %v5068, %v5156
        %v5158 = vpop.f32.mrf.mxu0
        %v5159 = vadd.f32 %v5070, %v5158
        %5160 = vmatmul.bf16.gmra.mxu0 %v2970
        %v5161 = vpop.f32.mrf.mxu0
        %v5162 = vadd.f32 %v5073, %v5161
        %v5163 = vpop.f32.mrf.mxu0
        %v5164 = vadd.f32 %v5075, %v5163
        %5165 = vmatmul.bf16.gmra.mxu0 %v2978
        %v5166 = vpop.f32.mrf.mxu0
        %v5167 = vadd.f32 %v5078, %v5166
        %v5168 = vpop.f32.mrf.mxu0
        %v5169 = vadd.f32 %v5080, %v5168
        %5170 = vdwg.mxu0
        %v5171 = vmul.f32 %v1752, %v4380
        %v5172 = vmul.f32 %v1752, %v5092
        %v5173 = vmul.f32 %v1752, %v4382
        %v5174 = vmul.f32 %v1752, %v5094
        %v5175 = vmul.f32 %v1752, %v4385
        %v5176 = vmul.f32 %v1752, %v5097
        %v5177 = vmul.f32 %v1752, %v4387
        %v5178 = vmul.f32 %v1752, %v5099
        %v5179 = vmul.f32 %v1752, %v4390
        %v5180 = vmul.f32 %v1752, %v5102
        %v5181 = vmul.f32 %v1752, %v4392
        %v5182 = vmul.f32 %v1752, %v5104
        %v5183 = vmul.f32 %v1752, %v4395
        %v5184 = vmul.f32 %v1752, %v5107
        %v5185 = vmul.f32 %v1752, %v4397
        %v5186 = vmul.f32 %v1752, %v5109
        %v5187 = vmul.f32 %v1752, %v4400
        %v5188 = vmul.f32 %v1752, %v5112
        %v5189 = vmul.f32 %v1752, %v4402
        %v5190 = vmul.f32 %v1752, %v5114
        %v5191 = vmul.f32 %v1752, %v4405
        %v5192 = vmul.f32 %v1752, %v5117
        %v5193 = vmul.f32 %v1752, %v4407
        %v5194 = vmul.f32 %v1752, %v5119
        %v5195 = vmul.f32 %v1752, %v4410
        %v5196 = vmul.f32 %v1752, %v5122
        %v5197 = vmul.f32 %v1752, %v4412
        %v5198 = vmul.f32 %v1752, %v5124
        %v5199 = vmul.f32 %v1752, %v4415
        %v5200 = vmul.f32 %v1752, %v5127
        %v5201 = vmul.f32 %v1752, %v4417
        %v5202 = vmul.f32 %v1752, %v5129
        %v5203 = vmul.f32 %v1762, %v4420
        %v5204 = vmul.f32 %v1762, %v5132
        %v5205 = vmul.f32 %v1762, %v4422
        %v5206 = vmul.f32 %v1762, %v5134
        %v5207 = vmul.f32 %v1762, %v4425
        %v5208 = vmul.f32 %v1762, %v5137
        %v5209 = vmul.f32 %v1762, %v4427
        %v5210 = vmul.f32 %v1762, %v5139
        %v5211 = vmul.f32 %v1762, %v4430
        %v5212 = vmul.f32 %v1762, %v5142
        %v5213 = vmul.f32 %v1762, %v4432
        %v5214 = vmul.f32 %v1762, %v5144
        %v5215 = vmul.f32 %v1762, %v4435
        %v5216 = vmul.f32 %v1762, %v5147
        %v5217 = vmul.f32 %v1762, %v4437
        %v5218 = vmul.f32 %v1762, %v5149
        %v5219 = vmul.f32 %v1762, %v4440
        %v5220 = vmul.f32 %v1762, %v5152
        %v5221 = vmul.f32 %v1762, %v4442
        %v5222 = vmul.f32 %v1762, %v5154
        %v5223 = vmul.f32 %v1762, %v4445
        %v5224 = vmul.f32 %v1762, %v5157
        %v5225 = vmul.f32 %v1762, %v4447
        %v5226 = vmul.f32 %v1762, %v5159
        %v5227 = vmul.f32 %v1762, %v4450
        %v5228 = vmul.f32 %v1762, %v5162
        %v5229 = vmul.f32 %v1762, %v4452
        %v5230 = vmul.f32 %v1762, %v5164
        %v5231 = vmul.f32 %v1762, %v4455
        %v5232 = vmul.f32 %v1762, %v5167
        %v5233 = vmul.f32 %v1762, %v4457
        %v5234 = vmul.f32 %v1762, %v5169
        %v5235 = vmul.f32 %v1752, %v1123
        %v5236 = vmul.f32 %v1762, %v1124
        %v5237 = vld [vmem:[#allocation8] sm:$0xff]
        %v5238 = vld [vmem:[#allocation8 + $0x8] sm:$0xff]
        %v5239 = vld [vmem:[#allocation8 + $0x10] sm:$0xff]
        %v5240 = vld [vmem:[#allocation8 + $0x18] sm:$0xff]
        %v5241 = vld [vmem:[#allocation8 + $0x20] sm:$0xff]
        %v5242 = vld [vmem:[#allocation8 + $0x28] sm:$0xff]
        %v5243 = vld [vmem:[#allocation8 + $0x30] sm:$0xff]
        %v5244 = vld [vmem:[#allocation8 + $0x38] sm:$0xff]
        %v5245 = vld [vmem:[#allocation8 + $0x40] sm:$0xff]
        %v5246 = vld [vmem:[#allocation8 + $0x48] sm:$0xff]
        %v5247 = vld [vmem:[#allocation8 + $0x50] sm:$0xff]
        %v5248 = vld [vmem:[#allocation8 + $0x58] sm:$0xff]
        %v5249 = vld [vmem:[#allocation8 + $0x60] sm:$0xff]
        %v5250 = vld [vmem:[#allocation8 + $0x68] sm:$0xff]
        %v5251 = vld [vmem:[#allocation8 + $0x70] sm:$0xff]
        %v5252 = vld [vmem:[#allocation8 + $0x78] sm:$0xff]
        %v5253 = vld [vmem:[#allocation8 + $0x80] sm:$0xff]
        %v5254 = vld [vmem:[#allocation8 + $0x88] sm:$0xff]
        %v5255 = vld [vmem:[#allocation8 + $0x90] sm:$0xff]
        %v5256 = vld [vmem:[#allocation8 + $0x98] sm:$0xff]
        %v5257 = vld [vmem:[#allocation8 + $0xa0] sm:$0xff]
        %v5258 = vld [vmem:[#allocation8 + $0xa8] sm:$0xff]
        %v5259 = vld [vmem:[#allocation8 + $0xb0] sm:$0xff]
        %v5260 = vld [vmem:[#allocation8 + $0xb8] sm:$0xff]
        %v5261 = vld [vmem:[#allocation8 + $0xc0] sm:$0xff]
        %v5262 = vld [vmem:[#allocation8 + $0xc8] sm:$0xff]
        %v5263 = vld [vmem:[#allocation8 + $0xd0] sm:$0xff]
        %v5264 = vld [vmem:[#allocation8 + $0xd8] sm:$0xff]
        %v5265 = vld [vmem:[#allocation8 + $0xe0] sm:$0xff]
        %v5266 = vld [vmem:[#allocation8 + $0xe8] sm:$0xff]
        %v5267 = vld [vmem:[#allocation8 + $0xf0] sm:$0xff]
        %v5268 = vld [vmem:[#allocation8 + $0xf8] sm:$0xff]
        %v5269 = vmul.f32 %v5235, %v5237
        %v5270 = vmul.f32 %v5235, %v5238
        %v5271 = vmul.f32 %v5235, %v5239
        %v5272 = vmul.f32 %v5235, %v5240
        %v5273 = vmul.f32 %v5235, %v5241
        %v5274 = vmul.f32 %v5235, %v5242
        %v5275 = vmul.f32 %v5235, %v5243
        %v5276 = vmul.f32 %v5235, %v5244
        %v5277 = vmul.f32 %v5235, %v5245
        %v5278 = vmul.f32 %v5235, %v5246
        %v5279 = vmul.f32 %v5235, %v5247
        %v5280 = vmul.f32 %v5235, %v5248
        %v5281 = vmul.f32 %v5235, %v5249
        %v5282 = vmul.f32 %v5235, %v5250
        %v5283 = vmul.f32 %v5235, %v5251
        %v5284 = vmul.f32 %v5235, %v5252
        %v5285 = vmul.f32 %v5235, %v5253
        %v5286 = vmul.f32 %v5235, %v5254
        %v5287 = vmul.f32 %v5235, %v5255
        %v5288 = vmul.f32 %v5235, %v5256
        %v5289 = vmul.f32 %v5235, %v5257
        %v5290 = vmul.f32 %v5235, %v5258
        %v5291 = vmul.f32 %v5235, %v5259
        %v5292 = vmul.f32 %v5235, %v5260
        %v5293 = vmul.f32 %v5235, %v5261
        %v5294 = vmul.f32 %v5235, %v5262
        %v5295 = vmul.f32 %v5235, %v5263
        %v5296 = vmul.f32 %v5235, %v5264
        %v5297 = vmul.f32 %v5235, %v5265
        %v5298 = vmul.f32 %v5235, %v5266
        %v5299 = vmul.f32 %v5235, %v5267
        %v5300 = vmul.f32 %v5235, %v5268
        %v5301 = vmul.f32 %v5236, %v5237
        %v5302 = vmul.f32 %v5236, %v5238
        %v5303 = vmul.f32 %v5236, %v5239
        %v5304 = vmul.f32 %v5236, %v5240
        %v5305 = vmul.f32 %v5236, %v5241
        %v5306 = vmul.f32 %v5236, %v5242
        %v5307 = vmul.f32 %v5236, %v5243
        %v5308 = vmul.f32 %v5236, %v5244
        %v5309 = vmul.f32 %v5236, %v5245
        %v5310 = vmul.f32 %v5236, %v5246
        %v5311 = vmul.f32 %v5236, %v5247
        %v5312 = vmul.f32 %v5236, %v5248
        %v5313 = vmul.f32 %v5236, %v5249
        %v5314 = vmul.f32 %v5236, %v5250
        %v5315 = vmul.f32 %v5236, %v5251
        %v5316 = vmul.f32 %v5236, %v5252
        %v5317 = vmul.f32 %v5236, %v5253
        %v5318 = vmul.f32 %v5236, %v5254
        %v5319 = vmul.f32 %v5236, %v5255
        %v5320 = vmul.f32 %v5236, %v5256
        %v5321 = vmul.f32 %v5236, %v5257
        %v5322 = vmul.f32 %v5236, %v5258
        %v5323 = vmul.f32 %v5236, %v5259
        %v5324 = vmul.f32 %v5236, %v5260
        %v5325 = vmul.f32 %v5236, %v5261
        %v5326 = vmul.f32 %v5236, %v5262
        %v5327 = vmul.f32 %v5236, %v5263
        %v5328 = vmul.f32 %v5236, %v5264
        %v5329 = vmul.f32 %v5236, %v5265
        %v5330 = vmul.f32 %v5236, %v5266
        %v5331 = vmul.f32 %v5236, %v5267
        %v5332 = vmul.f32 %v5236, %v5268
        %v5333 = vsub.f32 %v5171, %v5269
        %v5334 = vsub.f32 %v5172, %v5270
        %v5335 = vsub.f32 %v5173, %v5271
        %v5336 = vsub.f32 %v5174, %v5272
        %v5337 = vsub.f32 %v5175, %v5273
        %v5338 = vsub.f32 %v5176, %v5274
        %v5339 = vsub.f32 %v5177, %v5275
        %v5340 = vsub.f32 %v5178, %v5276
        %v5341 = vsub.f32 %v5179, %v5277
        %v5342 = vsub.f32 %v5180, %v5278
        %v5343 = vsub.f32 %v5181, %v5279
        %v5344 = vsub.f32 %v5182, %v5280
        %v5345 = vsub.f32 %v5183, %v5281
        %v5346 = vsub.f32 %v5184, %v5282
        %v5347 = vsub.f32 %v5185, %v5283
        %v5348 = vsub.f32 %v5186, %v5284
        %v5349 = vsub.f32 %v5187, %v5285
        %v5350 = vsub.f32 %v5188, %v5286
        %v5351 = vsub.f32 %v5189, %v5287
        %v5352 = vsub.f32 %v5190, %v5288
        %v5353 = vsub.f32 %v5191, %v5289
        %v5354 = vsub.f32 %v5192, %v5290
        %v5355 = vsub.f32 %v5193, %v5291
        %v5356 = vsub.f32 %v5194, %v5292
        %v5357 = vsub.f32 %v5195, %v5293
        %v5358 = vsub.f32 %v5196, %v5294
        %v5359 = vsub.f32 %v5197, %v5295
        %v5360 = vsub.f32 %v5198, %v5296
        %v5361 = vsub.f32 %v5199, %v5297
        %v5362 = vsub.f32 %v5200, %v5298
        %v5363 = vsub.f32 %v5201, %v5299
        %v5364 = vsub.f32 %v5202, %v5300
        %v5365 = vsub.f32 %v5203, %v5301
        %v5366 = vsub.f32 %v5204, %v5302
        %v5367 = vsub.f32 %v5205, %v5303
        %v5368 = vsub.f32 %v5206, %v5304
        %v5369 = vsub.f32 %v5207, %v5305
        %v5370 = vsub.f32 %v5208, %v5306
        %v5371 = vsub.f32 %v5209, %v5307
        %v5372 = vsub.f32 %v5210, %v5308
        %v5373 = vsub.f32 %v5211, %v5309
        %v5374 = vsub.f32 %v5212, %v5310
        %v5375 = vsub.f32 %v5213, %v5311
        %v5376 = vsub.f32 %v5214, %v5312
        %v5377 = vsub.f32 %v5215, %v5313
        %v5378 = vsub.f32 %v5216, %v5314
        %v5379 = vsub.f32 %v5217, %v5315
        %v5380 = vsub.f32 %v5218, %v5316
        %v5381 = vsub.f32 %v5219, %v5317
        %v5382 = vsub.f32 %v5220, %v5318
        %v5383 = vsub.f32 %v5221, %v5319
        %v5384 = vsub.f32 %v5222, %v5320
        %v5385 = vsub.f32 %v5223, %v5321
        %v5386 = vsub.f32 %v5224, %v5322
        %v5387 = vsub.f32 %v5225, %v5323
        %v5388 = vsub.f32 %v5226, %v5324
        %v5389 = vsub.f32 %v5227, %v5325
        %v5390 = vsub.f32 %v5228, %v5326
        %v5391 = vsub.f32 %v5229, %v5327
        %v5392 = vsub.f32 %v5230, %v5328
        %v5393 = vsub.f32 %v5231, %v5329
        %v5394 = vsub.f32 %v5232, %v5330
        %v5395 = vsub.f32 %v5233, %v5331
        %v5396 = vsub.f32 %v5234, %v5332
        %v5397 = vld [vmem:[#allocation10] sm:$0xff]
        %v5398 = vld [vmem:[#allocation10 + $0x8] sm:$0xff]
        %v5399 = vld [vmem:[#allocation10 + $0x10] sm:$0xff]
        %v5400 = vld [vmem:[#allocation10 + $0x18] sm:$0xff]
        %v5401 = vld [vmem:[#allocation10 + $0x20] sm:$0xff]
        %v5402 = vld [vmem:[#allocation10 + $0x28] sm:$0xff]
        %v5403 = vld [vmem:[#allocation10 + $0x30] sm:$0xff]
        %v5404 = vld [vmem:[#allocation10 + $0x38] sm:$0xff]
        %v5405 = vld [vmem:[#allocation10 + $0x40] sm:$0xff]
        %v5406 = vld [vmem:[#allocation10 + $0x48] sm:$0xff]
        %v5407 = vld [vmem:[#allocation10 + $0x50] sm:$0xff]
        %v5408 = vld [vmem:[#allocation10 + $0x58] sm:$0xff]
        %v5409 = vld [vmem:[#allocation10 + $0x60] sm:$0xff]
        %v5410 = vld [vmem:[#allocation10 + $0x68] sm:$0xff]
        %v5411 = vld [vmem:[#allocation10 + $0x70] sm:$0xff]
        %v5412 = vld [vmem:[#allocation10 + $0x78] sm:$0xff]
        %v5413 = vld [vmem:[#allocation10 + $0x80] sm:$0xff]
        %v5414 = vld [vmem:[#allocation10 + $0x88] sm:$0xff]
        %v5415 = vld [vmem:[#allocation10 + $0x90] sm:$0xff]
        %v5416 = vld [vmem:[#allocation10 + $0x98] sm:$0xff]
        %v5417 = vld [vmem:[#allocation10 + $0xa0] sm:$0xff]
        %v5418 = vld [vmem:[#allocation10 + $0xa8] sm:$0xff]
        %v5419 = vld [vmem:[#allocation10 + $0xb0] sm:$0xff]
        %v5420 = vld [vmem:[#allocation10 + $0xb8] sm:$0xff]
        %v5421 = vld [vmem:[#allocation10 + $0xc0] sm:$0xff]
        %v5422 = vld [vmem:[#allocation10 + $0xc8] sm:$0xff]
        %v5423 = vld [vmem:[#allocation10 + $0xd0] sm:$0xff]
        %v5424 = vld [vmem:[#allocation10 + $0xd8] sm:$0xff]
        %v5425 = vld [vmem:[#allocation10 + $0xe0] sm:$0xff]
        %v5426 = vld [vmem:[#allocation10 + $0xe8] sm:$0xff]
        %v5427 = vld [vmem:[#allocation10 + $0xf0] sm:$0xff]
        %v5428 = vld [vmem:[#allocation10 + $0xf8] sm:$0xff]
        %v5429 = vadd.f32 %v5333, %v5397
        %v5430 = vadd.f32 %v5334, %v5398
        %v5431 = vadd.f32 %v5335, %v5399
        %v5432 = vadd.f32 %v5336, %v5400
        %v5433 = vadd.f32 %v5337, %v5401
        %v5434 = vadd.f32 %v5338, %v5402
        %v5435 = vadd.f32 %v5339, %v5403
        %v5436 = vadd.f32 %v5340, %v5404
        %v5437 = vadd.f32 %v5341, %v5405
        %v5438 = vadd.f32 %v5342, %v5406
        %v5439 = vadd.f32 %v5343, %v5407
        %v5440 = vadd.f32 %v5344, %v5408
        %v5441 = vadd.f32 %v5345, %v5409
        %v5442 = vadd.f32 %v5346, %v5410
        %v5443 = vadd.f32 %v5347, %v5411
        %v5444 = vadd.f32 %v5348, %v5412
        %v5445 = vadd.f32 %v5349, %v5413
        %v5446 = vadd.f32 %v5350, %v5414
        %v5447 = vadd.f32 %v5351, %v5415
        %v5448 = vadd.f32 %v5352, %v5416
        %v5449 = vadd.f32 %v5353, %v5417
        %v5450 = vadd.f32 %v5354, %v5418
        %v5451 = vadd.f32 %v5355, %v5419
        %v5452 = vadd.f32 %v5356, %v5420
        %v5453 = vadd.f32 %v5357, %v5421
        %v5454 = vadd.f32 %v5358, %v5422
        %v5455 = vadd.f32 %v5359, %v5423
        %v5456 = vadd.f32 %v5360, %v5424
        %v5457 = vadd.f32 %v5361, %v5425
        %v5458 = vadd.f32 %v5362, %v5426
        %v5459 = vadd.f32 %v5363, %v5427
        %v5460 = vadd.f32 %v5364, %v5428
        %v5461 = vadd.f32 %v5365, %v5397
        %v5462 = vadd.f32 %v5366, %v5398
        %v5463 = vadd.f32 %v5367, %v5399
        %v5464 = vadd.f32 %v5368, %v5400
        %v5465 = vadd.f32 %v5369, %v5401
        %v5466 = vadd.f32 %v5370, %v5402
        %v5467 = vadd.f32 %v5371, %v5403
        %v5468 = vadd.f32 %v5372, %v5404
        %v5469 = vadd.f32 %v5373, %v5405
        %v5470 = vadd.f32 %v5374, %v5406
        %v5471 = vadd.f32 %v5375, %v5407
        %v5472 = vadd.f32 %v5376, %v5408
        %v5473 = vadd.f32 %v5377, %v5409
        %v5474 = vadd.f32 %v5378, %v5410
        %v5475 = vadd.f32 %v5379, %v5411
        %v5476 = vadd.f32 %v5380, %v5412
        %v5477 = vadd.f32 %v5381, %v5413
        %v5478 = vadd.f32 %v5382, %v5414
        %v5479 = vadd.f32 %v5383, %v5415
        %v5480 = vadd.f32 %v5384, %v5416
        %v5481 = vadd.f32 %v5385, %v5417
        %v5482 = vadd.f32 %v5386, %v5418
        %v5483 = vadd.f32 %v5387, %v5419
        %v5484 = vadd.f32 %v5388, %v5420
        %v5485 = vadd.f32 %v5389, %v5421
        %v5486 = vadd.f32 %v5390, %v5422
        %v5487 = vadd.f32 %v5391, %v5423
        %v5488 = vadd.f32 %v5392, %v5424
        %v5489 = vadd.f32 %v5393, %v5425
        %v5490 = vadd.f32 %v5394, %v5426
        %v5491 = vadd.f32 %v5395, %v5427
        %v5492 = vadd.f32 %v5396, %v5428
        %v5493 = vmax.f32 %v5429, 0.0
        %v5494 = vmax.f32 %v5430, 0.0
        %v5495 = vmax.f32 %v5431, 0.0
        %v5496 = vmax.f32 %v5432, 0.0
        %v5497 = vmax.f32 %v5433, 0.0
        %v5498 = vmax.f32 %v5434, 0.0
        %v5499 = vmax.f32 %v5435, 0.0
        %v5500 = vmax.f32 %v5436, 0.0
        %v5501 = vmax.f32 %v5437, 0.0
        %v5502 = vmax.f32 %v5438, 0.0
        %v5503 = vmax.f32 %v5439, 0.0
        %v5504 = vmax.f32 %v5440, 0.0
        %v5505 = vmax.f32 %v5441, 0.0
        %v5506 = vmax.f32 %v5442, 0.0
        %v5507 = vmax.f32 %v5443, 0.0
        %v5508 = vmax.f32 %v5444, 0.0
        %v5509 = vmax.f32 %v5445, 0.0
        %v5510 = vmax.f32 %v5446, 0.0
        %v5511 = vmax.f32 %v5447, 0.0
        %v5512 = vmax.f32 %v5448, 0.0
        %v5513 = vmax.f32 %v5449, 0.0
        %v5514 = vmax.f32 %v5450, 0.0
        %v5515 = vmax.f32 %v5451, 0.0
        %v5516 = vmax.f32 %v5452, 0.0
        %v5517 = vmax.f32 %v5453, 0.0
        %v5518 = vmax.f32 %v5454, 0.0
        %v5519 = vmax.f32 %v5455, 0.0
        %v5520 = vmax.f32 %v5456, 0.0
        %v5521 = vmax.f32 %v5457, 0.0
        %v5522 = vmax.f32 %v5458, 0.0
        %v5523 = vmax.f32 %v5459, 0.0
        %v5524 = vmax.f32 %v5460, 0.0
        %v5525 = vmax.f32 %v5461, 0.0
        %v5526 = vmax.f32 %v5462, 0.0
        %v5527 = vmax.f32 %v5463, 0.0
        %v5528 = vmax.f32 %v5464, 0.0
        %v5529 = vmax.f32 %v5465, 0.0
        %v5530 = vmax.f32 %v5466, 0.0
        %v5531 = vmax.f32 %v5467, 0.0
        %v5532 = vmax.f32 %v5468, 0.0
        %v5533 = vmax.f32 %v5469, 0.0
        %v5534 = vmax.f32 %v5470, 0.0
        %v5535 = vmax.f32 %v5471, 0.0
        %v5536 = vmax.f32 %v5472, 0.0
        %v5537 = vmax.f32 %v5473, 0.0
        %v5538 = vmax.f32 %v5474, 0.0
        %v5539 = vmax.f32 %v5475, 0.0
        %v5540 = vmax.f32 %v5476, 0.0
        %v5541 = vmax.f32 %v5477, 0.0
        %v5542 = vmax.f32 %v5478, 0.0
        %v5543 = vmax.f32 %v5479, 0.0
        %v5544 = vmax.f32 %v5480, 0.0
        %v5545 = vmax.f32 %v5481, 0.0
        %v5546 = vmax.f32 %v5482, 0.0
        %v5547 = vmax.f32 %v5483, 0.0
        %v5548 = vmax.f32 %v5484, 0.0
        %v5549 = vmax.f32 %v5485, 0.0
        %v5550 = vmax.f32 %v5486, 0.0
        %v5551 = vmax.f32 %v5487, 0.0
        %v5552 = vmax.f32 %v5488, 0.0
        %v5553 = vmax.f32 %v5489, 0.0
        %v5554 = vmax.f32 %v5490, 0.0
        %v5555 = vmax.f32 %v5491, 0.0
        %v5556 = vmax.f32 %v5492, 0.0
        %v5557 = vpack.c.bf16 %v5494, %v5493
        %v5558 = vpack.c.bf16 %v5496, %v5495
        %v5559 = vpack.c.bf16 %v5498, %v5497
        %v5560 = vpack.c.bf16 %v5500, %v5499
        %v5561 = vpack.c.bf16 %v5502, %v5501
        %v5562 = vpack.c.bf16 %v5504, %v5503
        %v5563 = vpack.c.bf16 %v5506, %v5505
        %v5564 = vpack.c.bf16 %v5508, %v5507
        %v5565 = vpack.c.bf16 %v5510, %v5509
        %v5566 = vpack.c.bf16 %v5512, %v5511
        %v5567 = vpack.c.bf16 %v5514, %v5513
        %v5568 = vpack.c.bf16 %v5516, %v5515
        %v5569 = vpack.c.bf16 %v5518, %v5517
        %v5570 = vpack.c.bf16 %v5520, %v5519
        %v5571 = vpack.c.bf16 %v5522, %v5521
        %v5572 = vpack.c.bf16 %v5524, %v5523
        %v5573 = vpack.c.bf16 %v5526, %v5525
        %v5574 = vpack.c.bf16 %v5528, %v5527
        %v5575 = vpack.c.bf16 %v5530, %v5529
        %v5576 = vpack.c.bf16 %v5532, %v5531
        %v5577 = vpack.c.bf16 %v5534, %v5533
        %v5578 = vpack.c.bf16 %v5536, %v5535
        %v5579 = vpack.c.bf16 %v5538, %v5537
        %v5580 = vpack.c.bf16 %v5540, %v5539
        %v5581 = vpack.c.bf16 %v5542, %v5541
        %v5582 = vpack.c.bf16 %v5544, %v5543
        %v5583 = vpack.c.bf16 %v5546, %v5545
        %v5584 = vpack.c.bf16 %v5548, %v5547
        %v5585 = vpack.c.bf16 %v5550, %v5549
        %v5586 = vpack.c.bf16 %v5552, %v5551
        %v5587 = vpack.c.bf16 %v5554, %v5553
        %v5588 = vpack.c.bf16 %v5556, %v5555
        %v5589 = vld [vmem:[#allocation11] sm:$0xf]
        %v5590 = vld [vmem:[#allocation11 + $0x4] sm:$0xf]
        %v5591 = vld [vmem:[#allocation11 + $0x8] sm:$0xf]
        %v5592 = vld [vmem:[#allocation11 + $0xc] sm:$0xf]
        %v5593 = vld [vmem:[#allocation11 + $0x10] sm:$0xf]
        %v5594 = vld [vmem:[#allocation11 + $0x14] sm:$0xf]
        %v5595 = vld [vmem:[#allocation11 + $0x18] sm:$0xf]
        %v5596 = vld [vmem:[#allocation11 + $0x1c] sm:$0xf]
        %v5597 = vld [vmem:[#allocation11 + $0x20] sm:$0xf]
        %v5598 = vld [vmem:[#allocation11 + $0x24] sm:$0xf]
        %v5599 = vld [vmem:[#allocation11 + $0x28] sm:$0xf]
        %v5600 = vld [vmem:[#allocation11 + $0x2c] sm:$0xf]
        %v5601 = vld [vmem:[#allocation11 + $0x30] sm:$0xf]
        %v5602 = vld [vmem:[#allocation11 + $0x34] sm:$0xf]
        %v5603 = vld [vmem:[#allocation11 + $0x38] sm:$0xf]
        %v5604 = vld [vmem:[#allocation11 + $0x3c] sm:$0xf]
        %v5605 = vld [vmem:[#allocation11 + $0x40] sm:$0xf]
        %v5606 = vld [vmem:[#allocation11 + $0x44] sm:$0xf]
        %v5607 = vld [vmem:[#allocation11 + $0x48] sm:$0xf]
        %v5608 = vld [vmem:[#allocation11 + $0x4c] sm:$0xf]
        %v5609 = vld [vmem:[#allocation11 + $0x50] sm:$0xf]
        %v5610 = vld [vmem:[#allocation11 + $0x54] sm:$0xf]
        %v5611 = vld [vmem:[#allocation11 + $0x58] sm:$0xf]
        %v5612 = vld [vmem:[#allocation11 + $0x5c] sm:$0xf]
        %v5613 = vld [vmem:[#allocation11 + $0x60] sm:$0xf]
        %v5614 = vld [vmem:[#allocation11 + $0x64] sm:$0xf]
        %v5615 = vld [vmem:[#allocation11 + $0x68] sm:$0xf]
        %v5616 = vld [vmem:[#allocation11 + $0x6c] sm:$0xf]
        %v5617 = vld [vmem:[#allocation11 + $0x70] sm:$0xf]
        %v5618 = vld [vmem:[#allocation11 + $0x74] sm:$0xf]
        %v5619 = vld [vmem:[#allocation11 + $0x78] sm:$0xf]
        %v5620 = vld [vmem:[#allocation11 + $0x7c] sm:$0xf]
        %v5621 = vld [vmem:[%s6] sm:$0x1]
        %v5623 = vperm.slane %v5621, 0
        %v5657 = vunpack.c.l.b16 %v5557
        %v5658 = vunpack.c.h.b16 %v5557
        %v5659 = vunpack.c.l.b16 %v5558
        %v5660 = vunpack.c.h.b16 %v5558
        %v5661 = vunpack.c.l.b16 %v5559
        %v5662 = vunpack.c.h.b16 %v5559
        %v5663 = vunpack.c.l.b16 %v5560
        %v5664 = vunpack.c.h.b16 %v5560
        %v5665 = vunpack.c.l.b16 %v5561
        %v5666 = vunpack.c.h.b16 %v5561
        %v5667 = vunpack.c.l.b16 %v5562
        %v5668 = vunpack.c.h.b16 %v5562
        %v5669 = vunpack.c.l.b16 %v5563
        %v5670 = vunpack.c.h.b16 %v5563
        %v5671 = vunpack.c.l.b16 %v5564
        %v5672 = vunpack.c.h.b16 %v5564
        %v5673 = vunpack.c.l.b16 %v5565
        %v5674 = vunpack.c.h.b16 %v5565
        %v5675 = vunpack.c.l.b16 %v5566
        %v5676 = vunpack.c.h.b16 %v5566
        %v5677 = vunpack.c.l.b16 %v5567
        %v5678 = vunpack.c.h.b16 %v5567
        %v5679 = vunpack.c.l.b16 %v5568
        %v5680 = vunpack.c.h.b16 %v5568
        %v5681 = vunpack.c.l.b16 %v5569
        %v5682 = vunpack.c.h.b16 %v5569
        %v5683 = vunpack.c.l.b16 %v5570
        %v5684 = vunpack.c.h.b16 %v5570
        %v5685 = vunpack.c.l.b16 %v5571
        %v5686 = vunpack.c.h.b16 %v5571
        %v5687 = vunpack.c.l.b16 %v5572
        %v5688 = vunpack.c.h.b16 %v5572
        %v5689 = vunpack.c.l.b16 %v5573
        %v5690 = vunpack.c.h.b16 %v5573
        %v5691 = vunpack.c.l.b16 %v5574
        %v5692 = vunpack.c.h.b16 %v5574
        %v5693 = vunpack.c.l.b16 %v5575
        %v5694 = vunpack.c.h.b16 %v5575
        %v5695 = vunpack.c.l.b16 %v5576
        %v5696 = vunpack.c.h.b16 %v5576
        %v5697 = vunpack.c.l.b16 %v5577
        %v5698 = vunpack.c.h.b16 %v5577
        %v5699 = vunpack.c.l.b16 %v5578
        %v5700 = vunpack.c.h.b16 %v5578
        %v5701 = vunpack.c.l.b16 %v5579
        %v5702 = vunpack.c.h.b16 %v5579
        %v5703 = vunpack.c.l.b16 %v5580
        %v5704 = vunpack.c.h.b16 %v5580
        %v5705 = vunpack.c.l.b16 %v5581
        %v5706 = vunpack.c.h.b16 %v5581
        %v5707 = vunpack.c.l.b16 %v5582
        %v5708 = vunpack.c.h.b16 %v5582
        %v5709 = vunpack.c.l.b16 %v5583
        %v5710 = vunpack.c.h.b16 %v5583
        %v5711 = vunpack.c.l.b16 %v5584
        %v5712 = vunpack.c.h.b16 %v5584
        %v5713 = vunpack.c.l.b16 %v5585
        %v5714 = vunpack.c.h.b16 %v5585
        %v5715 = vunpack.c.l.b16 %v5586
        %v5716 = vunpack.c.h.b16 %v5586
        %v5717 = vunpack.c.l.b16 %v5587
        %v5718 = vunpack.c.h.b16 %v5587
        %v5719 = vunpack.c.l.b16 %v5588
        %v5720 = vunpack.c.h.b16 %v5588
        %v5721 = vpack.c.b16 %v5659, %v5657
        %v5722 = vpack.c.b16 %v5660, %v5658
        %v5723 = vpack.c.b16 %v5663, %v5661
        %v5724 = vpack.c.b16 %v5664, %v5662
        %v5725 = vpack.c.b16 %v5667, %v5665
        %v5726 = vpack.c.b16 %v5668, %v5666
        %v5727 = vpack.c.b16 %v5671, %v5669
        %v5728 = vpack.c.b16 %v5672, %v5670
        %v5729 = vpack.c.b16 %v5675, %v5673
        %v5730 = vpack.c.b16 %v5676, %v5674
        %v5731 = vpack.c.b16 %v5679, %v5677
        %v5732 = vpack.c.b16 %v5680, %v5678
        %v5733 = vpack.c.b16 %v5683, %v5681
        %v5734 = vpack.c.b16 %v5684, %v5682
        %v5735 = vpack.c.b16 %v5687, %v5685
        %v5736 = vpack.c.b16 %v5688, %v5686
        %v5737 = vpack.c.b16 %v5691, %v5689
        %v5738 = vpack.c.b16 %v5692, %v5690
        %v5739 = vpack.c.b16 %v5695, %v5693
        %v5740 = vpack.c.b16 %v5696, %v5694
        %v5741 = vpack.c.b16 %v5699, %v5697
        %v5742 = vpack.c.b16 %v5700, %v5698
        %v5743 = vpack.c.b16 %v5703, %v5701
        %v5744 = vpack.c.b16 %v5704, %v5702
        %v5745 = vpack.c.b16 %v5707, %v5705
        %v5746 = vpack.c.b16 %v5708, %v5706
        %v5747 = vpack.c.b16 %v5711, %v5709
        %v5748 = vpack.c.b16 %v5712, %v5710
        %v5749 = vpack.c.b16 %v5715, %v5713
        %v5750 = vpack.c.b16 %v5716, %v5714
        %v5751 = vpack.c.b16 %v5719, %v5717
        %v5752 = vpack.c.b16 %v5720, %v5718
        %v5817 = vunpack.c.l.b16 %v5589
        %v5818 = vunpack.c.l.b16 %v5590
        %v5819 = vunpack.c.l.b16 %v5591
        %v5820 = vunpack.c.l.b16 %v5592
        %v5821 = vunpack.c.l.b16 %v5593
        %v5822 = vunpack.c.l.b16 %v5594
        %v5823 = vunpack.c.l.b16 %v5595
        %v5824 = vunpack.c.l.b16 %v5596
        %v5825 = vunpack.c.l.b16 %v5597
        %v5826 = vunpack.c.l.b16 %v5598
        %v5827 = vunpack.c.l.b16 %v5599
        %v5828 = vunpack.c.l.b16 %v5600
        %v5829 = vunpack.c.l.b16 %v5601
        %v5830 = vunpack.c.l.b16 %v5602
        %v5831 = vunpack.c.l.b16 %v5603
        %v5832 = vunpack.c.l.b16 %v5604
        %v5833 = vunpack.c.l.b16 %v5605
        %v5834 = vunpack.c.l.b16 %v5606
        %v5835 = vunpack.c.l.b16 %v5607
        %v5836 = vunpack.c.l.b16 %v5608
        %v5837 = vunpack.c.l.b16 %v5609
        %v5838 = vunpack.c.l.b16 %v5610
        %v5839 = vunpack.c.l.b16 %v5611
        %v5840 = vunpack.c.l.b16 %v5612
        %v5841 = vunpack.c.l.b16 %v5613
        %v5842 = vunpack.c.l.b16 %v5614
        %v5843 = vunpack.c.l.b16 %v5615
        %v5844 = vunpack.c.l.b16 %v5616
        %v5845 = vunpack.c.l.b16 %v5617
        %v5846 = vunpack.c.l.b16 %v5618
        %v5847 = vunpack.c.l.b16 %v5619
        %v5848 = vunpack.c.l.b16 %v5620
        %v5849 = vpack.c.b16 %v5818, %v5817
        %v5850 = vpack.c.b16 %v5820, %v5819
        %v5851 = vpack.c.b16 %v5822, %v5821
        %v5852 = vpack.c.b16 %v5824, %v5823
        %v5853 = vpack.c.b16 %v5826, %v5825
        %v5854 = vpack.c.b16 %v5828, %v5827
        %v5855 = vpack.c.b16 %v5830, %v5829
        %v5856 = vpack.c.b16 %v5832, %v5831
        %v5857 = vpack.c.b16 %v5834, %v5833
        %v5858 = vpack.c.b16 %v5836, %v5835
        %v5859 = vpack.c.b16 %v5838, %v5837
        %v5860 = vpack.c.b16 %v5840, %v5839
        %v5861 = vpack.c.b16 %v5842, %v5841
        %v5862 = vpack.c.b16 %v5844, %v5843
        %v5863 = vpack.c.b16 %v5846, %v5845
        %v5864 = vpack.c.b16 %v5848, %v5847
        %5881 = vmatpush.bf16.msra.mxu0 %v5856
        %5882 = vmatpush.bf16.msra.mxu0 %v5855
        %5883 = vmatpush.bf16.msra.mxu0 %v5854
        %5884 = vmatpush.bf16.msra.mxu0 %v5853
        %5885 = vmatpush.bf16.msra.mxu0 %v5852
        %5886 = vmatpush.bf16.msra.mxu0 %v5851
        %5887 = vmatpush.bf16.msra.mxu0 %v5850
        %5888 = vmatpush.bf16.msra.mxu0 %v5849
        %5889 = vmatmul.bf16.gmra.mxu0 %v5721
        %v5890 = vpop.f32.mrf.mxu0
        %v5891 = vadd.f32 %v5623, %v5890
        %v5892 = vpop.f32.mrf.mxu0
        %v5893 = vadd.f32 %v5623, %v5892
        %5894 = vmatmul.bf16.gmra.mxu0 %v5723
        %v5895 = vpop.f32.mrf.mxu0
        %v5896 = vadd.f32 %v5623, %v5895
        %v5897 = vpop.f32.mrf.mxu0
        %v5898 = vadd.f32 %v5623, %v5897
        %5899 = vmatmul.bf16.gmra.mxu0 %v5725
        %v5900 = vpop.f32.mrf.mxu0
        %v5901 = vadd.f32 %v5623, %v5900
        %v5902 = vpop.f32.mrf.mxu0
        %v5903 = vadd.f32 %v5623, %v5902
        %5904 = vmatmul.bf16.gmra.mxu0 %v5727
        %v5905 = vpop.f32.mrf.mxu0
        %v5906 = vadd.f32 %v5623, %v5905
        %v5907 = vpop.f32.mrf.mxu0
        %v5908 = vadd.f32 %v5623, %v5907
        %5909 = vmatmul.bf16.gmra.mxu0 %v5729
        %v5910 = vpop.f32.mrf.mxu0
        %v5911 = vadd.f32 %v5623, %v5910
        %v5912 = vpop.f32.mrf.mxu0
        %v5913 = vadd.f32 %v5623, %v5912
        %5914 = vmatmul.bf16.gmra.mxu0 %v5731
        %v5915 = vpop.f32.mrf.mxu0
        %v5916 = vadd.f32 %v5623, %v5915
        %v5917 = vpop.f32.mrf.mxu0
        %v5918 = vadd.f32 %v5623, %v5917
        %5919 = vmatmul.bf16.gmra.mxu0 %v5733
        %v5920 = vpop.f32.mrf.mxu0
        %v5921 = vadd.f32 %v5623, %v5920
        %v5922 = vpop.f32.mrf.mxu0
        %v5923 = vadd.f32 %v5623, %v5922
        %5924 = vmatmul.bf16.gmra.mxu0 %v5735
        %v5925 = vpop.f32.mrf.mxu0
        %v5926 = vadd.f32 %v5623, %v5925
        %v5927 = vpop.f32.mrf.mxu0
        %v5928 = vadd.f32 %v5623, %v5927
        %5929 = vmatmul.bf16.gmra.mxu0 %v5737
        %v5930 = vpop.f32.mrf.mxu0
        %v5931 = vadd.f32 %v5623, %v5930
        %v5932 = vpop.f32.mrf.mxu0
        %v5933 = vadd.f32 %v5623, %v5932
        %5934 = vmatmul.bf16.gmra.mxu0 %v5739
        %v5935 = vpop.f32.mrf.mxu0
        %v5936 = vadd.f32 %v5623, %v5935
        %v5937 = vpop.f32.mrf.mxu0
        %v5938 = vadd.f32 %v5623, %v5937
        %5939 = vmatmul.bf16.gmra.mxu0 %v5741
        %v5940 = vpop.f32.mrf.mxu0
        %v5941 = vadd.f32 %v5623, %v5940
        %v5942 = vpop.f32.mrf.mxu0
        %v5943 = vadd.f32 %v5623, %v5942
        %5944 = vmatmul.bf16.gmra.mxu0 %v5743
        %v5945 = vpop.f32.mrf.mxu0
        %v5946 = vadd.f32 %v5623, %v5945
        %v5947 = vpop.f32.mrf.mxu0
        %v5948 = vadd.f32 %v5623, %v5947
        %5949 = vmatmul.bf16.gmra.mxu0 %v5745
        %v5950 = vpop.f32.mrf.mxu0
        %v5951 = vadd.f32 %v5623, %v5950
        %v5952 = vpop.f32.mrf.mxu0
        %v5953 = vadd.f32 %v5623, %v5952
        %5954 = vmatmul.bf16.gmra.mxu0 %v5747
        %v5955 = vpop.f32.mrf.mxu0
        %v5956 = vadd.f32 %v5623, %v5955
        %v5957 = vpop.f32.mrf.mxu0
        %v5958 = vadd.f32 %v5623, %v5957
        %5959 = vmatmul.bf16.gmra.mxu0 %v5749
        %v5960 = vpop.f32.mrf.mxu0
        %v5961 = vadd.f32 %v5623, %v5960
        %v5962 = vpop.f32.mrf.mxu0
        %v5963 = vadd.f32 %v5623, %v5962
        %5964 = vmatmul.bf16.gmra.mxu0 %v5751
        %v5965 = vpop.f32.mrf.mxu0
        %v5966 = vadd.f32 %v5623, %v5965
        %v5967 = vpop.f32.mrf.mxu0
        %v5968 = vadd.f32 %v5623, %v5967
        %5969 = vdwg.mxu0
        %5970 = vmatpush.bf16.msra.mxu0 %v5864
        %5971 = vmatpush.bf16.msra.mxu0 %v5863
        %5972 = vmatpush.bf16.msra.mxu0 %v5862
        %5973 = vmatpush.bf16.msra.mxu0 %v5861
        %5974 = vmatpush.bf16.msra.mxu0 %v5860
        %5975 = vmatpush.bf16.msra.mxu0 %v5859
        %5976 = vmatpush.bf16.msra.mxu0 %v5858
        %5977 = vmatpush.bf16.msra.mxu0 %v5857
        %5978 = vmatmul.bf16.gmra.mxu0 %v5722
        %v5979 = vpop.f32.mrf.mxu0
        %v5980 = vadd.f32 %v5891, %v5979
        %v5981 = vpop.f32.mrf.mxu0
        %v5982 = vadd.f32 %v5893, %v5981
        %5983 = vmatmul.bf16.gmra.mxu0 %v5724
        %v5984 = vpop.f32.mrf.mxu0
        %v5985 = vadd.f32 %v5896, %v5984
        %v5986 = vpop.f32.mrf.mxu0
        %v5987 = vadd.f32 %v5898, %v5986
        %5988 = vmatmul.bf16.gmra.mxu0 %v5726
        %v5989 = vpop.f32.mrf.mxu0
        %v5990 = vadd.f32 %v5901, %v5989
        %v5991 = vpop.f32.mrf.mxu0
        %v5992 = vadd.f32 %v5903, %v5991
        %5993 = vmatmul.bf16.gmra.mxu0 %v5728
        %v5994 = vpop.f32.mrf.mxu0
        %v5995 = vadd.f32 %v5906, %v5994
        %v5996 = vpop.f32.mrf.mxu0
        %v5997 = vadd.f32 %v5908, %v5996
        %5998 = vmatmul.bf16.gmra.mxu0 %v5730
        %v5999 = vpop.f32.mrf.mxu0
        %v6000 = vadd.f32 %v5911, %v5999
        %v6001 = vpop.f32.mrf.mxu0
        %v6002 = vadd.f32 %v5913, %v6001
        %6003 = vmatmul.bf16.gmra.mxu0 %v5732
        %v6004 = vpop.f32.mrf.mxu0
        %v6005 = vadd.f32 %v5916, %v6004
        %v6006 = vpop.f32.mrf.mxu0
        %v6007 = vadd.f32 %v5918, %v6006
        %6008 = vmatmul.bf16.gmra.mxu0 %v5734
        %v6009 = vpop.f32.mrf.mxu0
        %v6010 = vadd.f32 %v5921, %v6009
        %v6011 = vpop.f32.mrf.mxu0
        %v6012 = vadd.f32 %v5923, %v6011
        %6013 = vmatmul.bf16.gmra.mxu0 %v5736
        %v6014 = vpop.f32.mrf.mxu0
        %v6015 = vadd.f32 %v5926, %v6014
        %v6016 = vpop.f32.mrf.mxu0
        %v6017 = vadd.f32 %v5928, %v6016
        %6018 = vmatmul.bf16.gmra.mxu0 %v5738
        %v6019 = vpop.f32.mrf.mxu0
        %v6020 = vadd.f32 %v5931, %v6019
        %v6021 = vpop.f32.mrf.mxu0
        %v6022 = vadd.f32 %v5933, %v6021
        %6023 = vmatmul.bf16.gmra.mxu0 %v5740
        %v6024 = vpop.f32.mrf.mxu0
        %v6025 = vadd.f32 %v5936, %v6024
        %v6026 = vpop.f32.mrf.mxu0
        %v6027 = vadd.f32 %v5938, %v6026
        %6028 = vmatmul.bf16.gmra.mxu0 %v5742
        %v6029 = vpop.f32.mrf.mxu0
        %v6030 = vadd.f32 %v5941, %v6029
        %v6031 = vpop.f32.mrf.mxu0
        %v6032 = vadd.f32 %v5943, %v6031
        %6033 = vmatmul.bf16.gmra.mxu0 %v5744
        %v6034 = vpop.f32.mrf.mxu0
        %v6035 = vadd.f32 %v5946, %v6034
        %v6036 = vpop.f32.mrf.mxu0
        %v6037 = vadd.f32 %v5948, %v6036
        %6038 = vmatmul.bf16.gmra.mxu0 %v5746
        %v6039 = vpop.f32.mrf.mxu0
        %v6040 = vadd.f32 %v5951, %v6039
        %v6041 = vpop.f32.mrf.mxu0
        %v6042 = vadd.f32 %v5953, %v6041
        %6043 = vmatmul.bf16.gmra.mxu0 %v5748
        %v6044 = vpop.f32.mrf.mxu0
        %v6045 = vadd.f32 %v5956, %v6044
        %v6046 = vpop.f32.mrf.mxu0
        %v6047 = vadd.f32 %v5958, %v6046
        %6048 = vmatmul.bf16.gmra.mxu0 %v5750
        %v6049 = vpop.f32.mrf.mxu0
        %v6050 = vadd.f32 %v5961, %v6049
        %v6051 = vpop.f32.mrf.mxu0
        %v6052 = vadd.f32 %v5963, %v6051
        %6053 = vmatmul.bf16.gmra.mxu0 %v5752
        %v6054 = vpop.f32.mrf.mxu0
        %v6055 = vadd.f32 %v5966, %v6054
        %v6056 = vpop.f32.mrf.mxu0
        %v6057 = vadd.f32 %v5968, %v6056
        %6058 = vdwg.mxu0
        %v6059 = vmax.f32 %v5980, 0.0
        %v6060 = vmax.f32 %v5982, 0.0
        %v6061 = vmax.f32 %v5985, 0.0
        %v6062 = vmax.f32 %v5987, 0.0
        %v6063 = vmax.f32 %v5990, 0.0
        %v6064 = vmax.f32 %v5992, 0.0
        %v6065 = vmax.f32 %v5995, 0.0
        %v6066 = vmax.f32 %v5997, 0.0
        %v6067 = vmax.f32 %v6000, 0.0
        %v6068 = vmax.f32 %v6002, 0.0
        %v6069 = vmax.f32 %v6005, 0.0
        %v6070 = vmax.f32 %v6007, 0.0
        %v6071 = vmax.f32 %v6010, 0.0
        %v6072 = vmax.f32 %v6012, 0.0
        %v6073 = vmax.f32 %v6015, 0.0
        %v6074 = vmax.f32 %v6017, 0.0
        %v6075 = vmax.f32 %v6020, 0.0
        %v6076 = vmax.f32 %v6022, 0.0
        %v6077 = vmax.f32 %v6025, 0.0
        %v6078 = vmax.f32 %v6027, 0.0
        %v6079 = vmax.f32 %v6030, 0.0
        %v6080 = vmax.f32 %v6032, 0.0
        %v6081 = vmax.f32 %v6035, 0.0
        %v6082 = vmax.f32 %v6037, 0.0
        %v6083 = vmax.f32 %v6040, 0.0
        %v6084 = vmax.f32 %v6042, 0.0
        %v6085 = vmax.f32 %v6045, 0.0
        %v6086 = vmax.f32 %v6047, 0.0
        %v6087 = vmax.f32 %v6050, 0.0
        %v6088 = vmax.f32 %v6052, 0.0
        %v6089 = vmax.f32 %v6055, 0.0
        %v6090 = vmax.f32 %v6057, 0.0
        %v6091 = vmax.f32 %v6059, %v6061
        %v6092 = vmax.f32 %v6060, %v6062
        %v6093 = vmax.f32 %v6091, %v6063
        %v6094 = vmax.f32 %v6092, %v6064
        %v6095 = vmax.f32 %v6093, %v6065
        %v6096 = vmax.f32 %v6094, %v6066
        %v6097 = vmax.f32 %v6095, %v6067
        %v6098 = vmax.f32 %v6096, %v6068
        %v6099 = vmax.f32 %v6097, %v6069
        %v6100 = vmax.f32 %v6098, %v6070
        %v6101 = vmax.f32 %v6099, %v6071
        %v6102 = vmax.f32 %v6100, %v6072
        %v6103 = vmax.f32 %v6101, %v6073
        %v6104 = vmax.f32 %v6102, %v6074
        %v6105 = vmax.f32 %v6103, %v6104
        %v6106 = vrot.slane %v6105, 4
        %v6107 = vmax.f32 %v6105, %v6106
        %v6108 = vrot.slane %v6107, 2
        %v6109 = vmax.f32 %v6107, %v6108
        %v6110 = vrot.slane %v6109, 1
        %v6111 = vmax.f32 %v6109, %v6110
        %v6112 = vmax.f32 %v6075, %v6077
        %v6113 = vmax.f32 %v6076, %v6078
        %v6114 = vmax.f32 %v6112, %v6079
        %v6115 = vmax.f32 %v6113, %v6080
        %v6116 = vmax.f32 %v6114, %v6081
        %v6117 = vmax.f32 %v6115, %v6082
        %v6118 = vmax.f32 %v6116, %v6083
        %v6119 = vmax.f32 %v6117, %v6084
        %v6120 = vmax.f32 %v6118, %v6085
        %v6121 = vmax.f32 %v6119, %v6086
        %v6122 = vmax.f32 %v6120, %v6087
        %v6123 = vmax.f32 %v6121, %v6088
        %v6124 = vmax.f32 %v6122, %v6089
        %v6125 = vmax.f32 %v6123, %v6090
        %v6126 = vmax.f32 %v6124, %v6125
        %v6127 = vrot.slane %v6126, 4
        %v6128 = vmax.f32 %v6126, %v6127
        %v6129 = vrot.slane %v6128, 2
        %v6130 = vmax.f32 %v6128, %v6129
        %v6131 = vrot.slane %v6130, 1
        %v6132 = vmax.f32 %v6130, %v6131
        %v6133 = vsub.f32 %v6059, %v6111
        %v6134 = vsub.f32 %v6060, %v6111
        %v6135 = vsub.f32 %v6061, %v6111
        %v6136 = vsub.f32 %v6062, %v6111
        %v6137 = vsub.f32 %v6063, %v6111
        %v6138 = vsub.f32 %v6064, %v6111
        %v6139 = vsub.f32 %v6065, %v6111
        %v6140 = vsub.f32 %v6066, %v6111
        %v6141 = vsub.f32 %v6067, %v6111
        %v6142 = vsub.f32 %v6068, %v6111
        %v6143 = vsub.f32 %v6069, %v6111
        %v6144 = vsub.f32 %v6070, %v6111
        %v6145 = vsub.f32 %v6071, %v6111
        %v6146 = vsub.f32 %v6072, %v6111
        %v6147 = vsub.f32 %v6073, %v6111
        %v6148 = vsub.f32 %v6074, %v6111
        %v6149 = vsub.f32 %v6075, %v6132
        %v6150 = vsub.f32 %v6076, %v6132
        %v6151 = vsub.f32 %v6077, %v6132
        %v6152 = vsub.f32 %v6078, %v6132
        %v6153 = vsub.f32 %v6079, %v6132
        %v6154 = vsub.f32 %v6080, %v6132
        %v6155 = vsub.f32 %v6081, %v6132
        %v6156 = vsub.f32 %v6082, %v6132
        %v6157 = vsub.f32 %v6083, %v6132
        %v6158 = vsub.f32 %v6084, %v6132
        %v6159 = vsub.f32 %v6085, %v6132
        %v6160 = vsub.f32 %v6086, %v6132
        %v6161 = vsub.f32 %v6087, %v6132
        %v6162 = vsub.f32 %v6088, %v6132
        %v6163 = vsub.f32 %v6089, %v6132
        %v6164 = vsub.f32 %v6090, %v6132
        %v6165 = vmul.f32 %v6133, 1.442695
        %v6166 = vpow.pop %v6165
        %v6167 = vmul.f32 %v6134, 1.442695
        %v6168 = vpow.pop %v6167
        %v6169 = vmul.f32 %v6135, 1.442695
        %v6170 = vpow.pop %v6169
        %v6171 = vmul.f32 %v6136, 1.442695
        %v6172 = vpow.pop %v6171
        %v6173 = vmul.f32 %v6137, 1.442695
        %v6174 = vpow.pop %v6173
        %v6175 = vmul.f32 %v6138, 1.442695
        %v6176 = vpow.pop %v6175
        %v6177 = vmul.f32 %v6139, 1.442695
        %v6178 = vpow.pop %v6177
        %v6179 = vmul.f32 %v6140, 1.442695
        %v6180 = vpow.pop %v6179
        %v6181 = vmul.f32 %v6141, 1.442695
        %v6182 = vpow.pop %v6181
        %v6183 = vmul.f32 %v6142, 1.442695
        %v6184 = vpow.pop %v6183
        %v6185 = vmul.f32 %v6143, 1.442695
        %v6186 = vpow.pop %v6185
        %v6187 = vmul.f32 %v6144, 1.442695
        %v6188 = vpow.pop %v6187
        %v6189 = vmul.f32 %v6145, 1.442695
        %v6190 = vpow.pop %v6189
        %v6191 = vmul.f32 %v6146, 1.442695
        %v6192 = vpow.pop %v6191
        %v6193 = vmul.f32 %v6147, 1.442695
        %v6194 = vpow.pop %v6193
        %v6195 = vmul.f32 %v6148, 1.442695
        %v6196 = vpow.pop %v6195
        %v6197 = vmul.f32 %v6149, 1.442695
        %v6198 = vpow.pop %v6197
        %v6199 = vmul.f32 %v6150, 1.442695
        %v6200 = vpow.pop %v6199
        %v6201 = vmul.f32 %v6151, 1.442695
        %v6202 = vpow.pop %v6201
        %v6203 = vmul.f32 %v6152, 1.442695
        %v6204 = vpow.pop %v6203
        %v6205 = vmul.f32 %v6153, 1.442695
        %v6206 = vpow.pop %v6205
        %v6207 = vmul.f32 %v6154, 1.442695
        %v6208 = vpow.pop %v6207
        %v6209 = vmul.f32 %v6155, 1.442695
        %v6210 = vpow.pop %v6209
        %v6211 = vmul.f32 %v6156, 1.442695
        %v6212 = vpow.pop %v6211
        %v6213 = vmul.f32 %v6157, 1.442695
        %v6214 = vpow.pop %v6213
        %v6215 = vmul.f32 %v6158, 1.442695
        %v6216 = vpow.pop %v6215
        %v6217 = vmul.f32 %v6159, 1.442695
        %v6218 = vpow.pop %v6217
        %v6219 = vmul.f32 %v6160, 1.442695
        %v6220 = vpow.pop %v6219
        %v6221 = vmul.f32 %v6161, 1.442695
        %v6222 = vpow.pop %v6221
        %v6223 = vmul.f32 %v6162, 1.442695
        %v6224 = vpow.pop %v6223
        %v6225 = vmul.f32 %v6163, 1.442695
        %v6226 = vpow.pop %v6225
        %v6227 = vmul.f32 %v6164, 1.442695
        %v6228 = vpow.pop %v6227
        %v6229 = vadd.f32 %v6166, %v6168
        %v6230 = vadd.f32 %v6229, %v6170
        %v6231 = vadd.f32 %v6230, %v6172
        %v6232 = vadd.f32 %v6231, %v6174
        %v6233 = vadd.f32 %v6232, %v6176
        %v6234 = vadd.f32 %v6233, %v6178
        %v6235 = vadd.f32 %v6234, %v6180
        %v6236 = vadd.f32 %v6235, %v6182
        %v6237 = vadd.f32 %v6236, %v6184
        %v6238 = vadd.f32 %v6237, %v6186
        %v6239 = vadd.f32 %v6238, %v6188
        %v6240 = vadd.f32 %v6239, %v6190
        %v6241 = vadd.f32 %v6240, %v6192
        %v6242 = vadd.f32 %v6241, %v6194
        %v6243 = vadd.f32 %v6242, %v6196
        %v6244 = vrot.slane %v6243, 4
        %v6245 = vadd.f32 %v6243, %v6244
        %v6246 = vrot.slane %v6245, 2
        %v6247 = vadd.f32 %v6245, %v6246
        %v6248 = vrot.slane %v6247, 1
        %v6249 = vadd.f32 %v6247, %v6248
        %v6250 = vadd.f32 %v6198, %v6200
        %v6251 = vadd.f32 %v6250, %v6202
        %v6252 = vadd.f32 %v6251, %v6204
        %v6253 = vadd.f32 %v6252, %v6206
        %v6254 = vadd.f32 %v6253, %v6208
        %v6255 = vadd.f32 %v6254, %v6210
        %v6256 = vadd.f32 %v6255, %v6212
        %v6257 = vadd.f32 %v6256, %v6214
        %v6258 = vadd.f32 %v6257, %v6216
        %v6259 = vadd.f32 %v6258, %v6218
        %v6260 = vadd.f32 %v6259, %v6220
        %v6261 = vadd.f32 %v6260, %v6222
        %v6262 = vadd.f32 %v6261, %v6224
        %v6263 = vadd.f32 %v6262, %v6226
        %v6264 = vadd.f32 %v6263, %v6228
        %v6265 = vrot.slane %v6264, 4
        %v6266 = vadd.f32 %v6264, %v6265
        %v6267 = vrot.slane %v6266, 2
        %v6268 = vadd.f32 %v6266, %v6267
        %v6269 = vrot.slane %v6268, 1
        %v6270 = vadd.f32 %v6268, %v6269
        %v6271 = vlog2.pop %v6249
        %v6272 = vmul.f32 %v6271, 0.6931472
        %v6273 = vlog2.pop %v6270
        %v6274 = vmul.f32 %v6273, 0.6931472
        %v6275 = vsub.f32 %v6133, %v6272
        %v6276 = vsub.f32 %v6134, %v6272
        %v6277 = vsub.f32 %v6135, %v6272
        %v6278 = vsub.f32 %v6136, %v6272
        %v6279 = vsub.f32 %v6137, %v6272
        %v6280 = vsub.f32 %v6138, %v6272
        %v6281 = vsub.f32 %v6139, %v6272
        %v6282 = vsub.f32 %v6140, %v6272
        %v6283 = vsub.f32 %v6141, %v6272
        %v6284 = vsub.f32 %v6142, %v6272
        %v6285 = vsub.f32 %v6143, %v6272
        %v6286 = vsub.f32 %v6144, %v6272
        %v6287 = vsub.f32 %v6145, %v6272
        %v6288 = vsub.f32 %v6146, %v6272
        %v6289 = vsub.f32 %v6147, %v6272
        %v6290 = vsub.f32 %v6148, %v6272
        %v6291 = vsub.f32 %v6149, %v6274
        %v6292 = vsub.f32 %v6150, %v6274
        %v6293 = vsub.f32 %v6151, %v6274
        %v6294 = vsub.f32 %v6152, %v6274
        %v6295 = vsub.f32 %v6153, %v6274
        %v6296 = vsub.f32 %v6154, %v6274
        %v6297 = vsub.f32 %v6155, %v6274
        %v6298 = vsub.f32 %v6156, %v6274
        %v6299 = vsub.f32 %v6157, %v6274
        %v6300 = vsub.f32 %v6158, %v6274
        %v6301 = vsub.f32 %v6159, %v6274
        %v6302 = vsub.f32 %v6160, %v6274
        %v6303 = vsub.f32 %v6161, %v6274
        %v6304 = vsub.f32 %v6162, %v6274
        %v6305 = vsub.f32 %v6163, %v6274
        %v6306 = vsub.f32 %v6164, %v6274
        %v6307 = vadd.f32 %v6275, %v6276
        %v6308 = vadd.f32 %v6307, %v6277
        %v6309 = vadd.f32 %v6308, %v6278
        %v6310 = vadd.f32 %v6309, %v6279
        %v6311 = vadd.f32 %v6310, %v6280
        %v6312 = vadd.f32 %v6311, %v6281
        %v6313 = vadd.f32 %v6312, %v6282
        %v6314 = vadd.f32 %v6313, %v6283
        %v6315 = vadd.f32 %v6314, %v6284
        %v6316 = vadd.f32 %v6315, %v6285
        %v6317 = vadd.f32 %v6316, %v6286
        %v6318 = vadd.f32 %v6317, %v6287
        %v6319 = vadd.f32 %v6318, %v6288
        %v6320 = vadd.f32 %v6319, %v6289
        %v6321 = vadd.f32 %v6320, %v6290
        %v6322 = vrot.slane %v6321, 4
        %v6323 = vadd.f32 %v6321, %v6322
        %v6324 = vrot.slane %v6323, 2
        %v6325 = vadd.f32 %v6323, %v6324
        %v6326 = vrot.slane %v6325, 1
        %v6327 = vadd.f32 %v6325, %v6326
        %v6328 = vadd.f32 %v6291, %v6292
        %v6329 = vadd.f32 %v6328, %v6293
        %v6330 = vadd.f32 %v6329, %v6294
        %v6331 = vadd.f32 %v6330, %v6295
        %v6332 = vadd.f32 %v6331, %v6296
        %v6333 = vadd.f32 %v6332, %v6297
        %v6334 = vadd.f32 %v6333, %v6298
        %v6335 = vadd.f32 %v6334, %v6299
        %v6336 = vadd.f32 %v6335, %v6300
        %v6337 = vadd.f32 %v6336, %v6301
        %v6338 = vadd.f32 %v6337, %v6302
        %v6339 = vadd.f32 %v6338, %v6303
        %v6340 = vadd.f32 %v6339, %v6304
        %v6341 = vadd.f32 %v6340, %v6305
        %v6342 = vadd.f32 %v6341, %v6306
        %v6343 = vrot.slane %v6342, 4
        %v6344 = vadd.f32 %v6342, %v6343
        %v6345 = vrot.slane %v6344, 2
        %v6346 = vadd.f32 %v6344, %v6345
        %v6347 = vrot.slane %v6346, 1
        %v6348 = vadd.f32 %v6346, %v6347
        %v6349 = vrcp.pop 128.0
        %v6350 = vmul.f32 128.0, %v6349
        %v6351 = vsub.f32 1.0, %v6350
        %v6352 = vmul.f32 %v6349, %v6351
        %v6353 = vadd.f32 %v6349, %v6352
        %vm6354 = vweird.f32 %v6349
        %v6355 = vsel %vm6354, %v6349, %v6353
        %v6356 = vmul.f32 %v6327, %v6355
        %v6357 = vmul.f32 %v6348, %v6355
        %6358 = vst [vmem:[%s382] sm:$0x1] %v6356
        %6359 = vst [vmem:[%s382 + $0x1] sm:$0x1] %v6357
        %s6360 = sand.u32 %s187, 1
        %s6361 = scalar_lea.sflag [#allocation4], %s6360
        %s6362 = sand.u32 %s187, 1
        %s6363 = smul.addr %s6362, 2
        %s6364 = scalar_lea.vmem [#allocation13], %s6363
        // Predicated region
        $region73: #{tpu_custom_call.1} parent=47 // pred_check
          %p6365 = pneg %p197
        $region74: #{tpu_custom_call.1} parent=47 // pred_check_branch
          %6367 = sbr.rel (%p6365) target = $region76
        $region75: #{tpu_custom_call.1} parent=47 // pred_region
          %s6368 = smul.u32 2, %s27
          %6370 = vsyncadd %s6361, 0
          %s6371 = scalar_lea.hbm %s7, %s6368
          %s6372 = sshll.u32 %s6364, 4
          %s6373 = int_to_ptr.vmem [resolvable:$true] %s6372
          %s6374 = sshll.u32 %s6371, 4
          %s6375 = int_to_ptr.hbm [resolvable:$true] %s6374
          %6380 = dma.vmem_to_hbm [thread:$0]  %s6373, 32, %s6375, %s6361, 16, 16, 1
        $region76: #{tpu_custom_call.1} parent=47 // pred_fallthru
          _
      $region48: #{tpu_custom_call.1} parent=5 // pred_fallthru
        _
      %p6381 = scmp.le.s32.totalorder 2, %s22
      // Predicated region
      $region77: #{tpu_custom_call.1} parent=5 // pred_check
        %p6382 = pneg %p6381
      $region78: #{tpu_custom_call.1} parent=5 // pred_check_branch
        %6384 = sbr.rel (%p6382) target = $region80
      $region79: #{tpu_custom_call.1} parent=5 // pred_region
        %s6385 = ssub.s32 %s22, 2
        // Predicated region
        $region81: #{tpu_custom_call.1} parent=79 // pred_check
          %p6386 = pneg %p203
        $region82: #{tpu_custom_call.1} parent=79 // pred_check_branch
          %6388 = sbr.rel (%p6386) target = $region84
        $region83: #{tpu_custom_call.1} parent=79 // pred_region
          %s6389 = sand.u32 %s188, 1
          %s6390 = scalar_lea.sflag [#allocation4], %s6389
          %s6391 = sand.u32 %s188, 1
          %s6392 = smul.addr %s6391, 2
          %s6393 = scalar_lea.vmem [#allocation13], %s6392
          %6395 = dma.done %s6390, 32
        $region84: #{tpu_custom_call.1} parent=79 // pred_fallthru
          _
      $region80: #{tpu_custom_call.1} parent=5 // pred_fallthru
        _
    $region6: #{tpu_custom_call.1} parent=1 // loop_footer
      %s26 = sadd.s32 1, %s22
    $region7: #{tpu_custom_call.1} parent=1 // loop_footer_branch
      %21 = sbr.rel target = $region3
    $region8: #{tpu_custom_call.1} parent=1 // loop_exit
      _
    %6396 = vsyncpa [#allocation3], 1
    %s6397 = scalar_lea.sflag [#allocation3], 1
    %6398 = vsyncpa %s6397, 1
    %6399 = vsyncpa [#allocation6], 1
    %6400 = vsyncpa [#allocation9], 1
    %6401 = vsyncpa [#allocation12], 1
    %6402 = vsyncpa [#allocation4], 1
    %s6403 = scalar_lea.sflag [#allocation4], 1
    %6404 = vsyncpa %s6403, 1

</llo_original>
